<compile_context>
chip_gen: v6e
topology: v6e:2x2x1
jax: 0.10.0
libtpu: 0.0.40
codegen_flags: <defaults>
</compile_context>

<pallas_src>
import functools
import math
from dataclasses import dataclass

import jax
import jax.numpy as jnp
from jax.experimental import pallas as pl
from jax.experimental.pallas import tpu as pltpu


_VMEM_LIMIT = 64 * 1024 * 1024  # explicit scoped-VMEM cap (v7x has 64 MiB physical)


# --------------------------------------------------------------------------
# Config (synthetic, small; mirrors the fields DeepseekV2 forward uses)
# --------------------------------------------------------------------------
@dataclass(frozen=True)
class DeepseekV2Config:
    vocab_size: int = 64
    hidden_size: int = 128
    num_hidden_layers: int = 2          # layer 0 -> GatedMLP, layer 1 -> MoE
    num_attention_heads: int = 2
    q_lora_rank: int = 32
    kv_lora_rank: int = 32
    qk_nope_head_dim: int = 32
    qk_rope_head_dim: int = 16
    v_head_dim: int = 32
    intermediate_size: int = 64
    moe_inter_size: int = 32
    num_experts: int = 4
    top_k: int = 2
    shared_expert_intermediate_size: int = 32
    norm_epsilon: float = 1e-6
    rotary_base: float = 10000.0


# --------------------------------------------------------------------------
# RMSNorm kernels (token-tiled, residual add fused where possible)
# --------------------------------------------------------------------------
def _rmsnorm_kernel(x_ref, w_ref, o_ref, *, eps):
    x = x_ref[...].astype(jnp.float32)
    var = jnp.mean(x * x, axis=-1, keepdims=True)
    y = x * jax.lax.rsqrt(var + eps)
    o_ref[...] = (y * w_ref[...].astype(jnp.float32)).astype(o_ref.dtype)


def pallas_rmsnorm(x, w, eps, *, token_tile=512):
    T, D = x.shape
    tt = min(T, token_tile)
    assert T % tt == 0
    return pl.pallas_call(
        functools.partial(_rmsnorm_kernel, eps=eps),
        out_shape=jax.ShapeDtypeStruct((T, D), x.dtype),
        grid=(T // tt,),
        in_specs=[
            pl.BlockSpec((tt, D), lambda i: (i, 0)),
            pl.BlockSpec((1, D), lambda i: (0, 0)),
        ],
        out_specs=pl.BlockSpec((tt, D), lambda i: (i, 0)),
        compiler_params=pltpu.CompilerParams(dimension_semantics=("parallel",)),
    )(x, w.reshape(1, D))


def _add_rmsnorm_kernel(x_ref, r_ref, w_ref, res_ref, y_ref, *, eps):
    """Fused residual add + RMSNorm: res = x + r ; y = rmsnorm(res) * w."""
    s = x_ref[...].astype(jnp.float32) + r_ref[...].astype(jnp.float32)
    res_ref[...] = s.astype(res_ref.dtype)
    var = jnp.mean(s * s, axis=-1, keepdims=True)
    y = s * jax.lax.rsqrt(var + eps)
    y_ref[...] = (y * w_ref[...].astype(jnp.float32)).astype(y_ref.dtype)


def pallas_add_rmsnorm(x, r, w, eps, *, token_tile=512):
    """Returns (new_residual, normalized)."""
    T, D = x.shape
    tt = min(T, token_tile)
    assert T % tt == 0
    return pl.pallas_call(
        functools.partial(_add_rmsnorm_kernel, eps=eps),
        out_shape=(jax.ShapeDtypeStruct((T, D), x.dtype),
                   jax.ShapeDtypeStruct((T, D), x.dtype)),
        grid=(T // tt,),
        in_specs=[
            pl.BlockSpec((tt, D), lambda i: (i, 0)),
            pl.BlockSpec((tt, D), lambda i: (i, 0)),
            pl.BlockSpec((1, D), lambda i: (0, 0)),
        ],
        out_specs=(pl.BlockSpec((tt, D), lambda i: (i, 0)),
                   pl.BlockSpec((tt, D), lambda i: (i, 0))),
        compiler_params=pltpu.CompilerParams(dimension_semantics=("parallel",)),
    )(x, r, w.reshape(1, D))


# --------------------------------------------------------------------------
# GatedMLP (swiglu) kernel, token-tiled
# --------------------------------------------------------------------------
def _gated_mlp_kernel(x_ref, wf_ref, wg_ref, wp_ref, o_ref):
    x = x_ref[...]                                                  # bf16
    f = jnp.dot(x, wf_ref[...], preferred_element_type=jnp.float32)
    g = jnp.dot(x, wg_ref[...], preferred_element_type=jnp.float32)
    h = (f * jax.nn.sigmoid(f)) * g
    o_ref[...] = jnp.dot(h.astype(x.dtype), wp_ref[...],
                         preferred_element_type=jnp.float32).astype(o_ref.dtype)


def pallas_gated_mlp(x, wf, wg, wp, *, token_tile=512):
    # TODO(synk): at production intermediate sizes, add a K-tiled grid axis
    # with an f32 accumulator instead of holding wf/wg/wp fully resident.
    T, D = x.shape
    I = wf.shape[1]
    tt = min(T, token_tile)
    assert T % tt == 0
    return pl.pallas_call(
        _gated_mlp_kernel,
        out_shape=jax.ShapeDtypeStruct((T, D), x.dtype),
        grid=(T // tt,),
        in_specs=[
            pl.BlockSpec((tt, D), lambda i: (i, 0)),
            pl.BlockSpec((D, I), lambda i: (0, 0)),
            pl.BlockSpec((D, I), lambda i: (0, 0)),
            pl.BlockSpec((I, D), lambda i: (0, 0)),
        ],
        out_specs=pl.BlockSpec((tt, D), lambda i: (i, 0)),
        compiler_params=pltpu.CompilerParams(dimension_semantics=("parallel",)),
    )(x, wf, wg, wp)


# --------------------------------------------------------------------------
# MoE (routed experts + shared expert) with scalar-prefetched active flags
# --------------------------------------------------------------------------
def _moe_kernel(active_ref, x_ref, w_ref, wf_ref, wg_ref, wp_ref, o_ref, acc_ref):
    """Grid = (token_tiles, E+1).  One expert per inner step, VMEM accumulator."""
    e = pl.program_id(1)
    ne = pl.num_programs(1)

    @pl.when(e == 0)
    def _():
        acc_ref[...] = jnp.zeros_like(acc_ref)

    @pl.when(active_ref[e] > 0)       # skip experts no token routed to
    def _():
        x = x_ref[...]                                              # bf16
        f = jnp.dot(x, wf_ref[0], preferred_element_type=jnp.float32)
        g = jnp.dot(x, wg_ref[0], preferred_element_type=jnp.float32)
        h = (f * jax.nn.sigmoid(f)) * g
        y = jnp.dot(h.astype(x.dtype), wp_ref[0],
                    preferred_element_type=jnp.float32)
        acc_ref[...] += w_ref[0].astype(jnp.float32) * y            # [tt,1]*[tt,D]

    @pl.when(e == ne - 1)
    def _():
        o_ref[...] = acc_ref[...].astype(o_ref.dtype)


def pallas_moe(x, w_t, active, wf, wg, wp, *, token_tile=512):
    """x: [T,D]; w_t: [E+1,T,1] routing weights (shared expert = last row,
    weight 1); active: int32 [E+1]; stacked expert weights."""
    # TODO(synk): for production expert counts (160 routed, top-6), switch to
    # token-sorted grouped MoE (PrefetchScalarGridSpec with per-expert token
    # group offsets) instead of iterating every expert over every token tile.
    T, D = x.shape
    E1, _, I = wf.shape
    tt = min(T, token_tile)
    assert T % tt == 0
    return pl.pallas_call(
        _moe_kernel,
        out_shape=jax.ShapeDtypeStruct((T, D), x.dtype),
        grid_spec=pltpu.PrefetchScalarGridSpec(
            num_scalar_prefetch=1,
            grid=(T // tt, E1),
            in_specs=[
                pl.BlockSpec((tt, D), lambda t, e, act: (t, 0)),
                pl.BlockSpec((1, tt, 1), lambda t, e, act: (e, t, 0)),
                pl.BlockSpec((1, D, I), lambda t, e, act: (e, 0, 0)),
                pl.BlockSpec((1, D, I), lambda t, e, act: (e, 0, 0)),
                pl.BlockSpec((1, I, D), lambda t, e, act: (e, 0, 0)),
            ],
            out_specs=pl.BlockSpec((tt, D), lambda t, e, act: (t, 0)),
            scratch_shapes=[pltpu.VMEM((tt, D), jnp.float32)],
        ),
        compiler_params=pltpu.CompilerParams(
            dimension_semantics=("parallel", "arbitrary"),
            vmem_limit_bytes=_VMEM_LIMIT),
    )(active, x, w_t, wf, wg, wp)


# --------------------------------------------------------------------------
# MLA attention: (1) compressed projections, (2) per-(batch, head) core
# --------------------------------------------------------------------------
def _mla_a_proj_kernel(x_ref, wqa_ref, wkva_ref, wkpe_ref, qaln_ref, kvln_ref,
                       cos_ref, sin_ref, rot_ref, qa_ref, ckv_ref, kpe_ref, *, eps):
    """fused_a split into 3 dots + LoRA RMSNorms + k_pe RoPE.  Outputs stay
    rank-compressed (that is the MLA cache representation)."""
    x = x_ref[...]                                                  # [tt, D] bf16
    qa = jnp.dot(x, wqa_ref[...], preferred_element_type=jnp.float32)
    ckv = jnp.dot(x, wkva_ref[...], preferred_element_type=jnp.float32)
    kpe = jnp.dot(x, wkpe_ref[...], preferred_element_type=jnp.float32)

    def rms(v, w_row):
        var = jnp.mean(v * v, axis=-1, keepdims=True)
        return v * jax.lax.rsqrt(var + eps) * w_row.astype(jnp.float32)

    qa = rms(qa, qaln_ref[...])
    ckv = rms(ckv, kvln_ref[...])

    # rotate-half via a signed half-roll permutation matmul (MXU) -- no lane
    # slices / concats.
    # TODO(synk): HF DeepseekV2 permutes even/odd rope channels before
    # rotate-half (equivalent weight re-parameterization); omitted here.
    kpe_rot = jnp.dot(kpe.astype(jnp.bfloat16), rot_ref[...],
                      preferred_element_type=jnp.float32)
    kpe = kpe * cos_ref[...] + kpe_rot * sin_ref[...]

    qa_ref[...] = qa.astype(qa_ref.dtype)
    ckv_ref[...] = ckv.astype(ckv_ref.dtype)
    kpe_ref[...] = kpe.astype(kpe_ref.dtype)


def pallas_mla_a_proj(xn, p, cos_t, sin_t, rot, eps, *, token_tile=512):
    T, D = xn.shape
    ql = p["wq_a"].shape[1]
    kvl = p["wkv_a"].shape[1]
    dr = p["wk_pe"].shape[1]
    tt = min(T, token_tile)
    assert T % tt == 0
    return pl.pallas_call(
        functools.partial(_mla_a_proj_kernel, eps=eps),
        out_shape=(jax.ShapeDtypeStruct((T, ql), xn.dtype),
                   jax.ShapeDtypeStruct((T, kvl), xn.dtype),
                   jax.ShapeDtypeStruct((T, dr), xn.dtype)),
        grid=(T // tt,),
        in_specs=[
            pl.BlockSpec((tt, D), lambda i: (i, 0)),
            pl.BlockSpec((D, ql), lambda i: (0, 0)),
            pl.BlockSpec((D, kvl), lambda i: (0, 0)),
            pl.BlockSpec((D, dr), lambda i: (0, 0)),
            pl.BlockSpec((1, ql), lambda i: (0, 0)),
            pl.BlockSpec((1, kvl), lambda i: (0, 0)),
            pl.BlockSpec((tt, dr), lambda i: (i, 0)),
            pl.BlockSpec((tt, dr), lambda i: (i, 0)),
            pl.BlockSpec((dr, dr), lambda i: (0, 0)),
        ],
        out_specs=(pl.BlockSpec((tt, ql), lambda i: (i, 0)),
                   pl.BlockSpec((tt, kvl), lambda i: (i, 0)),
                   pl.BlockSpec((tt, dr), lambda i: (i, 0))),
        compiler_params=pltpu.CompilerParams(dimension_semantics=("parallel",)),
    )(xn, p["wq_a"], p["wkv_a"], p["wk_pe"],
      p["q_a_ln"].reshape(1, ql), p["kv_a_ln"].reshape(1, kvl),
      cos_t, sin_t, rot)


def _mla_attn_core_kernel(qa_ref, ckv_ref, kpe_ref, cos_ref, sin_ref, rot_ref,
                          wqbn_ref, wqbp_ref, wkbn_ref, wvb_ref, wo_ref,
                          o_ref, acc_ref, *, scale):
    """One (batch, head) per grid step.  Per-head q_b/kv_b/o_proj weight
    blocks are streamed via BlockSpec; o_proj is accumulated over heads in a
    VMEM f32 scratch.  Only 2-D dots -- no transposes / reshapes / concats."""
    hid = pl.program_id(1)
    nh = pl.num_programs(1)

    @pl.when(hid == 0)
    def _():
        acc_ref[...] = jnp.zeros_like(acc_ref)

    qa = qa_ref[0]                                                  # [S, ql]  bf16
    ckv = ckv_ref[0]                                                # [S, kvl] bf16
    kpe = kpe_ref[0]                                                # [S, dr]  bf16 (roped)

    qn = jnp.dot(qa, wqbn_ref[0], preferred_element_type=jnp.float32)   # [S, dn]
    qp = jnp.dot(qa, wqbp_ref[0], preferred_element_type=jnp.float32)   # [S, dr]
    qp_rot = jnp.dot(qp.astype(jnp.bfloat16), rot_ref[...],
                     preferred_element_type=jnp.float32)
    qp = qp * cos_ref[...] + qp_rot * sin_ref[...]

    kn = jnp.dot(ckv, wkbn_ref[0], preferred_element_type=jnp.float32)  # [S, dn]
    v = jnp.dot(ckv, wvb_ref[0], preferred_element_type=jnp.float32)    # [S, dv]

    # TODO(synk): for production S, replace the dense [S,S] causal-masked
    # scores with flash-style kv tiling (online softmax, triangular kv loop).
    s = jax.lax.dot_general(qn.astype(jnp.bfloat16), kn.astype(jnp.bfloat16),
                            (((1,), (1,)), ((), ())),
                            preferred_element_type=jnp.float32)
    s = s + jax.lax.dot_general(qp.astype(jnp.bfloat16), kpe,
                                (((1,), (1,)), ((), ())),
                                preferred_element_type=jnp.float32)
    s = s * scale

    S = s.shape[0]
    row = jax.lax.broadcasted_iota(jnp.int32, (S, S), 0)
    col = jax.lax.broadcasted_iota(jnp.int32, (S, S), 1)
    s = jnp.where(col <= row, s, jnp.float32(-1e30))

    m = jnp.max(s, axis=-1, keepdims=True)
    p = jnp.exp(s - m)
    p = p * pl.reciprocal(jnp.sum(p, axis=-1, keepdims=True), approx=True)

    ctx = jnp.dot(p.astype(jnp.bfloat16), v.astype(jnp.bfloat16),
                  preferred_element_type=jnp.float32)                    # [S, dv]
    acc_ref[...] += jnp.dot(ctx.astype(jnp.bfloat16), wo_ref[0],
                            preferred_element_type=jnp.float32)          # [S, D]

    @pl.when(hid == nh - 1)
    def _():
        o_ref[0] = acc_ref[...].astype(o_ref.dtype)


def pallas_mla_attention(xn, p, cos_s, sin_s, rot, cfg, B, S):
    """DeepseekV2Attention (MLA).  xn: [T, D] -> [T, D]."""
    D = cfg.hidden_size
    H = cfg.num_attention_heads
    dn, dr, dv = cfg.qk_nope_head_dim, cfg.qk_rope_head_dim, cfg.v_head_dim
    ql, kvl = cfg.q_lora_rank, cfg.kv_lora_rank
    T = B * S

    cos_t = jnp.tile(cos_s, (B, 1))
    sin_t = jnp.tile(sin_s, (B, 1))
    qa, ckv, kpe = pallas_mla_a_proj(xn, p, cos_t, sin_t, rot, cfg.norm_epsilon)
    qa = qa.reshape(B, S, ql)
    ckv = ckv.reshape(B, S, kvl)
    kpe = kpe.reshape(B, S, dr)

    # TODO(synk): YaRN mscale assumed 1 (synthetic rotary scaling factor 1).
    scale = 1.0 / math.sqrt(dn + dr)

    out = pl.pallas_call(
        functools.partial(_mla_attn_core_kernel, scale=scale),
        out_shape=jax.ShapeDtypeStruct((B, S, D), xn.dtype),
        grid=(B, H),
        in_specs=[
            pl.BlockSpec((1, S, ql), lambda b, h: (b, 0, 0)),
            pl.BlockSpec((1, S, kvl), lambda b, h: (b, 0, 0)),
            pl.BlockSpec((1, S, dr), lambda b, h: (b, 0, 0)),
            pl.BlockSpec((S, dr), lambda b, h: (0, 0)),
            pl.BlockSpec((S, dr), lambda b, h: (0, 0)),
            pl.BlockSpec((dr, dr), lambda b, h: (0, 0)),
            pl.BlockSpec((1, ql, dn), lambda b, h: (h, 0, 0)),
            pl.BlockSpec((1, ql, dr), lambda b, h: (h, 0, 0)),
            pl.BlockSpec((1, kvl, dn), lambda b, h: (h, 0, 0)),
            pl.BlockSpec((1, kvl, dv), lambda b, h: (h, 0, 0)),
            pl.BlockSpec((1, dv, D), lambda b, h: (h, 0, 0)),
        ],
        out_specs=pl.BlockSpec((1, S, D), lambda b, h: (b, 0, 0)),
        scratch_shapes=[pltpu.VMEM((S, D), jnp.float32)],
        compiler_params=pltpu.CompilerParams(
            dimension_semantics=("parallel", "arbitrary"),
            vmem_limit_bytes=_VMEM_LIMIT),
    )(qa, ckv, kpe, cos_s, sin_s, rot,
      p["wq_b_nope"], p["wq_b_pe"], p["wkv_b_k"], p["wkv_b_v"], p["o_proj"])
    return out.reshape(T, D)


# --------------------------------------------------------------------------
# Plain-JAX glue (tiny ops: embedding gather, router top-k, rope tables)
# --------------------------------------------------------------------------
def rope_tables(S, dr, base):
    inv_freq = 1.0 / (base ** (jnp.arange(0, dr, 2, dtype=jnp.float32) / dr))
    ang = jnp.arange(S, dtype=jnp.float32)[:, None] * inv_freq[None, :]  # [S, dr//2]
    cos = jnp.concatenate([jnp.cos(ang), jnp.cos(ang)], axis=-1)         # [S, dr]
    sin = jnp.concatenate([jnp.sin(ang), jnp.sin(ang)], axis=-1)
    return cos, sin


def rotate_half_matrix(dr, dtype=jnp.bfloat16):
    """rotate_half(t) == t @ R  (signed half-roll permutation)."""
    half = dr // 2
    i = jnp.arange(dr)[:, None]
    j = jnp.arange(dr)[None, :]
    r = jnp.where((j < half) & (i == j + half), -1.0, 0.0) + \
        jnp.where((j >= half) & (i == j - half), 1.0, 0.0)
    return r.astype(dtype)


def moe_routing(xn, router_w, cfg):
    # TODO(synk): DeepSeek-V2 group-limited greedy routing / routed_scaling_factor
    # not replicated; standard renormalized softmax top-k routing is used.
    logits = jnp.dot(xn.astype(jnp.float32), router_w.astype(jnp.float32))
    probs = jax.nn.softmax(logits, axis=-1)
    _, topi = jax.lax.top_k(probs, cfg.top_k)
    mask = jnp.sum(jax.nn.one_hot(topi, cfg.num_experts, dtype=probs.dtype), axis=1)
    w = probs * mask
    w = w / jnp.sum(w, axis=-1, keepdims=True)
    T = w.shape[0]
    # append shared-expert column (weight 1.0 for every token), transpose so
    # each expert grid step reads its own [tt, 1] column directly.
    w_all = jnp.concatenate([w, jnp.ones((T, 1), w.dtype)], axis=-1)     # [T, E+1]
    w_t = jnp.transpose(w_all, (1, 0))[:, :, None]                       # [E+1, T, 1]
    active = jnp.concatenate(
        [jnp.any(w > 0, axis=0), jnp.ones((1,), bool)]).astype(jnp.int32)
    return w_t, active


def deepseek_v2_model_forward(params, input_ids, cfg):
    """DeepseekV2Model.forward (single rank, use_cache=False)."""
    B, S = input_ids.shape
    D = cfg.hidden_size
    T = B * S

    h = params["embed"][input_ids].reshape(T, D)                 # vocab_embedding
    cos_s, sin_s = rope_tables(S, cfg.qk_rope_head_dim, cfg.rotary_base)
    rot = rotate_half_matrix(cfg.qk_rope_head_dim)

    mlp_out = None
    for lp in params["layers"]:
        # input_layernorm (fused with previous layer's residual add)
        if mlp_out is None:
            xn = pallas_rmsnorm(h, lp["input_ln"], cfg.norm_epsilon)
        else:
            h, xn = pallas_add_rmsnorm(h, mlp_out, lp["input_ln"], cfg.norm_epsilon)

        attn = pallas_mla_attention(xn, lp["attn"], cos_s, sin_s, rot, cfg, B, S)

        # residual add + post_layernorm, fused
        h, xn = pallas_add_rmsnorm(h, attn, lp["post_ln"], cfg.norm_epsilon)

        mlp = lp["mlp"]
        if "router" in mlp:
            w_t, active = moe_routing(xn, mlp["router"], cfg)
            mlp_out = pallas_moe(xn, w_t, active, mlp["wf"], mlp["wg"], mlp["wp"])
        else:
            mlp_out = pallas_gated_mlp(xn, mlp["fc"], mlp["gate"], mlp["proj"])

    # final residual add fused with ln_f
    _, final = pallas_add_rmsnorm(h, mlp_out, params["ln_f"], cfg.norm_epsilon)
    return final.reshape(B, S, D)


# --------------------------------------------------------------------------
# Deterministic parameter init (bf16 weights -> bf16 MXU operands)
# --------------------------------------------------------------------------
def _dense(key, shape, scale=0.02, dtype=jnp.bfloat16):
    return (scale * jax.random.normal(key, shape, dtype=jnp.float32)).astype(dtype)


def init_params(key, cfg):
    H = cfg.num_attention_heads
    dn, dr, dv = cfg.qk_nope_head_dim, cfg.qk_rope_head_dim, cfg.v_head_dim
    ql, kvl = cfg.q_lora_rank, cfg.kv_lora_rank
    D = cfg.hidden_size
    dtype = jnp.bfloat16
    keys = iter(jax.random.split(key, 256))
    params = {"embed": _dense(next(keys), (cfg.vocab_size, D))}
    layers = []
    for li in range(cfg.num_hidden_layers):
        lp = {
            "input_ln": jnp.ones((D,), dtype),
            "post_ln": jnp.ones((D,), dtype),
            "attn": {
                # fused_a pre-split into q_a / kv_a / k_pe weight operands
                "wq_a": _dense(next(keys), (D, ql)),
                "wkv_a": _dense(next(keys), (D, kvl)),
                "wk_pe": _dense(next(keys), (D, dr)),
                "q_a_ln": jnp.ones((ql,), dtype),
                "kv_a_ln": jnp.ones((kvl,), dtype),
                # per-head b-projections stored head-major for BlockSpec streaming
                "wq_b_nope": _dense(next(keys), (H, ql, dn)),
                "wq_b_pe": _dense(next(keys), (H, ql, dr)),
                "wkv_b_k": _dense(next(keys), (H, kvl, dn)),
                "wkv_b_v": _dense(next(keys), (H, kvl, dv)),
                "o_proj": _dense(next(keys), (H, dv, D)),
            },
        }
        if cfg.num_experts > 0 and li > 0:
            # shared expert stacked as the last "expert" (equal inter size)
            assert cfg.moe_inter_size == cfg.shared_expert_intermediate_size
            E1 = cfg.num_experts + 1
            lp["mlp"] = {
                "router": _dense(next(keys), (D, cfg.num_experts), dtype=jnp.float32),
                "wf": _dense(next(keys), (E1, D, cfg.moe_inter_size)),
                "wg": _dense(next(keys), (E1, D, cfg.moe_inter_size)),
                "wp": _dense(next(keys), (E1, cfg.moe_inter_size, D)),
            }
        else:
            lp["mlp"] = {
                "fc": _dense(next(keys), (D, cfg.intermediate_size)),
                "gate": _dense(next(keys), (D, cfg.intermediate_size)),
                "proj": _dense(next(keys), (cfg.intermediate_size, D)),
            }
        layers.append(lp)
    params["layers"] = layers
    params["ln_f"] = jnp.ones((D,), dtype)
    return params


# --------------------------------------------------------------------------
if __name__ == "__main__":
    cfg = DeepseekV2Config()
    key = jax.random.PRNGKey(0)
    params = init_params(key, cfg)

    B, S = 2, 8
    input_ids = jax.random.randint(
        jax.random.fold_in(key, 123), (B, S), 0, cfg.vocab_size, dtype=jnp.int32
    )

    fwd = jax.jit(functools.partial(deepseek_v2_model_forward, cfg=cfg))
    out = jax.block_until_ready(fwd(params, input_ids))

    assert out.shape == (B, S, cfg.hidden_size), out.shape
    assert bool(jnp.all(jnp.isfinite(out.astype(jnp.float32))))
    print("KERNEL_OK")
</pallas_src>

<mosaic_0001>
module attributes {stable_mosaic.version = 11 : i64} {
  func.func @_rmsnorm_kernel(%arg0: i32, %arg1: memref<16x128xbf16, #tpu.memory_space<vmem>>, %arg2: memref<1x128xbf16, #tpu.memory_space<vmem>>, %arg3: memref<16x128xbf16, #tpu.memory_space<vmem>>) attributes {dimension_semantics = [#tpu.dimension_semantics<parallel>], iteration_bounds = array<i64: 1>, scalar_prefetch = 0 : i64, scratch_operands = 0 : i64, tpu.core_type = #tpu.core_type<tc>, window_params = [{transform_indices = @transform_0, window_bounds = array<i64: 16, 128>}, {pipeline_mode = #tpu.pipeline_mode<synchronous>, transform_indices = @transform_1, window_bounds = array<i64: 1, 128>}, {transform_indices = @transform_2, window_bounds = array<i64: 16, 128>}]} {
    %c0 = arith.constant 0 : index
    %c0_0 = arith.constant 0 : index
    %0 = vector.load %arg1[%c0, %c0_0] : memref<16x128xbf16, #tpu.memory_space<vmem>>, vector<16x128xbf16>
    %1 = arith.extf %0 : vector<16x128xbf16> to vector<16x128xf32>
    %2 = arith.mulf %1, %1 : vector<16x128xf32>
    %cst = arith.constant dense<0.000000e+00> : vector<16xf32>
    %3 = vector.multi_reduction <add>, %2, %cst [1] : vector<16x128xf32> to vector<16xf32>
    %4 = vector.shape_cast %3 : vector<16xf32> to vector<16x1xf32>
    %cst_1 = arith.constant 1.280000e+02 : f32
    %5 = vector.broadcast %cst_1 : f32 to vector<16x1xf32>
    %6 = arith.divf %4, %5 : vector<16x1xf32>
    %cst_2 = arith.constant 9.99999997E-7 : f32
    %7 = vector.broadcast %cst_2 : f32 to vector<16x1xf32>
    %8 = arith.addf %6, %7 : vector<16x1xf32>
    %9 = math.rsqrt %8 : vector<16x1xf32>
    %10 = vector.broadcast %9 : vector<16x1xf32> to vector<16x128xf32>
    %11 = arith.mulf %1, %10 : vector<16x128xf32>
    %c0_3 = arith.constant 0 : index
    %c0_4 = arith.constant 0 : index
    %12 = vector.load %arg2[%c0_3, %c0_4] : memref<1x128xbf16, #tpu.memory_space<vmem>>, vector<1x128xbf16>
    %13 = arith.extf %12 : vector<1x128xbf16> to vector<1x128xf32>
    %14 = vector.broadcast %13 : vector<1x128xf32> to vector<16x128xf32>
    %15 = arith.mulf %11, %14 : vector<16x128xf32>
    %16 = arith.truncf %15 : vector<16x128xf32> to vector<16x128xbf16>
    %c0_5 = arith.constant 0 : index
    %c0_6 = arith.constant 0 : index
    %17 = vector.load %arg3[%c0_5, %c0_6] : memref<16x128xbf16, #tpu.memory_space<vmem>>, vector<16x128xbf16>
    tpu.vector_store %arg3[%c0_5, %c0_6], %16 {strides = array<i32>} : memref<16x128xbf16, #tpu.memory_space<vmem>>, vector<16x128xbf16>,
    return
  }
  func.func @transform_0(%arg0: i32) -> (i32, i32) {
    %c0_i32 = arith.constant 0 : i32
    %c0_i32_0 = arith.constant 0 : i32
    return %arg0, %c0_i32 : i32, i32
  }
  func.func @transform_1(%arg0: i32) -> (i32, i32) {
    %c0_i32 = arith.constant 0 : i32
    %c0_i32_0 = arith.constant 0 : i32
    %c0_i32_1 = arith.constant 0 : i32
    return %c0_i32, %c0_i32_0 : i32, i32
  }
  func.func @transform_2(%arg0: i32) -> (i32, i32) {
    %c0_i32 = arith.constant 0 : i32
    %c0_i32_0 = arith.constant 0 : i32
    return %arg0, %c0_i32 : i32, i32
  }
}

module attributes {stable_mosaic.version = 11 : i64} {
  func.func @_add_rmsnorm_kernel(%arg0: i32, %arg1: memref<16x128xbf16, #tpu.memory_space<vmem>>, %arg2: memref<16x128xbf16, #tpu.memory_space<vmem>>, %arg3: memref<1x128xbf16, #tpu.memory_space<vmem>>, %arg4: memref<16x128xbf16, #tpu.memory_space<vmem>>, %arg5: memref<16x128xbf16, #tpu.memory_space<vmem>>) attributes {dimension_semantics = [#tpu.dimension_semantics<parallel>], iteration_bounds = array<i64: 1>, scalar_prefetch = 0 : i64, scratch_operands = 0 : i64, tpu.core_type = #tpu.core_type<tc>, window_params = [{transform_indices = @transform_0, window_bounds = array<i64: 16, 128>}, {transform_indices = @transform_1, window_bounds = array<i64: 16, 128>}, {pipeline_mode = #tpu.pipeline_mode<synchronous>, transform_indices = @transform_2, window_bounds = array<i64: 1, 128>}, {transform_indices = @transform_3, window_bounds = array<i64: 16, 128>}, {transform_indices = @transform_4, window_bounds = array<i64: 16, 128>}]} {
    %c0 = arith.constant 0 : index
    %c0_0 = arith.constant 0 : index
    %0 = vector.load %arg1[%c0, %c0_0] : memref<16x128xbf16, #tpu.memory_space<vmem>>, vector<16x128xbf16>
    %1 = arith.extf %0 : vector<16x128xbf16> to vector<16x128xf32>
    %c0_1 = arith.constant 0 : index
    %c0_2 = arith.constant 0 : index
    %2 = vector.load %arg2[%c0_1, %c0_2] : memref<16x128xbf16, #tpu.memory_space<vmem>>, vector<16x128xbf16>
    %3 = arith.extf %2 : vector<16x128xbf16> to vector<16x128xf32>
    %4 = arith.addf %1, %3 : vector<16x128xf32>
    %5 = arith.truncf %4 : vector<16x128xf32> to vector<16x128xbf16>
    %c0_3 = arith.constant 0 : index
    %c0_4 = arith.constant 0 : index
    %6 = vector.load %arg4[%c0_3, %c0_4] : memref<16x128xbf16, #tpu.memory_space<vmem>>, vector<16x128xbf16>
    tpu.vector_store %arg4[%c0_3, %c0_4], %5 {strides = array<i32>} : memref<16x128xbf16, #tpu.memory_space<vmem>>, vector<16x128xbf16>,
    %7 = arith.mulf %4, %4 : vector<16x128xf32>
    %cst = arith.constant dense<0.000000e+00> : vector<16xf32>
    %8 = vector.multi_reduction <add>, %7, %cst [1] : vector<16x128xf32> to vector<16xf32>
    %9 = vector.shape_cast %8 : vector<16xf32> to vector<16x1xf32>
    %cst_5 = arith.constant 1.280000e+02 : f32
    %10 = vector.broadcast %cst_5 : f32 to vector<16x1xf32>
    %11 = arith.divf %9, %10 : vector<16x1xf32>
    %cst_6 = arith.constant 9.99999997E-7 : f32
    %12 = vector.broadcast %cst_6 : f32 to vector<16x1xf32>
    %13 = arith.addf %11, %12 : vector<16x1xf32>
    %14 = math.rsqrt %13 : vector<16x1xf32>
    %15 = vector.broadcast %14 : vector<16x1xf32> to vector<16x128xf32>
    %16 = arith.mulf %4, %15 : vector<16x128xf32>
    %c0_7 = arith.constant 0 : index
    %c0_8 = arith.constant 0 : index
    %17 = vector.load %arg3[%c0_7, %c0_8] : memref<1x128xbf16, #tpu.memory_space<vmem>>, vector<1x128xbf16>
    %18 = arith.extf %17 : vector<1x128xbf16> to vector<1x128xf32>
    %19 = vector.broadcast %18 : vector<1x128xf32> to vector<16x128xf32>
    %20 = arith.mulf %16, %19 : vector<16x128xf32>
    %21 = arith.truncf %20 : vector<16x128xf32> to vector<16x128xbf16>
    %c0_9 = arith.constant 0 : index
    %c0_10 = arith.constant 0 : index
    %22 = vector.load %arg5[%c0_9, %c0_10] : memref<16x128xbf16, #tpu.memory_space<vmem>>, vector<16x128xbf16>
    tpu.vector_store %arg5[%c0_9, %c0_10], %21 {strides = array<i32>} : memref<16x128xbf16, #tpu.memory_space<vmem>>, vector<16x128xbf16>,
    return
  }
  func.func @transform_0(%arg0: i32) -> (i32, i32) {
    %c0_i32 = arith.constant 0 : i32
    %c0_i32_0 = arith.constant 0 : i32
    return %arg0, %c0_i32 : i32, i32
  }
  func.func @transform_1(%arg0: i32) -> (i32, i32) {
    %c0_i32 = arith.constant 0 : i32
    %c0_i32_0 = arith.constant 0 : i32
    return %arg0, %c0_i32 : i32, i32
  }
  func.func @transform_2(%arg0: i32) -> (i32, i32) {
    %c0_i32 = arith.constant 0 : i32
    %c0_i32_0 = arith.constant 0 : i32
    %c0_i32_1 = arith.constant 0 : i32
    return %c0_i32, %c0_i32_0 : i32, i32
  }
  func.func @transform_3(%arg0: i32) -> (i32, i32) {
    %c0_i32 = arith.constant 0 : i32
    %c0_i32_0 = arith.constant 0 : i32
    return %arg0, %c0_i32 : i32, i32
  }
  func.func @transform_4(%arg0: i32) -> (i32, i32) {
    %c0_i32 = arith.constant 0 : i32
    %c0_i32_0 = arith.constant 0 : i32
    return %arg0, %c0_i32 : i32, i32
  }
}

module attributes {stable_mosaic.version = 11 : i64} {
  func.func @_mla_a_proj_kernel(%arg0: i32, %arg1: memref<16x128xbf16, #tpu.memory_space<vmem>>, %arg2: memref<128x32xbf16, #tpu.memory_space<vmem>>, %arg3: memref<128x32xbf16, #tpu.memory_space<vmem>>, %arg4: memref<128x16xbf16, #tpu.memory_space<vmem>>, %arg5: memref<1x32xbf16, #tpu.memory_space<vmem>>, %arg6: memref<1x32xbf16, #tpu.memory_space<vmem>>, %arg7: memref<16x16xf32, #tpu.memory_space<vmem>>, %arg8: memref<16x16xf32, #tpu.memory_space<vmem>>, %arg9: memref<16x16xbf16, #tpu.memory_space<vmem>>, %arg10: memref<16x32xbf16, #tpu.memory_space<vmem>>, %arg11: memref<16x32xbf16, #tpu.memory_space<vmem>>, %arg12: memref<16x16xbf16, #tpu.memory_space<vmem>>) attributes {dimension_semantics = [#tpu.dimension_semantics<parallel>], iteration_bounds = array<i64: 1>, scalar_prefetch = 0 : i64, scratch_operands = 0 : i64, tpu.core_type = #tpu.core_type<tc>, window_params = [{transform_indices = @transform_0, window_bounds = array<i64: 16, 128>}, {pipeline_mode = #tpu.pipeline_mode<synchronous>, transform_indices = @transform_1, window_bounds = array<i64: 128, 32>}, {pipeline_mode = #tpu.pipeline_mode<synchronous>, transform_indices = @transform_2, window_bounds = array<i64: 128, 32>}, {pipeline_mode = #tpu.pipeline_mode<synchronous>, transform_indices = @transform_3, window_bounds = array<i64: 128, 16>}, {pipeline_mode = #tpu.pipeline_mode<synchronous>, transform_indices = @transform_4, window_bounds = array<i64: 1, 32>}, {pipeline_mode = #tpu.pipeline_mode<synchronous>, transform_indices = @transform_5, window_bounds = array<i64: 1, 32>}, {transform_indices = @transform_6, window_bounds = array<i64: 16, 16>}, {transform_indices = @transform_7, window_bounds = array<i64: 16, 16>}, {pipeline_mode = #tpu.pipeline_mode<synchronous>, transform_indices = @transform_8, window_bounds = array<i64: 16, 16>}, {transform_indices = @transform_9, window_bounds = array<i64: 16, 32>}, {transform_indices = @transform_10, window_bounds = array<i64: 16, 32>}, {transform_indices = @transform_11, window_bounds = array<i64: 16, 16>}]} {
    %c0 = arith.constant 0 : index
    %c0_0 = arith.constant 0 : index
    %0 = vector.load %arg1[%c0, %c0_0] : memref<16x128xbf16, #tpu.memory_space<vmem>>, vector<16x128xbf16>
    %c0_1 = arith.constant 0 : index
    %c0_2 = arith.constant 0 : index
    %1 = vector.load %arg2[%c0_1, %c0_2] : memref<128x32xbf16, #tpu.memory_space<vmem>>, vector<128x32xbf16>
    %cst = arith.constant dense<0.000000e+00> : vector<16x32xf32>
    %2 = tpu.matmul %0, %1, %cst {dimension_numbers = #tpu.dot_dimension_numbers<[1], [0], [0], [1], [0, 0, 1, 1], [], []>} : vector<16x128xbf16>, vector<128x32xbf16>, vector<16x32xf32> -> vector<16x32xf32>
    %c0_3 = arith.constant 0 : index
    %c0_4 = arith.constant 0 : index
    %3 = vector.load %arg3[%c0_3, %c0_4] : memref<128x32xbf16, #tpu.memory_space<vmem>>, vector<128x32xbf16>
    %cst_5 = arith.constant dense<0.000000e+00> : vector<16x32xf32>
    %4 = tpu.matmul %0, %3, %cst_5 {dimension_numbers = #tpu.dot_dimension_numbers<[1], [0], [0], [1], [0, 0, 1, 1], [], []>} : vector<16x128xbf16>, vector<128x32xbf16>, vector<16x32xf32> -> vector<16x32xf32>
    %c0_6 = arith.constant 0 : index
    %c0_7 = arith.constant 0 : index
    %5 = vector.load %arg4[%c0_6, %c0_7] : memref<128x16xbf16, #tpu.memory_space<vmem>>, vector<128x16xbf16>
    %cst_8 = arith.constant dense<0.000000e+00> : vector<16x16xf32>
    %6 = tpu.matmul %0, %5, %cst_8 {dimension_numbers = #tpu.dot_dimension_numbers<[1], [0], [0], [1], [0, 0, 1, 1], [], []>} : vector<16x128xbf16>, vector<128x16xbf16>, vector<16x16xf32> -> vector<16x16xf32>
    %c0_9 = arith.constant 0 : index
    %c0_10 = arith.constant 0 : index
    %7 = vector.load %arg5[%c0_9, %c0_10] : memref<1x32xbf16, #tpu.memory_space<vmem>>, vector<1x32xbf16>
    %8 = arith.mulf %2, %2 : vector<16x32xf32>
    %cst_11 = arith.constant dense<0.000000e+00> : vector<16xf32>
    %9 = vector.multi_reduction <add>, %8, %cst_11 [1] : vector<16x32xf32> to vector<16xf32>
    %10 = vector.shape_cast %9 : vector<16xf32> to vector<16x1xf32>
    %cst_12 = arith.constant 3.200000e+01 : f32
    %11 = vector.broadcast %cst_12 : f32 to vector<16x1xf32>
    %12 = arith.divf %10, %11 : vector<16x1xf32>
    %cst_13 = arith.constant 9.99999997E-7 : f32
    %13 = vector.broadcast %cst_13 : f32 to vector<16x1xf32>
    %14 = arith.addf %12, %13 : vector<16x1xf32>
    %15 = math.rsqrt %14 : vector<16x1xf32>
    %16 = vector.broadcast %15 : vector<16x1xf32> to vector<16x32xf32>
    %17 = arith.mulf %2, %16 : vector<16x32xf32>
    %18 = arith.extf %7 : vector<1x32xbf16> to vector<1x32xf32>
    %19 = vector.broadcast %18 : vector<1x32xf32> to vector<16x32xf32>
    %20 = arith.mulf %17, %19 : vector<16x32xf32>
    %c0_14 = arith.constant 0 : index
    %c0_15 = arith.constant 0 : index
    %21 = vector.load %arg6[%c0_14, %c0_15] : memref<1x32xbf16, #tpu.memory_space<vmem>>, vector<1x32xbf16>
    %22 = arith.mulf %4, %4 : vector<16x32xf32>
    %cst_16 = arith.constant dense<0.000000e+00> : vector<16xf32>
    %23 = vector.multi_reduction <add>, %22, %cst_16 [1] : vector<16x32xf32> to vector<16xf32>
    %24 = vector.shape_cast %23 : vector<16xf32> to vector<16x1xf32>
    %cst_17 = arith.constant 3.200000e+01 : f32
    %25 = vector.broadcast %cst_17 : f32 to vector<16x1xf32>
    %26 = arith.divf %24, %25 : vector<16x1xf32>
    %cst_18 = arith.constant 9.99999997E-7 : f32
    %27 = vector.broadcast %cst_18 : f32 to vector<16x1xf32>
    %28 = arith.addf %26, %27 : vector<16x1xf32>
    %29 = math.rsqrt %28 : vector<16x1xf32>
    %30 = vector.broadcast %29 : vector<16x1xf32> to vector<16x32xf32>
    %31 = arith.mulf %4, %30 : vector<16x32xf32>
    %32 = arith.extf %21 : vector<1x32xbf16> to vector<1x32xf32>
    %33 = vector.broadcast %32 : vector<1x32xf32> to vector<16x32xf32>
    %34 = arith.mulf %31, %33 : vector<16x32xf32>
    %35 = arith.truncf %6 : vector<16x16xf32> to vector<16x16xbf16>
    %c0_19 = arith.constant 0 : index
    %c0_20 = arith.constant 0 : index
    %36 = vector.load %arg9[%c0_19, %c0_20] : memref<16x16xbf16, #tpu.memory_space<vmem>>, vector<16x16xbf16>
    %cst_21 = arith.constant dense<0.000000e+00> : vector<16x16xf32>
    %37 = tpu.matmul %35, %36, %cst_21 {dimension_numbers = #tpu.dot_dimension_numbers<[1], [0], [0], [1], [0, 0, 1, 1], [], []>} : vector<16x16xbf16>, vector<16x16xbf16>, vector<16x16xf32> -> vector<16x16xf32>
    %c0_22 = arith.constant 0 : index
    %c0_23 = arith.constant 0 : index
    %38 = vector.load %arg7[%c0_22, %c0_23] : memref<16x16xf32, #tpu.memory_space<vmem>>, vector<16x16xf32>
    %39 = arith.mulf %6, %38 : vector<16x16xf32>
    %c0_24 = arith.constant 0 : index
    %c0_25 = arith.constant 0 : index
    %40 = vector.load %arg8[%c0_24, %c0_25] : memref<16x16xf32, #tpu.memory_space<vmem>>, vector<16x16xf32>
    %41 = arith.mulf %37, %40 : vector<16x16xf32>
    %42 = arith.addf %39, %41 : vector<16x16xf32>
    %43 = arith.truncf %20 : vector<16x32xf32> to vector<16x32xbf16>
    %c0_26 = arith.constant 0 : index
    %c0_27 = arith.constant 0 : index
    %44 = vector.load %arg10[%c0_26, %c0_27] : memref<16x32xbf16, #tpu.memory_space<vmem>>, vector<16x32xbf16>
    tpu.vector_store %arg10[%c0_26, %c0_27], %43 {strides = array<i32>} : memref<16x32xbf16, #tpu.memory_space<vmem>>, vector<16x32xbf16>,
    %45 = arith.truncf %34 : vector<16x32xf32> to vector<16x32xbf16>
    %c0_28 = arith.constant 0 : index
    %c0_29 = arith.constant 0 : index
    %46 = vector.load %arg11[%c0_28, %c0_29] : memref<16x32xbf16, #tpu.memory_space<vmem>>, vector<16x32xbf16>
    tpu.vector_store %arg11[%c0_28, %c0_29], %45 {strides = array<i32>} : memref<16x32xbf16, #tpu.memory_space<vmem>>, vector<16x32xbf16>,
    %47 = arith.truncf %42 : vector<16x16xf32> to vector<16x16xbf16>
    %c0_30 = arith.constant 0 : index
    %c0_31 = arith.constant 0 : index
    %48 = vector.load %arg12[%c0_30, %c0_31] : memref<16x16xbf16, #tpu.memory_space<vmem>>, vector<16x16xbf16>
    tpu.vector_store %arg12[%c0_30, %c0_31], %47 {strides = array<i32>} : memref<16x16xbf16, #tpu.memory_space<vmem>>, vector<16x16xbf16>,
    return
  }
  func.func @transform_0(%arg0: i32) -> (i32, i32) {
    %c0_i32 = arith.constant 0 : i32
    %c0_i32_0 = arith.constant 0 : i32
    return %arg0, %c0_i32 : i32, i32
  }
  func.func @transform_1(%arg0: i32) -> (i32, i32) {
    %c0_i32 = arith.constant 0 : i32
    %c0_i32_0 = arith.constant 0 : i32
    %c0_i32_1 = arith.constant 0 : i32
    return %c0_i32, %c0_i32_0 : i32, i32
  }
  func.func @transform_2(%arg0: i32) -> (i32, i32) {
    %c0_i32 = arith.constant 0 : i32
    %c0_i32_0 = arith.constant 0 : i32
    %c0_i32_1 = arith.constant 0 : i32
    return %c0_i32, %c0_i32_0 : i32, i32
  }
  func.func @transform_3(%arg0: i32) -> (i32, i32) {
    %c0_i32 = arith.constant 0 : i32
    %c0_i32_0 = arith.constant 0 : i32
    %c0_i32_1 = arith.constant 0 : i32
    return %c0_i32, %c0_i32_0 : i32, i32
  }
  func.func @transform_4(%arg0: i32) -> (i32, i32) {
    %c0_i32 = arith.constant 0 : i32
    %c0_i32_0 = arith.constant 0 : i32
    %c0_i32_1 = arith.constant 0 : i32
    return %c0_i32, %c0_i32_0 : i32, i32
  }
  func.func @transform_5(%arg0: i32) -> (i32, i32) {
    %c0_i32 = arith.constant 0 : i32
    %c0_i32_0 = arith.constant 0 : i32
    %c0_i32_1 = arith.constant 0 : i32
    return %c0_i32, %c0_i32_0 : i32, i32
  }
  func.func @transform_6(%arg0: i32) -> (i32, i32) {
    %c0_i32 = arith.constant 0 : i32
    %c0_i32_0 = arith.constant 0 : i32
    return %arg0, %c0_i32 : i32, i32
  }
  func.func @transform_7(%arg0: i32) -> (i32, i32) {
    %c0_i32 = arith.constant 0 : i32
    %c0_i32_0 = arith.constant 0 : i32
    return %arg0, %c0_i32 : i32, i32
  }
  func.func @transform_8(%arg0: i32) -> (i32, i32) {
    %c0_i32 = arith.constant 0 : i32
    %c0_i32_0 = arith.constant 0 : i32
    %c0_i32_1 = arith.constant 0 : i32
    return %c0_i32, %c0_i32_0 : i32, i32
  }
  func.func @transform_9(%arg0: i32) -> (i32, i32) {
    %c0_i32 = arith.constant 0 : i32
    %c0_i32_0 = arith.constant 0 : i32
    return %arg0, %c0_i32 : i32, i32
  }
  func.func @transform_10(%arg0: i32) -> (i32, i32) {
    %c0_i32 = arith.constant 0 : i32
    %c0_i32_0 = arith.constant 0 : i32
    return %arg0, %c0_i32 : i32, i32
  }
  func.func @transform_11(%arg0: i32) -> (i32, i32) {
    %c0_i32 = arith.constant 0 : i32
    %c0_i32_0 = arith.constant 0 : i32
    return %arg0, %c0_i32 : i32, i32
  }
}

module attributes {stable_mosaic.version = 11 : i64} {
  func.func @_mla_attn_core_kernel(%arg0: i32, %arg1: i32, %arg2: memref<1x8x32xbf16, #tpu.memory_space<vmem>>, %arg3: memref<1x8x32xbf16, #tpu.memory_space<vmem>>, %arg4: memref<1x8x16xbf16, #tpu.memory_space<vmem>>, %arg5: memref<8x16xf32, #tpu.memory_space<vmem>>, %arg6: memref<8x16xf32, #tpu.memory_space<vmem>>, %arg7: memref<16x16xbf16, #tpu.memory_space<vmem>>, %arg8: memref<1x32x32xbf16, #tpu.memory_space<vmem>>, %arg9: memref<1x32x16xbf16, #tpu.memory_space<vmem>>, %arg10: memref<1x32x32xbf16, #tpu.memory_space<vmem>>, %arg11: memref<1x32x32xbf16, #tpu.memory_space<vmem>>, %arg12: memref<1x32x128xbf16, #tpu.memory_space<vmem>>, %arg13: memref<1x8x128xbf16, #tpu.memory_space<vmem>>, %arg14: memref<8x128xf32, #tpu.memory_space<vmem>>) attributes {dimension_semantics = [#tpu.dimension_semantics<parallel>, #tpu.dimension_semantics<arbitrary>], iteration_bounds = array<i64: 2, 2>, scalar_prefetch = 0 : i64, scratch_operands = 1 : i64, tpu.core_type = #tpu.core_type<tc>, window_params = [{transform_indices = @transform_0, window_bounds = array<i64: 1, 8, 32>}, {transform_indices = @transform_1, window_bounds = array<i64: 1, 8, 32>}, {transform_indices = @transform_2, window_bounds = array<i64: 1, 8, 16>}, {pipeline_mode = #tpu.pipeline_mode<synchronous>, transform_indices = @transform_3, window_bounds = array<i64: 8, 16>}, {pipeline_mode = #tpu.pipeline_mode<synchronous>, transform_indices = @transform_4, window_bounds = array<i64: 8, 16>}, {pipeline_mode = #tpu.pipeline_mode<synchronous>, transform_indices = @transform_5, window_bounds = array<i64: 16, 16>}, {transform_indices = @transform_6, window_bounds = array<i64: 1, 32, 32>}, {transform_indices = @transform_7, window_bounds = array<i64: 1, 32, 16>}, {transform_indices = @transform_8, window_bounds = array<i64: 1, 32, 32>}, {transform_indices = @transform_9, window_bounds = array<i64: 1, 32, 32>}, {transform_indices = @transform_10, window_bounds = array<i64: 1, 32, 128>}, {transform_indices = @transform_11, window_bounds = array<i64: 1, 8, 128>}]} {
    %c0_i32 = arith.constant 0 : i32
    %0 = arith.cmpi eq, %arg1, %c0_i32 : i32
    %1 = arith.extui %0 : i1 to i32
    %c0_i32_0 = arith.constant 0 : i32
    %2 = arith.cmpi ne, %1, %c0_i32_0 : i32
    scf.if %2 {
      %cst_47 = arith.constant 0.000000e+00 : f32
      %65 = vector.broadcast %cst_47 : f32 to vector<8x128xf32>
      %c0_48 = arith.constant 0 : index
      %c0_49 = arith.constant 0 : index
      %66 = vector.load %arg14[%c0_48, %c0_49] : memref<8x128xf32, #tpu.memory_space<vmem>>, vector<8x128xf32>
      tpu.vector_store %arg14[%c0_48, %c0_49], %65 {strides = array<i32>} : memref<8x128xf32, #tpu.memory_space<vmem>>, vector<8x128xf32>,
    } else {
    }
    %c0 = arith.constant 0 : index
    %c0_1 = arith.constant 0 : index
    %c0_2 = arith.constant 0 : index
    %3 = vector.load %arg2[%c0, %c0_1, %c0_2] : memref<1x8x32xbf16, #tpu.memory_space<vmem>>, vector<1x8x32xbf16>
    %4 = vector.shape_cast %3 : vector<1x8x32xbf16> to vector<8x32xbf16>
    %c0_3 = arith.constant 0 : index
    %c0_4 = arith.constant 0 : index
    %c0_5 = arith.constant 0 : index
    %5 = vector.load %arg3[%c0_3, %c0_4, %c0_5] : memref<1x8x32xbf16, #tpu.memory_space<vmem>>, vector<1x8x32xbf16>
    %6 = vector.shape_cast %5 : vector<1x8x32xbf16> to vector<8x32xbf16>
    %c0_6 = arith.constant 0 : index
    %c0_7 = arith.constant 0 : index
    %c0_8 = arith.constant 0 : index
    %7 = vector.load %arg4[%c0_6, %c0_7, %c0_8] : memref<1x8x16xbf16, #tpu.memory_space<vmem>>, vector<1x8x16xbf16>
    %8 = vector.shape_cast %7 : vector<1x8x16xbf16> to vector<8x16xbf16>
    %c0_9 = arith.constant 0 : index
    %c0_10 = arith.constant 0 : index
    %c0_11 = arith.constant 0 : index
    %9 = vector.load %arg8[%c0_9, %c0_10, %c0_11] : memref<1x32x32xbf16, #tpu.memory_space<vmem>>, vector<1x32x32xbf16>
    %10 = vector.shape_cast %9 : vector<1x32x32xbf16> to vector<32x32xbf16>
    %cst = arith.constant dense<0.000000e+00> : vector<8x32xf32>
    %11 = tpu.matmul %4, %10, %cst {dimension_numbers = #tpu.dot_dimension_numbers<[1], [0], [0], [1], [0, 0, 1, 1], [], []>} : vector<8x32xbf16>, vector<32x32xbf16>, vector<8x32xf32> -> vector<8x32xf32>
    %c0_12 = arith.constant 0 : index
    %c0_13 = arith.constant 0 : index
    %c0_14 = arith.constant 0 : index
    %12 = vector.load %arg9[%c0_12, %c0_13, %c0_14] : memref<1x32x16xbf16, #tpu.memory_space<vmem>>, vector<1x32x16xbf16>
    %13 = vector.shape_cast %12 : vector<1x32x16xbf16> to vector<32x16xbf16>
    %cst_15 = arith.constant dense<0.000000e+00> : vector<8x16xf32>
    %14 = tpu.matmul %4, %13, %cst_15 {dimension_numbers = #tpu.dot_dimension_numbers<[1], [0], [0], [1], [0, 0, 1, 1], [], []>} : vector<8x32xbf16>, vector<32x16xbf16>, vector<8x16xf32> -> vector<8x16xf32>
    %15 = arith.truncf %14 : vector<8x16xf32> to vector<8x16xbf16>
    %c0_16 = arith.constant 0 : index
    %c0_17 = arith.constant 0 : index
    %16 = vector.load %arg7[%c0_16, %c0_17] : memref<16x16xbf16, #tpu.memory_space<vmem>>, vector<16x16xbf16>
    %cst_18 = arith.constant dense<0.000000e+00> : vector<8x16xf32>
    %17 = tpu.matmul %15, %16, %cst_18 {dimension_numbers = #tpu.dot_dimension_numbers<[1], [0], [0], [1], [0, 0, 1, 1], [], []>} : vector<8x16xbf16>, vector<16x16xbf16>, vector<8x16xf32> -> vector<8x16xf32>
    %c0_19 = arith.constant 0 : index
    %c0_20 = arith.constant 0 : index
    %18 = vector.load %arg5[%c0_19, %c0_20] : memref<8x16xf32, #tpu.memory_space<vmem>>, vector<8x16xf32>
    %19 = arith.mulf %14, %18 : vector<8x16xf32>
    %c0_21 = arith.constant 0 : index
    %c0_22 = arith.constant 0 : index
    %20 = vector.load %arg6[%c0_21, %c0_22] : memref<8x16xf32, #tpu.memory_space<vmem>>, vector<8x16xf32>
    %21 = arith.mulf %17, %20 : vector<8x16xf32>
    %22 = arith.addf %19, %21 : vector<8x16xf32>
    %c0_23 = arith.constant 0 : index
    %c0_24 = arith.constant 0 : index
    %c0_25 = arith.constant 0 : index
    %23 = vector.load %arg10[%c0_23, %c0_24, %c0_25] : memref<1x32x32xbf16, #tpu.memory_space<vmem>>, vector<1x32x32xbf16>
    %24 = vector.shape_cast %23 : vector<1x32x32xbf16> to vector<32x32xbf16>
    %cst_26 = arith.constant dense<0.000000e+00> : vector<8x32xf32>
    %25 = tpu.matmul %6, %24, %cst_26 {dimension_numbers = #tpu.dot_dimension_numbers<[1], [0], [0], [1], [0, 0, 1, 1], [], []>} : vector<8x32xbf16>, vector<32x32xbf16>, vector<8x32xf32> -> vector<8x32xf32>
    %c0_27 = arith.constant 0 : index
    %c0_28 = arith.constant 0 : index
    %c0_29 = arith.constant 0 : index
    %26 = vector.load %arg11[%c0_27, %c0_28, %c0_29] : memref<1x32x32xbf16, #tpu.memory_space<vmem>>, vector<1x32x32xbf16>
    %27 = vector.shape_cast %26 : vector<1x32x32xbf16> to vector<32x32xbf16>
    %cst_30 = arith.constant dense<0.000000e+00> : vector<8x32xf32>
    %28 = tpu.matmul %6, %27, %cst_30 {dimension_numbers = #tpu.dot_dimension_numbers<[1], [0], [0], [1], [0, 0, 1, 1], [], []>} : vector<8x32xbf16>, vector<32x32xbf16>, vector<8x32xf32> -> vector<8x32xf32>
    %29 = arith.truncf %11 : vector<8x32xf32> to vector<8x32xbf16>
    %30 = arith.truncf %25 : vector<8x32xf32> to vector<8x32xbf16>
    %cst_31 = arith.constant dense<0.000000e+00> : vector<8x8xf32>
    %31 = tpu.matmul %29, %30, %cst_31 {dimension_numbers = #tpu.dot_dimension_numbers<[1], [1], [0], [0], [0, 0, 1, 0], [], []>} : vector<8x32xbf16>, vector<8x32xbf16>, vector<8x8xf32> -> vector<8x8xf32>
    %32 = arith.truncf %22 : vector<8x16xf32> to vector<8x16xbf16>
    %cst_32 = arith.constant dense<0.000000e+00> : vector<8x8xf32>
    %33 = tpu.matmul %32, %8, %cst_32 {dimension_numbers = #tpu.dot_dimension_numbers<[1], [1], [0], [0], [0, 0, 1, 0], [], []>} : vector<8x16xbf16>, vector<8x16xbf16>, vector<8x8xf32> -> vector<8x8xf32>
    %34 = arith.addf %31, %33 : vector<8x8xf32>
    %cst_33 = arith.constant 0.144337565 : f32
    %35 = vector.broadcast %cst_33 : f32 to vector<8x8xf32>
    %36 = arith.mulf %34, %35 : vector<8x8xf32>
    %37 = tpu.iota {dimensions = array<i32: 0>} : vector<8x8xi32>
    %38 = tpu.iota {dimensions = array<i32: 1>} : vector<8x8xi32>
    %39 = arith.cmpi sle, %38, %37 : vector<8x8xi32>
    %cst_34 = arith.constant -1.000000e+30 : f32
    %40 = vector.broadcast %cst_34 : f32 to vector<8x8xf32>
    %41 = arith.select %39, %36, %40 : vector<8x8xi1>, vector<8x8xf32>
    %cst_35 = arith.constant dense<0xFF800000> : vector<8xf32>
    %42 = vector.multi_reduction <maximumf>, %41, %cst_35 [1] : vector<8x8xf32> to vector<8xf32>
    %43 = vector.shape_cast %42 : vector<8xf32> to vector<8x1xf32>
    %44 = vector.broadcast %43 : vector<8x1xf32> to vector<8x8xf32>
    %45 = arith.subf %41, %44 : vector<8x8xf32>
    %46 = math.exp %45 : vector<8x8xf32>
    %cst_36 = arith.constant dense<0.000000e+00> : vector<8xf32>
    %47 = vector.multi_reduction <add>, %46, %cst_36 [1] : vector<8x8xf32> to vector<8xf32>
    %48 = vector.shape_cast %47 : vector<8xf32> to vector<8x1xf32>
    %49 = tpu.reciprocal %48 {approx = true} : vector<8x1xf32> -> vector<8x1xf32>
    %50 = vector.broadcast %49 : vector<8x1xf32> to vector<8x8xf32>
    %51 = arith.mulf %46, %50 : vector<8x8xf32>
    %52 = arith.truncf %51 : vector<8x8xf32> to vector<8x8xbf16>
    %53 = arith.truncf %28 : vector<8x32xf32> to vector<8x32xbf16>
    %cst_37 = arith.constant dense<0.000000e+00> : vector<8x32xf32>
    %54 = tpu.matmul %52, %53, %cst_37 {dimension_numbers = #tpu.dot_dimension_numbers<[1], [0], [0], [1], [0, 0, 1, 1], [], []>} : vector<8x8xbf16>, vector<8x32xbf16>, vector<8x32xf32> -> vector<8x32xf32>
    %c0_38 = arith.constant 0 : index
    %c0_39 = arith.constant 0 : index
    %55 = vector.load %arg14[%c0_38, %c0_39] : memref<8x128xf32, #tpu.memory_space<vmem>>, vector<8x128xf32>
    %56 = arith.truncf %54 : vector<8x32xf32> to vector<8x32xbf16>
    %c0_40 = arith.constant 0 : index
    %c0_41 = arith.constant 0 : index
    %c0_42 = arith.constant 0 : index
    %57 = vector.load %arg12[%c0_40, %c0_41, %c0_42] : memref<1x32x128xbf16, #tpu.memory_space<vmem>>, vector<1x32x128xbf16>
    %58 = vector.shape_cast %57 : vector<1x32x128xbf16> to vector<32x128xbf16>
    %cst_43 = arith.constant dense<0.000000e+00> : vector<8x128xf32>
    %59 = tpu.matmul %56, %58, %cst_43 {dimension_numbers = #tpu.dot_dimension_numbers<[1], [0], [0], [1], [0, 0, 1, 1], [], []>} : vector<8x32xbf16>, vector<32x128xbf16>, vector<8x128xf32> -> vector<8x128xf32>
    %60 = arith.addf %55, %59 : vector<8x128xf32>
    %c0_44 = arith.constant 0 : index
    %c0_45 = arith.constant 0 : index
    %61 = vector.load %arg14[%c0_44, %c0_45] : memref<8x128xf32, #tpu.memory_space<vmem>>, vector<8x128xf32>
    tpu.vector_store %arg14[%c0_44, %c0_45], %60 {strides = array<i32>} : memref<8x128xf32, #tpu.memory_space<vmem>>, vector<8x128xf32>,
    %c1_i32 = arith.constant 1 : i32
    %62 = arith.cmpi eq, %arg1, %c1_i32 : i32
    %63 = arith.extui %62 : i1 to i32
    %c0_i32_46 = arith.constant 0 : i32
    %64 = arith.cmpi ne, %63, %c0_i32_46 : i32
    scf.if %64 {
      %c0_47 = arith.constant 0 : index
      %c0_48 = arith.constant 0 : index
      %65 = vector.load %arg14[%c0_47, %c0_48] : memref<8x128xf32, #tpu.memory_space<vmem>>, vector<8x128xf32>
      %66 = arith.truncf %65 : vector<8x128xf32> to vector<8x128xbf16>
      %c0_49 = arith.constant 0 : index
      %c0_50 = arith.constant 0 : index
      %c0_51 = arith.constant 0 : index
      %67 = vector.load %arg13[%c0_49, %c0_50, %c0_51] : memref<1x8x128xbf16, #tpu.memory_space<vmem>>, vector<1x8x128xbf16>
      %68 = vector.shape_cast %67 : vector<1x8x128xbf16> to vector<8x128xbf16>
      %69 = vector.shape_cast %66 : vector<8x128xbf16> to vector<1x8x128xbf16>
      tpu.vector_store %arg13[%c0_49, %c0_50, %c0_51], %69 {strides = array<i32>} : memref<1x8x128xbf16, #tpu.memory_space<vmem>>, vector<1x8x128xbf16>,
    } else {
    }
    return
  }
  func.func @transform_0(%arg0: i32, %arg1: i32) -> (i32, i32, i32) {
    %c0_i32 = arith.constant 0 : i32
    %c0_i32_0 = arith.constant 0 : i32
    %c0_i32_1 = arith.constant 0 : i32
    return %arg0, %c0_i32, %c0_i32_0 : i32, i32, i32
  }
  func.func @transform_1(%arg0: i32, %arg1: i32) -> (i32, i32, i32) {
    %c0_i32 = arith.constant 0 : i32
    %c0_i32_0 = arith.constant 0 : i32
    %c0_i32_1 = arith.constant 0 : i32
    return %arg0, %c0_i32, %c0_i32_0 : i32, i32, i32
  }
  func.func @transform_2(%arg0: i32, %arg1: i32) -> (i32, i32, i32) {
    %c0_i32 = arith.constant 0 : i32
    %c0_i32_0 = arith.constant 0 : i32
    %c0_i32_1 = arith.constant 0 : i32
    return %arg0, %c0_i32, %c0_i32_0 : i32, i32, i32
  }
  func.func @transform_3(%arg0: i32, %arg1: i32) -> (i32, i32) {
    %c0_i32 = arith.constant 0 : i32
    %c0_i32_0 = arith.constant 0 : i32
    %c0_i32_1 = arith.constant 0 : i32
    return %c0_i32, %c0_i32_0 : i32, i32
  }
  func.func @transform_4(%arg0: i32, %arg1: i32) -> (i32, i32) {
    %c0_i32 = arith.constant 0 : i32
    %c0_i32_0 = arith.constant 0 : i32
    %c0_i32_1 = arith.constant 0 : i32
    return %c0_i32, %c0_i32_0 : i32, i32
  }
  func.func @transform_5(%arg0: i32, %arg1: i32) -> (i32, i32) {
    %c0_i32 = arith.constant 0 : i32
    %c0_i32_0 = arith.constant 0 : i32
    %c0_i32_1 = arith.constant 0 : i32
    return %c0_i32, %c0_i32_0 : i32, i32
  }
  func.func @transform_6(%arg0: i32, %arg1: i32) -> (i32, i32, i32) {
    %c0_i32 = arith.constant 0 : i32
    %c0_i32_0 = arith.constant 0 : i32
    %c0_i32_1 = arith.constant 0 : i32
    return %arg1, %c0_i32, %c0_i32_0 : i32, i32, i32
  }
  func.func @transform_7(%arg0: i32, %arg1: i32) -> (i32, i32, i32) {
    %c0_i32 = arith.constant 0 : i32
    %c0_i32_0 = arith.constant 0 : i32
    %c0_i32_1 = arith.constant 0 : i32
    return %arg1, %c0_i32, %c0_i32_0 : i32, i32, i32
  }
  func.func @transform_8(%arg0: i32, %arg1: i32) -> (i32, i32, i32) {
    %c0_i32 = arith.constant 0 : i32
    %c0_i32_0 = arith.constant 0 : i32
    %c0_i32_1 = arith.constant 0 : i32
    return %arg1, %c0_i32, %c0_i32_0 : i32, i32, i32
  }
  func.func @transform_9(%arg0: i32, %arg1: i32) -> (i32, i32, i32) {
    %c0_i32 = arith.constant 0 : i32
    %c0_i32_0 = arith.constant 0 : i32
    %c0_i32_1 = arith.constant 0 : i32
    return %arg1, %c0_i32, %c0_i32_0 : i32, i32, i32
  }
  func.func @transform_10(%arg0: i32, %arg1: i32) -> (i32, i32, i32) {
    %c0_i32 = arith.constant 0 : i32
    %c0_i32_0 = arith.constant 0 : i32
    %c0_i32_1 = arith.constant 0 : i32
    return %arg1, %c0_i32, %c0_i32_0 : i32, i32, i32
  }
  func.func @transform_11(%arg0: i32, %arg1: i32) -> (i32, i32, i32) {
    %c0_i32 = arith.constant 0 : i32
    %c0_i32_0 = arith.constant 0 : i32
    %c0_i32_1 = arith.constant 0 : i32
    return %arg0, %c0_i32, %c0_i32_0 : i32, i32, i32
  }
}

module attributes {stable_mosaic.version = 11 : i64} {
  func.func @_gated_mlp_kernel(%arg0: i32, %arg1: memref<16x128xbf16, #tpu.memory_space<vmem>>, %arg2: memref<128x64xbf16, #tpu.memory_space<vmem>>, %arg3: memref<128x64xbf16, #tpu.memory_space<vmem>>, %arg4: memref<64x128xbf16, #tpu.memory_space<vmem>>, %arg5: memref<16x128xbf16, #tpu.memory_space<vmem>>) attributes {dimension_semantics = [#tpu.dimension_semantics<parallel>], iteration_bounds = array<i64: 1>, scalar_prefetch = 0 : i64, scratch_operands = 0 : i64, tpu.core_type = #tpu.core_type<tc>, window_params = [{transform_indices = @transform_0, window_bounds = array<i64: 16, 128>}, {pipeline_mode = #tpu.pipeline_mode<synchronous>, transform_indices = @transform_1, window_bounds = array<i64: 128, 64>}, {pipeline_mode = #tpu.pipeline_mode<synchronous>, transform_indices = @transform_2, window_bounds = array<i64: 128, 64>}, {pipeline_mode = #tpu.pipeline_mode<synchronous>, transform_indices = @transform_3, window_bounds = array<i64: 64, 128>}, {transform_indices = @transform_4, window_bounds = array<i64: 16, 128>}]} {
    %c0 = arith.constant 0 : index
    %c0_0 = arith.constant 0 : index
    %0 = vector.load %arg1[%c0, %c0_0] : memref<16x128xbf16, #tpu.memory_space<vmem>>, vector<16x128xbf16>
    %c0_1 = arith.constant 0 : index
    %c0_2 = arith.constant 0 : index
    %1 = vector.load %arg2[%c0_1, %c0_2] : memref<128x64xbf16, #tpu.memory_space<vmem>>, vector<128x64xbf16>
    %cst = arith.constant dense<0.000000e+00> : vector<16x64xf32>
    %2 = tpu.matmul %0, %1, %cst {dimension_numbers = #tpu.dot_dimension_numbers<[1], [0], [0], [1], [0, 0, 1, 1], [], []>} : vector<16x128xbf16>, vector<128x64xbf16>, vector<16x64xf32> -> vector<16x64xf32>
    %c0_3 = arith.constant 0 : index
    %c0_4 = arith.constant 0 : index
    %3 = vector.load %arg3[%c0_3, %c0_4] : memref<128x64xbf16, #tpu.memory_space<vmem>>, vector<128x64xbf16>
    %cst_5 = arith.constant dense<0.000000e+00> : vector<16x64xf32>
    %4 = tpu.matmul %0, %3, %cst_5 {dimension_numbers = #tpu.dot_dimension_numbers<[1], [0], [0], [1], [0, 0, 1, 1], [], []>} : vector<16x128xbf16>, vector<128x64xbf16>, vector<16x64xf32> -> vector<16x64xf32>
    %5 = arith.negf %2 : vector<16x64xf32>
    %6 = math.exp %5 : vector<16x64xf32>
    %cst_6 = arith.constant 1.000000e+00 : f32
    %7 = vector.broadcast %cst_6 : f32 to vector<16x64xf32>
    %8 = arith.addf %7, %6 : vector<16x64xf32>
    %9 = arith.divf %7, %8 : vector<16x64xf32>
    %10 = arith.mulf %2, %9 : vector<16x64xf32>
    %11 = arith.mulf %10, %4 : vector<16x64xf32>
    %12 = arith.truncf %11 : vector<16x64xf32> to vector<16x64xbf16>
    %c0_7 = arith.constant 0 : index
    %c0_8 = arith.constant 0 : index
    %13 = vector.load %arg4[%c0_7, %c0_8] : memref<64x128xbf16, #tpu.memory_space<vmem>>, vector<64x128xbf16>
    %cst_9 = arith.constant dense<0.000000e+00> : vector<16x128xf32>
    %14 = tpu.matmul %12, %13, %cst_9 {dimension_numbers = #tpu.dot_dimension_numbers<[1], [0], [0], [1], [0, 0, 1, 1], [], []>} : vector<16x64xbf16>, vector<64x128xbf16>, vector<16x128xf32> -> vector<16x128xf32>
    %15 = arith.truncf %14 : vector<16x128xf32> to vector<16x128xbf16>
    %c0_10 = arith.constant 0 : index
    %c0_11 = arith.constant 0 : index
    %16 = vector.load %arg5[%c0_10, %c0_11] : memref<16x128xbf16, #tpu.memory_space<vmem>>, vector<16x128xbf16>
    tpu.vector_store %arg5[%c0_10, %c0_11], %15 {strides = array<i32>} : memref<16x128xbf16, #tpu.memory_space<vmem>>, vector<16x128xbf16>,
    return
  }
  func.func @transform_0(%arg0: i32) -> (i32, i32) {
    %c0_i32 = arith.constant 0 : i32
    %c0_i32_0 = arith.constant 0 : i32
    return %arg0, %c0_i32 : i32, i32
  }
  func.func @transform_1(%arg0: i32) -> (i32, i32) {
    %c0_i32 = arith.constant 0 : i32
    %c0_i32_0 = arith.constant 0 : i32
    %c0_i32_1 = arith.constant 0 : i32
    return %c0_i32, %c0_i32_0 : i32, i32
  }
  func.func @transform_2(%arg0: i32) -> (i32, i32) {
    %c0_i32 = arith.constant 0 : i32
    %c0_i32_0 = arith.constant 0 : i32
    %c0_i32_1 = arith.constant 0 : i32
    return %c0_i32, %c0_i32_0 : i32, i32
  }
  func.func @transform_3(%arg0: i32) -> (i32, i32) {
    %c0_i32 = arith.constant 0 : i32
    %c0_i32_0 = arith.constant 0 : i32
    %c0_i32_1 = arith.constant 0 : i32
    return %c0_i32, %c0_i32_0 : i32, i32
  }
  func.func @transform_4(%arg0: i32) -> (i32, i32) {
    %c0_i32 = arith.constant 0 : i32
    %c0_i32_0 = arith.constant 0 : i32
    return %arg0, %c0_i32 : i32, i32
  }
}

module attributes {stable_mosaic.version = 11 : i64} {
  func.func @_add_rmsnorm_kernel(%arg0: i32, %arg1: memref<16x128xbf16, #tpu.memory_space<vmem>>, %arg2: memref<16x128xbf16, #tpu.memory_space<vmem>>, %arg3: memref<1x128xbf16, #tpu.memory_space<vmem>>, %arg4: memref<16x128xbf16, #tpu.memory_space<vmem>>, %arg5: memref<16x128xbf16, #tpu.memory_space<vmem>>) attributes {dimension_semantics = [#tpu.dimension_semantics<parallel>], iteration_bounds = array<i64: 1>, scalar_prefetch = 0 : i64, scratch_operands = 0 : i64, tpu.core_type = #tpu.core_type<tc>, window_params = [{transform_indices = @transform_0, window_bounds = array<i64: 16, 128>}, {transform_indices = @transform_1, window_bounds = array<i64: 16, 128>}, {pipeline_mode = #tpu.pipeline_mode<synchronous>, transform_indices = @transform_2, window_bounds = array<i64: 1, 128>}, {transform_indices = @transform_3, window_bounds = array<i64: 16, 128>}, {transform_indices = @transform_4, window_bounds = array<i64: 16, 128>}]} {
    %c0 = arith.constant 0 : index
    %c0_0 = arith.constant 0 : index
    %0 = vector.load %arg1[%c0, %c0_0] : memref<16x128xbf16, #tpu.memory_space<vmem>>, vector<16x128xbf16>
    %1 = arith.extf %0 : vector<16x128xbf16> to vector<16x128xf32>
    %c0_1 = arith.constant 0 : index
    %c0_2 = arith.constant 0 : index
    %2 = vector.load %arg2[%c0_1, %c0_2] : memref<16x128xbf16, #tpu.memory_space<vmem>>, vector<16x128xbf16>
    %3 = arith.extf %2 : vector<16x128xbf16> to vector<16x128xf32>
    %4 = arith.addf %1, %3 : vector<16x128xf32>
    %5 = arith.truncf %4 : vector<16x128xf32> to vector<16x128xbf16>
    %c0_3 = arith.constant 0 : index
    %c0_4 = arith.constant 0 : index
    %6 = vector.load %arg4[%c0_3, %c0_4] : memref<16x128xbf16, #tpu.memory_space<vmem>>, vector<16x128xbf16>
    tpu.vector_store %arg4[%c0_3, %c0_4], %5 {strides = array<i32>} : memref<16x128xbf16, #tpu.memory_space<vmem>>, vector<16x128xbf16>,
    %7 = arith.mulf %4, %4 : vector<16x128xf32>
    %cst = arith.constant dense<0.000000e+00> : vector<16xf32>
    %8 = vector.multi_reduction <add>, %7, %cst [1] : vector<16x128xf32> to vector<16xf32>
    %9 = vector.shape_cast %8 : vector<16xf32> to vector<16x1xf32>
    %cst_5 = arith.constant 1.280000e+02 : f32
    %10 = vector.broadcast %cst_5 : f32 to vector<16x1xf32>
    %11 = arith.divf %9, %10 : vector<16x1xf32>
    %cst_6 = arith.constant 9.99999997E-7 : f32
    %12 = vector.broadcast %cst_6 : f32 to vector<16x1xf32>
    %13 = arith.addf %11, %12 : vector<16x1xf32>
    %14 = math.rsqrt %13 : vector<16x1xf32>
    %15 = vector.broadcast %14 : vector<16x1xf32> to vector<16x128xf32>
    %16 = arith.mulf %4, %15 : vector<16x128xf32>
    %c0_7 = arith.constant 0 : index
    %c0_8 = arith.constant 0 : index
    %17 = vector.load %arg3[%c0_7, %c0_8] : memref<1x128xbf16, #tpu.memory_space<vmem>>, vector<1x128xbf16>
    %18 = arith.extf %17 : vector<1x128xbf16> to vector<1x128xf32>
    %19 = vector.broadcast %18 : vector<1x128xf32> to vector<16x128xf32>
    %20 = arith.mulf %16, %19 : vector<16x128xf32>
    %21 = arith.truncf %20 : vector<16x128xf32> to vector<16x128xbf16>
    %c0_9 = arith.constant 0 : index
    %c0_10 = arith.constant 0 : index
    %22 = vector.load %arg5[%c0_9, %c0_10] : memref<16x128xbf16, #tpu.memory_space<vmem>>, vector<16x128xbf16>
    tpu.vector_store %arg5[%c0_9, %c0_10], %21 {strides = array<i32>} : memref<16x128xbf16, #tpu.memory_space<vmem>>, vector<16x128xbf16>,
    return
  }
  func.func @transform_0(%arg0: i32) -> (i32, i32) {
    %c0_i32 = arith.constant 0 : i32
    %c0_i32_0 = arith.constant 0 : i32
    return %arg0, %c0_i32 : i32, i32
  }
  func.func @transform_1(%arg0: i32) -> (i32, i32) {
    %c0_i32 = arith.constant 0 : i32
    %c0_i32_0 = arith.constant 0 : i32
    return %arg0, %c0_i32 : i32, i32
  }
  func.func @transform_2(%arg0: i32) -> (i32, i32) {
    %c0_i32 = arith.constant 0 : i32
    %c0_i32_0 = arith.constant 0 : i32
    %c0_i32_1 = arith.constant 0 : i32
    return %c0_i32, %c0_i32_0 : i32, i32
  }
  func.func @transform_3(%arg0: i32) -> (i32, i32) {
    %c0_i32 = arith.constant 0 : i32
    %c0_i32_0 = arith.constant 0 : i32
    return %arg0, %c0_i32 : i32, i32
  }
  func.func @transform_4(%arg0: i32) -> (i32, i32) {
    %c0_i32 = arith.constant 0 : i32
    %c0_i32_0 = arith.constant 0 : i32
    return %arg0, %c0_i32 : i32, i32
  }
}

module attributes {stable_mosaic.version = 11 : i64} {
  func.func @_moe_kernel(%arg0: i32, %arg1: i32, %arg2: memref<5xi32, #tpu.memory_space<smem>>, %arg3: memref<16x128xbf16, #tpu.memory_space<vmem>>, %arg4: memref<1x16x1xf32, #tpu.memory_space<vmem>>, %arg5: memref<1x128x32xbf16, #tpu.memory_space<vmem>>, %arg6: memref<1x128x32xbf16, #tpu.memory_space<vmem>>, %arg7: memref<1x32x128xbf16, #tpu.memory_space<vmem>>, %arg8: memref<16x128xbf16, #tpu.memory_space<vmem>>, %arg9: memref<16x128xf32, #tpu.memory_space<vmem>>) attributes {dimension_semantics = [#tpu.dimension_semantics<parallel>, #tpu.dimension_semantics<arbitrary>], iteration_bounds = array<i64: 1, 5>, scalar_prefetch = 1 : i64, scratch_operands = 1 : i64, tpu.core_type = #tpu.core_type<tc>, window_params = [{transform_indices = @transform_0, window_bounds = array<i64: 16, 128>}, {transform_indices = @transform_1, window_bounds = array<i64: 1, 16, 1>}, {transform_indices = @transform_2, window_bounds = array<i64: 1, 128, 32>}, {transform_indices = @transform_3, window_bounds = array<i64: 1, 128, 32>}, {transform_indices = @transform_4, window_bounds = array<i64: 1, 32, 128>}, {transform_indices = @transform_5, window_bounds = array<i64: 16, 128>}]} {
    %c0_i32 = arith.constant 0 : i32
    %0 = arith.cmpi eq, %arg1, %c0_i32 : i32
    %1 = arith.extui %0 : i1 to i32
    %c0_i32_0 = arith.constant 0 : i32
    %2 = arith.cmpi ne, %1, %c0_i32_0 : i32
    scf.if %2 {
      %cst = arith.constant 0.000000e+00 : f32
      %11 = vector.broadcast %cst : f32 to vector<16x128xf32>
      %c0 = arith.constant 0 : index
      %c0_4 = arith.constant 0 : index
      %12 = vector.load %arg9[%c0, %c0_4] : memref<16x128xf32, #tpu.memory_space<vmem>>, vector<16x128xf32>
      tpu.vector_store %arg9[%c0, %c0_4], %11 {strides = array<i32>} : memref<16x128xf32, #tpu.memory_space<vmem>>, vector<16x128xf32>,
    } else {
    }
    %3 = arith.index_cast %arg1 : i32 to index
    %4 = memref.load %arg2[%3] : memref<5xi32, #tpu.memory_space<smem>>
    %c0_i32_1 = arith.constant 0 : i32
    %5 = arith.cmpi sgt, %4, %c0_i32_1 : i32
    %6 = arith.extui %5 : i1 to i32
    %c0_i32_2 = arith.constant 0 : i32
    %7 = arith.cmpi ne, %6, %c0_i32_2 : i32
    scf.if %7 {
      %c0 = arith.constant 0 : index
      %c0_4 = arith.constant 0 : index
      %11 = vector.load %arg3[%c0, %c0_4] : memref<16x128xbf16, #tpu.memory_space<vmem>>, vector<16x128xbf16>
      %c0_5 = arith.constant 0 : index
      %c0_6 = arith.constant 0 : index
      %c0_7 = arith.constant 0 : index
      %12 = vector.load %arg5[%c0_5, %c0_6, %c0_7] : memref<1x128x32xbf16, #tpu.memory_space<vmem>>, vector<1x128x32xbf16>
      %13 = vector.shape_cast %12 : vector<1x128x32xbf16> to vector<128x32xbf16>
      %cst = arith.constant dense<0.000000e+00> : vector<16x32xf32>
      %14 = tpu.matmul %11, %13, %cst {dimension_numbers = #tpu.dot_dimension_numbers<[1], [0], [0], [1], [0, 0, 1, 1], [], []>} : vector<16x128xbf16>, vector<128x32xbf16>, vector<16x32xf32> -> vector<16x32xf32>
      %c0_8 = arith.constant 0 : index
      %c0_9 = arith.constant 0 : index
      %c0_10 = arith.constant 0 : index
      %15 = vector.load %arg6[%c0_8, %c0_9, %c0_10] : memref<1x128x32xbf16, #tpu.memory_space<vmem>>, vector<1x128x32xbf16>
      %16 = vector.shape_cast %15 : vector<1x128x32xbf16> to vector<128x32xbf16>
      %cst_11 = arith.constant dense<0.000000e+00> : vector<16x32xf32>
      %17 = tpu.matmul %11, %16, %cst_11 {dimension_numbers = #tpu.dot_dimension_numbers<[1], [0], [0], [1], [0, 0, 1, 1], [], []>} : vector<16x128xbf16>, vector<128x32xbf16>, vector<16x32xf32> -> vector<16x32xf32>
      %18 = arith.negf %14 : vector<16x32xf32>
      %19 = math.exp %18 : vector<16x32xf32>
      %cst_12 = arith.constant 1.000000e+00 : f32
      %20 = vector.broadcast %cst_12 : f32 to vector<16x32xf32>
      %21 = arith.addf %20, %19 : vector<16x32xf32>
      %22 = arith.divf %20, %21 : vector<16x32xf32>
      %23 = arith.mulf %14, %22 : vector<16x32xf32>
      %24 = arith.mulf %23, %17 : vector<16x32xf32>
      %25 = arith.truncf %24 : vector<16x32xf32> to vector<16x32xbf16>
      %c0_13 = arith.constant 0 : index
      %c0_14 = arith.constant 0 : index
      %c0_15 = arith.constant 0 : index
      %26 = vector.load %arg7[%c0_13, %c0_14, %c0_15] : memref<1x32x128xbf16, #tpu.memory_space<vmem>>, vector<1x32x128xbf16>
      %27 = vector.shape_cast %26 : vector<1x32x128xbf16> to vector<32x128xbf16>
      %cst_16 = arith.constant dense<0.000000e+00> : vector<16x128xf32>
      %28 = tpu.matmul %25, %27, %cst_16 {dimension_numbers = #tpu.dot_dimension_numbers<[1], [0], [0], [1], [0, 0, 1, 1], [], []>} : vector<16x32xbf16>, vector<32x128xbf16>, vector<16x128xf32> -> vector<16x128xf32>
      %c0_17 = arith.constant 0 : index
      %c0_18 = arith.constant 0 : index
      %29 = vector.load %arg9[%c0_17, %c0_18] : memref<16x128xf32, #tpu.memory_space<vmem>>, vector<16x128xf32>
      %c0_19 = arith.constant 0 : index
      %c0_20 = arith.constant 0 : index
      %c0_21 = arith.constant 0 : index
      %30 = vector.load %arg4[%c0_19, %c0_20, %c0_21] : memref<1x16x1xf32, #tpu.memory_space<vmem>>, vector<1x16x1xf32>
      %31 = vector.shape_cast %30 : vector<1x16x1xf32> to vector<16x1xf32>
      %32 = vector.broadcast %31 : vector<16x1xf32> to vector<16x128xf32>
      %33 = arith.mulf %32, %28 : vector<16x128xf32>
      %34 = arith.addf %29, %33 : vector<16x128xf32>
      %c0_22 = arith.constant 0 : index
      %c0_23 = arith.constant 0 : index
      %35 = vector.load %arg9[%c0_22, %c0_23] : memref<16x128xf32, #tpu.memory_space<vmem>>, vector<16x128xf32>
      tpu.vector_store %arg9[%c0_22, %c0_23], %34 {strides = array<i32>} : memref<16x128xf32, #tpu.memory_space<vmem>>, vector<16x128xf32>,
    } else {
    }
    %c4_i32 = arith.constant 4 : i32
    %8 = arith.cmpi eq, %arg1, %c4_i32 : i32
    %9 = arith.extui %8 : i1 to i32
    %c0_i32_3 = arith.constant 0 : i32
    %10 = arith.cmpi ne, %9, %c0_i32_3 : i32
    scf.if %10 {
      %c0 = arith.constant 0 : index
      %c0_4 = arith.constant 0 : index
      %11 = vector.load %arg9[%c0, %c0_4] : memref<16x128xf32, #tpu.memory_space<vmem>>, vector<16x128xf32>
      %12 = arith.truncf %11 : vector<16x128xf32> to vector<16x128xbf16>
      %c0_5 = arith.constant 0 : index
      %c0_6 = arith.constant 0 : index
      %13 = vector.load %arg8[%c0_5, %c0_6] : memref<16x128xbf16, #tpu.memory_space<vmem>>, vector<16x128xbf16>
      tpu.vector_store %arg8[%c0_5, %c0_6], %12 {strides = array<i32>} : memref<16x128xbf16, #tpu.memory_space<vmem>>, vector<16x128xbf16>,
    } else {
    }
    return
  }
  func.func @transform_0(%arg0: i32, %arg1: i32, %arg2: memref<5xi32, #tpu.memory_space<smem>>) -> (i32, i32) {
    %c0_i32 = arith.constant 0 : i32
    %c0_i32_0 = arith.constant 0 : i32
    return %arg0, %c0_i32 : i32, i32
  }
  func.func @transform_1(%arg0: i32, %arg1: i32, %arg2: memref<5xi32, #tpu.memory_space<smem>>) -> (i32, i32, i32) {
    %c0_i32 = arith.constant 0 : i32
    %c0_i32_0 = arith.constant 0 : i32
    return %arg1, %arg0, %c0_i32 : i32, i32, i32
  }
  func.func @transform_2(%arg0: i32, %arg1: i32, %arg2: memref<5xi32, #tpu.memory_space<smem>>) -> (i32, i32, i32) {
    %c0_i32 = arith.constant 0 : i32
    %c0_i32_0 = arith.constant 0 : i32
    %c0_i32_1 = arith.constant 0 : i32
    return %arg1, %c0_i32, %c0_i32_0 : i32, i32, i32
  }
  func.func @transform_3(%arg0: i32, %arg1: i32, %arg2: memref<5xi32, #tpu.memory_space<smem>>) -> (i32, i32, i32) {
    %c0_i32 = arith.constant 0 : i32
    %c0_i32_0 = arith.constant 0 : i32
    %c0_i32_1 = arith.constant 0 : i32
    return %arg1, %c0_i32, %c0_i32_0 : i32, i32, i32
  }
  func.func @transform_4(%arg0: i32, %arg1: i32, %arg2: memref<5xi32, #tpu.memory_space<smem>>) -> (i32, i32, i32) {
    %c0_i32 = arith.constant 0 : i32
    %c0_i32_0 = arith.constant 0 : i32
    %c0_i32_1 = arith.constant 0 : i32
    return %arg1, %c0_i32, %c0_i32_0 : i32, i32, i32
  }
  func.func @transform_5(%arg0: i32, %arg1: i32, %arg2: memref<5xi32, #tpu.memory_space<smem>>) -> (i32, i32) {
    %c0_i32 = arith.constant 0 : i32
    %c0_i32_0 = arith.constant 0 : i32
    return %arg0, %c0_i32 : i32, i32
  }
}

</mosaic_0001>

<llo_original>
// kernel: deepseek_v2_model_forward.11
$region0: #{deepseek_v2_model_forward.11}
  #allocation0 [shape = 'u32[]', space=smem, size = 0x4, offset = 0x4, fixed_abs, tag = 'smem constant byte address 0x4 - core index']
  #allocation1 [shape = 'u32[144,128]{1,0:T(1,128)}', space=vmem, size = 0x12000, scoped, tag = 'internal scratch']
  %s0 = inlined_call_operand.vmem [shape: bf16[16,128], index: 0, kind: input, shape index: {}]
  %s1 = inlined_call_operand.vmem [shape: bf16[1,128], index: 1, kind: input, shape index: {}]
  %s2 = inlined_call_operand.vmem [shape: bf16[16,128], index: 2, kind: output, shape index: {}]
  %s3 = sld [smem:[#allocation0]]
  $region18: #{deepseek_v2_model_forward.11} parent=0
    _
  %s5 = ssub.s32 1, %s3
  %s6 = scalar_select 0, %s5, %s3
  // Predicated region
  $region2: #{deepseek_v2_model_forward.11} parent=0 // pred_check
    _
  $region3: #{deepseek_v2_model_forward.11} parent=0 // pred_check_branch
    %8 = sbr.rel (0) target = $region5
  $region4: #{deepseek_v2_model_forward.11} parent=0 // pred_region
    _
  $region5: #{deepseek_v2_model_forward.11} parent=0 // pred_fallthru
    _
  // Predicated region
  $region6: #{deepseek_v2_model_forward.11} parent=0 // pred_check
    _
  $region7: #{deepseek_v2_model_forward.11} parent=0 // pred_check_branch
    %10 = sbr.rel (0) target = $region9
  $region8: #{deepseek_v2_model_forward.11} parent=0 // pred_region
    _
  $region9: #{deepseek_v2_model_forward.11} parent=0 // pred_fallthru
    _
  %v11 = vld [vmem:[%s0] sm:$0xf]
  %v12 = vld [vmem:[%s0 + $0x4] sm:$0xf]
  %v13 = vunpack.c.l.bf16 %v11
  %v14 = vunpack.c.l.bf16 %v12
  %v15 = vmul.f32 %v13, %v13
  %v16 = vmul.f32 %v14, %v14
  %17 = vadd.xlane.f32.xlu0 %v15
  %v18 = vpop.xlane.xlu0 %17
  %19 = vadd.xlane.f32.xlu0 %v16
  %v20 = vpop.xlane.xlu0 %19
  %v21 = vrcp.pop 128.0
  %v22 = vmul.f32 %v18, %v21
  %v23 = vmul.f32 %v20, %v21
  %v24 = vadd.f32 %v22, 1e-06
  %v25 = vadd.f32 %v23, 1e-06
  %v26 = vrsqrt.pop %v24
  %v27 = vrsqrt.pop %v25
  %v28 = vmul.f32 %v13, %v26
  %v29 = vmul.f32 %v14, %v27
  %v30 = vld [vmem:[%s1] sm:$0x1]
  %v31 = vunpack.c.l.bf16 %v30
  %v32 = vlaneseq
  %v33 = vshrl.u32 %v32, 7
  %v34 = vsub.s32 0, %v33
  %v35 = vrot.slane %v31, %v34
  %v36 = vmul.f32 %v28, %v35
  %v37 = vmul.f32 %v29, %v35
  %v38 = vpack.c.bf16 %v37, %v36
  %v40 = vunpack.c.l.b16 %v38
  %v41 = vunpack.c.h.b16 %v38
  %v42 = vpack.c.b16 %v40, %v40
  %v43 = vpack.c.b16 %v41, %v41
  %46 = vst [vmem:[%s2] sm:$0xf] %v42
  %47 = vst [vmem:[%s2 + $0x4] sm:$0xf] %v43
  // Predicated region
  $region10: #{deepseek_v2_model_forward.11} parent=0 // pred_check
    _
  $region11: #{deepseek_v2_model_forward.11} parent=0 // pred_check_branch
    %49 = sbr.rel (0) target = $region13
  $region12: #{deepseek_v2_model_forward.11} parent=0 // pred_region
    _
  $region13: #{deepseek_v2_model_forward.11} parent=0 // pred_fallthru
    _
  // Predicated region
  $region14: #{deepseek_v2_model_forward.11} parent=0 // pred_check
    _
  $region15: #{deepseek_v2_model_forward.11} parent=0 // pred_check_branch
    %51 = sbr.rel (0) target = $region17
  $region16: #{deepseek_v2_model_forward.11} parent=0 // pred_region
    _
  $region17: #{deepseek_v2_model_forward.11} parent=0 // pred_fallthru
    _

// kernel: deepseek_v2_model_forward.14
$region0: #{deepseek_v2_model_forward.14}
  #allocation0 [shape = 'u32[]', space=smem, size = 0x4, offset = 0x4, fixed_abs, tag = 'smem constant byte address 0x4 - core index']
  #allocation1 [shape = 'u32[144,128]{1,0:T(1,128)}', space=vmem, size = 0x12000, scoped, tag = 'internal scratch']
  %s0 = inlined_call_operand.vmem [shape: bf16[16,128], index: 0, kind: input, shape index: {}]
  %s1 = inlined_call_operand.vmem [shape: bf16[16,128], index: 1, kind: input, shape index: {}]
  %s2 = inlined_call_operand.vmem [shape: bf16[1,128], index: 2, kind: input, shape index: {}]
  %s3 = inlined_call_operand.vmem [shape: bf16[16,128], index: 3, kind: output, shape index: {0}]
  %s4 = inlined_call_operand.vmem [shape: bf16[16,128], index: 4, kind: output, shape index: {1}]
  %5 = xla_tuple %s3, %s4
  %s6 = sld [smem:[#allocation0]]
  $region30: #{deepseek_v2_model_forward.14} parent=0
    _
  %s8 = ssub.s32 1, %s6
  %s9 = scalar_select 0, %s8, %s6
  // Predicated region
  $region2: #{deepseek_v2_model_forward.14} parent=0 // pred_check
    _
  $region3: #{deepseek_v2_model_forward.14} parent=0 // pred_check_branch
    %11 = sbr.rel (0) target = $region5
  $region4: #{deepseek_v2_model_forward.14} parent=0 // pred_region
    _
  $region5: #{deepseek_v2_model_forward.14} parent=0 // pred_fallthru
    _
  // Predicated region
  $region6: #{deepseek_v2_model_forward.14} parent=0 // pred_check
    _
  $region7: #{deepseek_v2_model_forward.14} parent=0 // pred_check_branch
    %13 = sbr.rel (0) target = $region9
  $region8: #{deepseek_v2_model_forward.14} parent=0 // pred_region
    _
  $region9: #{deepseek_v2_model_forward.14} parent=0 // pred_fallthru
    _
  // Predicated region
  $region10: #{deepseek_v2_model_forward.14} parent=0 // pred_check
    _
  $region11: #{deepseek_v2_model_forward.14} parent=0 // pred_check_branch
    %15 = sbr.rel (0) target = $region13
  $region12: #{deepseek_v2_model_forward.14} parent=0 // pred_region
    _
  $region13: #{deepseek_v2_model_forward.14} parent=0 // pred_fallthru
    _
  %v16 = vld [vmem:[%s0] sm:$0xf]
  %v17 = vld [vmem:[%s0 + $0x4] sm:$0xf]
  %v18 = vunpack.c.l.bf16 %v16
  %v19 = vunpack.c.l.bf16 %v17
  %v20 = vld [vmem:[%s1] sm:$0xf]
  %v21 = vld [vmem:[%s1 + $0x4] sm:$0xf]
  %v22 = vunpack.c.l.bf16 %v20
  %v23 = vunpack.c.l.bf16 %v21
  %v24 = vadd.f32 %v18, %v22
  %v25 = vadd.f32 %v19, %v23
  %v26 = vpack.c.bf16 %v25, %v24
  %v28 = vunpack.c.l.b16 %v26
  %v29 = vunpack.c.h.b16 %v26
  %v30 = vpack.c.b16 %v28, %v28
  %v31 = vpack.c.b16 %v29, %v29
  %34 = vst [vmem:[%s3] sm:$0xf] %v30
  %35 = vst [vmem:[%s3 + $0x4] sm:$0xf] %v31
  %v36 = vmul.f32 %v24, %v24
  %v37 = vmul.f32 %v25, %v25
  %38 = vadd.xlane.f32.xlu0 %v36
  %v39 = vpop.xlane.xlu0 %38
  %40 = vadd.xlane.f32.xlu0 %v37
  %v41 = vpop.xlane.xlu0 %40
  %v42 = vrcp.pop 128.0
  %v43 = vmul.f32 %v39, %v42
  %v44 = vmul.f32 %v41, %v42
  %v45 = vadd.f32 %v43, 1e-06
  %v46 = vadd.f32 %v44, 1e-06
  %v47 = vrsqrt.pop %v45
  %v48 = vrsqrt.pop %v46
  %v49 = vmul.f32 %v24, %v47
  %v50 = vmul.f32 %v25, %v48
  %v51 = vld [vmem:[%s2] sm:$0x1]
  %v52 = vunpack.c.l.bf16 %v51
  %v53 = vlaneseq
  %v54 = vshrl.u32 %v53, 7
  %v55 = vsub.s32 0, %v54
  %v56 = vrot.slane %v52, %v55
  %v57 = vmul.f32 %v49, %v56
  %v58 = vmul.f32 %v50, %v56
  %v59 = vpack.c.bf16 %v58, %v57
  %v61 = vunpack.c.l.b16 %v59
  %v62 = vunpack.c.h.b16 %v59
  %v63 = vpack.c.b16 %v61, %v61
  %v64 = vpack.c.b16 %v62, %v62
  %67 = vst [vmem:[%s4] sm:$0xf] %v63
  %68 = vst [vmem:[%s4 + $0x4] sm:$0xf] %v64
  // Predicated region
  $region14: #{deepseek_v2_model_forward.14} parent=0 // pred_check
    _
  $region15: #{deepseek_v2_model_forward.14} parent=0 // pred_check_branch
    %70 = sbr.rel (0) target = $region17
  $region16: #{deepseek_v2_model_forward.14} parent=0 // pred_region
    _
  $region17: #{deepseek_v2_model_forward.14} parent=0 // pred_fallthru
    _
  // Predicated region
  $region18: #{deepseek_v2_model_forward.14} parent=0 // pred_check
    _
  $region19: #{deepseek_v2_model_forward.14} parent=0 // pred_check_branch
    %72 = sbr.rel (0) target = $region21
  $region20: #{deepseek_v2_model_forward.14} parent=0 // pred_region
    _
  $region21: #{deepseek_v2_model_forward.14} parent=0 // pred_fallthru
    _
  // Predicated region
  $region22: #{deepseek_v2_model_forward.14} parent=0 // pred_check
    _
  $region23: #{deepseek_v2_model_forward.14} parent=0 // pred_check_branch
    %74 = sbr.rel (0) target = $region25
  $region24: #{deepseek_v2_model_forward.14} parent=0 // pred_region
    _
  $region25: #{deepseek_v2_model_forward.14} parent=0 // pred_fallthru
    _
  // Predicated region
  $region26: #{deepseek_v2_model_forward.14} parent=0 // pred_check
    _
  $region27: #{deepseek_v2_model_forward.14} parent=0 // pred_check_branch
    %76 = sbr.rel (0) target = $region29
  $region28: #{deepseek_v2_model_forward.14} parent=0 // pred_region
    _
  $region29: #{deepseek_v2_model_forward.14} parent=0 // pred_fallthru
    _

// kernel: deepseek_v2_model_forward.12
$region0: #{deepseek_v2_model_forward.12}
  #allocation0 [shape = 'u32[]', space=smem, size = 0x4, offset = 0x4, fixed_abs, tag = 'smem constant byte address 0x4 - core index']
  #allocation1 [shape = 'u32[144,128]{1,0:T(1,128)}', space=vmem, size = 0x12000, scoped, tag = 'internal scratch']
  %s0 = inlined_call_operand.vmem [shape: bf16[16,128], index: 0, kind: input, shape index: {}]
  %s1 = inlined_call_operand.vmem [shape: bf16[128,32], index: 1, kind: input, shape index: {}]
  %s2 = inlined_call_operand.vmem [shape: bf16[128,32], index: 2, kind: input, shape index: {}]
  %s3 = inlined_call_operand.vmem [shape: bf16[128,16], index: 3, kind: input, shape index: {}]
  %s4 = inlined_call_operand.vmem [shape: bf16[1,32], index: 4, kind: input, shape index: {}]
  %s5 = inlined_call_operand.vmem [shape: bf16[1,32], index: 5, kind: input, shape index: {}]
  %s6 = inlined_call_operand.vmem [shape: f32[16,16], index: 6, kind: input, shape index: {}]
  %s7 = inlined_call_operand.vmem [shape: f32[16,16], index: 7, kind: input, shape index: {}]
  %s8 = inlined_call_operand.vmem [shape: bf16[16,16], index: 8, kind: input, shape index: {}]
  %s9 = inlined_call_operand.vmem [shape: bf16[16,32], index: 9, kind: output, shape index: {0}]
  %s10 = inlined_call_operand.vmem [shape: bf16[16,32], index: 10, kind: output, shape index: {1}]
  %s11 = inlined_call_operand.vmem [shape: bf16[16,16], index: 11, kind: output, shape index: {2}]
  %12 = xla_tuple %s9, %s10, %s11
  %s13 = sld [smem:[#allocation0]]
  $region62: #{deepseek_v2_model_forward.12} parent=0
    _
  %s15 = ssub.s32 1, %s13
  %s16 = scalar_select 0, %s15, %s13
  // Predicated region
  $region2: #{deepseek_v2_model_forward.12} parent=0 // pred_check
    _
  $region3: #{deepseek_v2_model_forward.12} parent=0 // pred_check_branch
    %18 = sbr.rel (0) target = $region5
  $region4: #{deepseek_v2_model_forward.12} parent=0 // pred_region
    _
  $region5: #{deepseek_v2_model_forward.12} parent=0 // pred_fallthru
    _
  // Predicated region
  $region6: #{deepseek_v2_model_forward.12} parent=0 // pred_check
    _
  $region7: #{deepseek_v2_model_forward.12} parent=0 // pred_check_branch
    %20 = sbr.rel (0) target = $region9
  $region8: #{deepseek_v2_model_forward.12} parent=0 // pred_region
    _
  $region9: #{deepseek_v2_model_forward.12} parent=0 // pred_fallthru
    _
  // Predicated region
  $region10: #{deepseek_v2_model_forward.12} parent=0 // pred_check
    _
  $region11: #{deepseek_v2_model_forward.12} parent=0 // pred_check_branch
    %22 = sbr.rel (0) target = $region13
  $region12: #{deepseek_v2_model_forward.12} parent=0 // pred_region
    _
  $region13: #{deepseek_v2_model_forward.12} parent=0 // pred_fallthru
    _
  // Predicated region
  $region14: #{deepseek_v2_model_forward.12} parent=0 // pred_check
    _
  $region15: #{deepseek_v2_model_forward.12} parent=0 // pred_check_branch
    %24 = sbr.rel (0) target = $region17
  $region16: #{deepseek_v2_model_forward.12} parent=0 // pred_region
    _
  $region17: #{deepseek_v2_model_forward.12} parent=0 // pred_fallthru
    _
  // Predicated region
  $region18: #{deepseek_v2_model_forward.12} parent=0 // pred_check
    _
  $region19: #{deepseek_v2_model_forward.12} parent=0 // pred_check_branch
    %26 = sbr.rel (0) target = $region21
  $region20: #{deepseek_v2_model_forward.12} parent=0 // pred_region
    _
  $region21: #{deepseek_v2_model_forward.12} parent=0 // pred_fallthru
    _
  // Predicated region
  $region22: #{deepseek_v2_model_forward.12} parent=0 // pred_check
    _
  $region23: #{deepseek_v2_model_forward.12} parent=0 // pred_check_branch
    %28 = sbr.rel (0) target = $region25
  $region24: #{deepseek_v2_model_forward.12} parent=0 // pred_region
    _
  $region25: #{deepseek_v2_model_forward.12} parent=0 // pred_fallthru
    _
  // Predicated region
  $region26: #{deepseek_v2_model_forward.12} parent=0 // pred_check
    _
  $region27: #{deepseek_v2_model_forward.12} parent=0 // pred_check_branch
    %30 = sbr.rel (0) target = $region29
  $region28: #{deepseek_v2_model_forward.12} parent=0 // pred_region
    _
  $region29: #{deepseek_v2_model_forward.12} parent=0 // pred_fallthru
    _
  // Predicated region
  $region30: #{deepseek_v2_model_forward.12} parent=0 // pred_check
    _
  $region31: #{deepseek_v2_model_forward.12} parent=0 // pred_check_branch
    %32 = sbr.rel (0) target = $region33
  $region32: #{deepseek_v2_model_forward.12} parent=0 // pred_region
    _
  $region33: #{deepseek_v2_model_forward.12} parent=0 // pred_fallthru
    _
  // Predicated region
  $region34: #{deepseek_v2_model_forward.12} parent=0 // pred_check
    _
  $region35: #{deepseek_v2_model_forward.12} parent=0 // pred_check_branch
    %34 = sbr.rel (0) target = $region37
  $region36: #{deepseek_v2_model_forward.12} parent=0 // pred_region
    _
  $region37: #{deepseek_v2_model_forward.12} parent=0 // pred_fallthru
    _
  %v36 = vld [vmem:[%s0] sm:$0xf]
  %v37 = vld [vmem:[%s0 + $0x4] sm:$0xf]
  %v38 = vld [vmem:[%s1] sm:$0xf]
  %v39 = vld [vmem:[%s1 + $0x4] sm:$0xf]
  %v40 = vld [vmem:[%s1 + $0x8] sm:$0xf]
  %v41 = vld [vmem:[%s1 + $0xc] sm:$0xf]
  %v42 = vld [vmem:[%s1 + $0x10] sm:$0xf]
  %v43 = vld [vmem:[%s1 + $0x14] sm:$0xf]
  %v44 = vld [vmem:[%s1 + $0x18] sm:$0xf]
  %v45 = vld [vmem:[%s1 + $0x1c] sm:$0xf]
  %v46 = vld [vmem:[%s1 + $0x20] sm:$0xf]
  %v47 = vld [vmem:[%s1 + $0x24] sm:$0xf]
  %v48 = vld [vmem:[%s1 + $0x28] sm:$0xf]
  %v49 = vld [vmem:[%s1 + $0x2c] sm:$0xf]
  %v50 = vld [vmem:[%s1 + $0x30] sm:$0xf]
  %v51 = vld [vmem:[%s1 + $0x34] sm:$0xf]
  %v52 = vld [vmem:[%s1 + $0x38] sm:$0xf]
  %v53 = vld [vmem:[%s1 + $0x3c] sm:$0xf]
  %v56 = vunpack.c.l.b16 %v36
  %v57 = vunpack.c.l.b16 %v37
  %v58 = vpack.c.b16 %v57, %v56
  %v76 = vunpack.c.l.b16 %v38
  %v77 = vunpack.c.l.b16 %v39
  %v78 = vunpack.c.l.b16 %v40
  %v79 = vunpack.c.l.b16 %v41
  %v80 = vunpack.c.l.b16 %v42
  %v81 = vunpack.c.l.b16 %v43
  %v82 = vunpack.c.l.b16 %v44
  %v83 = vunpack.c.l.b16 %v45
  %v84 = vunpack.c.l.b16 %v46
  %v85 = vunpack.c.l.b16 %v47
  %v86 = vunpack.c.l.b16 %v48
  %v87 = vunpack.c.l.b16 %v49
  %v88 = vunpack.c.l.b16 %v50
  %v89 = vunpack.c.l.b16 %v51
  %v90 = vunpack.c.l.b16 %v52
  %v91 = vunpack.c.l.b16 %v53
  %v92 = vpack.c.b16 %v77, %v76
  %v93 = vpack.c.b16 %v79, %v78
  %v94 = vpack.c.b16 %v81, %v80
  %v95 = vpack.c.b16 %v83, %v82
  %v96 = vpack.c.b16 %v85, %v84
  %v97 = vpack.c.b16 %v87, %v86
  %v98 = vpack.c.b16 %v89, %v88
  %v99 = vpack.c.b16 %v91, %v90
  %108 = vmatprep.subr.bf16.mxu0 0
  %109 = vmatpush1.bf16.msra.mxu0 %v99
  %110 = vmatprep.subr.bf16.mxu0 0
  %111 = vmatpush1.bf16.msra.mxu0 %v98
  %112 = vmatprep.subr.bf16.mxu0 0
  %113 = vmatpush1.bf16.msra.mxu0 %v97
  %114 = vmatprep.subr.bf16.mxu0 0
  %115 = vmatpush1.bf16.msra.mxu0 %v96
  %116 = vmatprep.subr.bf16.mxu0 0
  %117 = vmatpush1.bf16.msra.mxu0 %v95
  %118 = vmatprep.subr.bf16.mxu0 0
  %119 = vmatpush1.bf16.msra.mxu0 %v94
  %120 = vmatprep.subr.bf16.mxu0 0
  %121 = vmatpush1.bf16.msra.mxu0 %v93
  %122 = vmatprep.subr.bf16.mxu0 0
  %123 = vmatpush1.bf16.msra.mxu0 %v92
  %124 = vmatprep.subr.bf16.mxu0 0
  %125 = vmatpush2.bf16.msra.mxu0 0
  %126 = vmatprep.subr.bf16.mxu0 0
  %127 = vmatpush2.bf16.msra.mxu0 0
  %128 = vmatprep.subr.bf16.mxu0 0
  %129 = vmatpush2.bf16.msra.mxu0 0
  %130 = vmatprep.subr.bf16.mxu0 0
  %131 = vmatpush2.bf16.msra.mxu0 0
  %132 = vmatprep.subr.bf16.mxu0 0
  %133 = vmatpush2.bf16.msra.mxu0 0
  %134 = vmatprep.subr.bf16.mxu0 0
  %135 = vmatpush2.bf16.msra.mxu0 0
  %136 = vmatprep.subr.bf16.mxu0 0
  %137 = vmatpush2.bf16.msra.mxu0 0
  %138 = vmatprep.subr.bf16.mxu0 0
  %139 = vmatpush2.bf16.msra.mxu0 0
  %140 = vmatprep.mubr.bf16.mxu0 0
  %141 = vmatmul.mubr.bf16.gmra.mxu0 %v58
  %v142 = vpop.f32.mrf.mxu0
  %v143 = vadd.f32 0.0, %v142
  %v144 = vpop.f32.mrf.mxu0
  %v145 = vpop.f32.mrf.mxu0
  %v146 = vadd.f32 0.0, %v145
  %v147 = vpop.f32.mrf.mxu0
  %148 = vdwg.mxu0
  %v149 = vld [vmem:[%s2] sm:$0xf]
  %v150 = vld [vmem:[%s2 + $0x4] sm:$0xf]
  %v151 = vld [vmem:[%s2 + $0x8] sm:$0xf]
  %v152 = vld [vmem:[%s2 + $0xc] sm:$0xf]
  %v153 = vld [vmem:[%s2 + $0x10] sm:$0xf]
  %v154 = vld [vmem:[%s2 + $0x14] sm:$0xf]
  %v155 = vld [vmem:[%s2 + $0x18] sm:$0xf]
  %v156 = vld [vmem:[%s2 + $0x1c] sm:$0xf]
  %v157 = vld [vmem:[%s2 + $0x20] sm:$0xf]
  %v158 = vld [vmem:[%s2 + $0x24] sm:$0xf]
  %v159 = vld [vmem:[%s2 + $0x28] sm:$0xf]
  %v160 = vld [vmem:[%s2 + $0x2c] sm:$0xf]
  %v161 = vld [vmem:[%s2 + $0x30] sm:$0xf]
  %v162 = vld [vmem:[%s2 + $0x34] sm:$0xf]
  %v163 = vld [vmem:[%s2 + $0x38] sm:$0xf]
  %v164 = vld [vmem:[%s2 + $0x3c] sm:$0xf]
  %v181 = vunpack.c.l.b16 %v149
  %v182 = vunpack.c.l.b16 %v150
  %v183 = vunpack.c.l.b16 %v151
  %v184 = vunpack.c.l.b16 %v152
  %v185 = vunpack.c.l.b16 %v153
  %v186 = vunpack.c.l.b16 %v154
  %v187 = vunpack.c.l.b16 %v155
  %v188 = vunpack.c.l.b16 %v156
  %v189 = vunpack.c.l.b16 %v157
  %v190 = vunpack.c.l.b16 %v158
  %v191 = vunpack.c.l.b16 %v159
  %v192 = vunpack.c.l.b16 %v160
  %v193 = vunpack.c.l.b16 %v161
  %v194 = vunpack.c.l.b16 %v162
  %v195 = vunpack.c.l.b16 %v163
  %v196 = vunpack.c.l.b16 %v164
  %v197 = vpack.c.b16 %v182, %v181
  %v198 = vpack.c.b16 %v184, %v183
  %v199 = vpack.c.b16 %v186, %v185
  %v200 = vpack.c.b16 %v188, %v187
  %v201 = vpack.c.b16 %v190, %v189
  %v202 = vpack.c.b16 %v192, %v191
  %v203 = vpack.c.b16 %v194, %v193
  %v204 = vpack.c.b16 %v196, %v195
  %213 = vmatprep.subr.bf16.mxu0 0
  %214 = vmatpush1.bf16.msra.mxu0 %v204
  %215 = vmatprep.subr.bf16.mxu0 0
  %216 = vmatpush1.bf16.msra.mxu0 %v203
  %217 = vmatprep.subr.bf16.mxu0 0
  %218 = vmatpush1.bf16.msra.mxu0 %v202
  %219 = vmatprep.subr.bf16.mxu0 0
  %220 = vmatpush1.bf16.msra.mxu0 %v201
  %221 = vmatprep.subr.bf16.mxu0 0
  %222 = vmatpush1.bf16.msra.mxu0 %v200
  %223 = vmatprep.subr.bf16.mxu0 0
  %224 = vmatpush1.bf16.msra.mxu0 %v199
  %225 = vmatprep.subr.bf16.mxu0 0
  %226 = vmatpush1.bf16.msra.mxu0 %v198
  %227 = vmatprep.subr.bf16.mxu0 0
  %228 = vmatpush1.bf16.msra.mxu0 %v197
  %229 = vmatprep.subr.bf16.mxu0 0
  %230 = vmatpush2.bf16.msra.mxu0 0
  %231 = vmatprep.subr.bf16.mxu0 0
  %232 = vmatpush2.bf16.msra.mxu0 0
  %233 = vmatprep.subr.bf16.mxu0 0
  %234 = vmatpush2.bf16.msra.mxu0 0
  %235 = vmatprep.subr.bf16.mxu0 0
  %236 = vmatpush2.bf16.msra.mxu0 0
  %237 = vmatprep.subr.bf16.mxu0 0
  %238 = vmatpush2.bf16.msra.mxu0 0
  %239 = vmatprep.subr.bf16.mxu0 0
  %240 = vmatpush2.bf16.msra.mxu0 0
  %241 = vmatprep.subr.bf16.mxu0 0
  %242 = vmatpush2.bf16.msra.mxu0 0
  %243 = vmatprep.subr.bf16.mxu0 0
  %244 = vmatpush2.bf16.msra.mxu0 0
  %245 = vmatprep.mubr.bf16.mxu0 0
  %246 = vmatmul.mubr.bf16.gmra.mxu0 %v58
  %v247 = vpop.f32.mrf.mxu0
  %v248 = vadd.f32 0.0, %v247
  %v249 = vpop.f32.mrf.mxu0
  %v250 = vpop.f32.mrf.mxu0
  %v251 = vadd.f32 0.0, %v250
  %v252 = vpop.f32.mrf.mxu0
  %253 = vdwg.mxu0
  %v254 = vld [vmem:[%s3] sm:$0xf]
  %v255 = vld [vmem:[%s3 + $0x4] sm:$0xf]
  %v256 = vld [vmem:[%s3 + $0x8] sm:$0xf]
  %v257 = vld [vmem:[%s3 + $0xc] sm:$0xf]
  %v258 = vld [vmem:[%s3 + $0x10] sm:$0xf]
  %v259 = vld [vmem:[%s3 + $0x14] sm:$0xf]
  %v260 = vld [vmem:[%s3 + $0x18] sm:$0xf]
  %v261 = vld [vmem:[%s3 + $0x1c] sm:$0xf]
  %v262 = vld [vmem:[%s3 + $0x20] sm:$0xf]
  %v263 = vld [vmem:[%s3 + $0x24] sm:$0xf]
  %v264 = vld [vmem:[%s3 + $0x28] sm:$0xf]
  %v265 = vld [vmem:[%s3 + $0x2c] sm:$0xf]
  %v266 = vld [vmem:[%s3 + $0x30] sm:$0xf]
  %v267 = vld [vmem:[%s3 + $0x34] sm:$0xf]
  %v268 = vld [vmem:[%s3 + $0x38] sm:$0xf]
  %v269 = vld [vmem:[%s3 + $0x3c] sm:$0xf]
  %v286 = vunpack.c.l.b16 %v254
  %v287 = vunpack.c.l.b16 %v255
  %v288 = vunpack.c.l.b16 %v256
  %v289 = vunpack.c.l.b16 %v257
  %v290 = vunpack.c.l.b16 %v258
  %v291 = vunpack.c.l.b16 %v259
  %v292 = vunpack.c.l.b16 %v260
  %v293 = vunpack.c.l.b16 %v261
  %v294 = vunpack.c.l.b16 %v262
  %v295 = vunpack.c.l.b16 %v263
  %v296 = vunpack.c.l.b16 %v264
  %v297 = vunpack.c.l.b16 %v265
  %v298 = vunpack.c.l.b16 %v266
  %v299 = vunpack.c.l.b16 %v267
  %v300 = vunpack.c.l.b16 %v268
  %v301 = vunpack.c.l.b16 %v269
  %v302 = vpack.c.b16 %v287, %v286
  %v303 = vpack.c.b16 %v289, %v288
  %v304 = vpack.c.b16 %v291, %v290
  %v305 = vpack.c.b16 %v293, %v292
  %v306 = vpack.c.b16 %v295, %v294
  %v307 = vpack.c.b16 %v297, %v296
  %v308 = vpack.c.b16 %v299, %v298
  %v309 = vpack.c.b16 %v301, %v300
  %318 = vmatprep.subr.bf16.mxu0 0
  %319 = vmatpush1.bf16.msra.mxu0 %v309
  %320 = vmatprep.subr.bf16.mxu0 0
  %321 = vmatpush1.bf16.msra.mxu0 %v308
  %322 = vmatprep.subr.bf16.mxu0 0
  %323 = vmatpush1.bf16.msra.mxu0 %v307
  %324 = vmatprep.subr.bf16.mxu0 0
  %325 = vmatpush1.bf16.msra.mxu0 %v306
  %326 = vmatprep.subr.bf16.mxu0 0
  %327 = vmatpush1.bf16.msra.mxu0 %v305
  %328 = vmatprep.subr.bf16.mxu0 0
  %329 = vmatpush1.bf16.msra.mxu0 %v304
  %330 = vmatprep.subr.bf16.mxu0 0
  %331 = vmatpush1.bf16.msra.mxu0 %v303
  %332 = vmatprep.subr.bf16.mxu0 0
  %333 = vmatpush1.bf16.msra.mxu0 %v302
  %334 = vmatprep.subr.bf16.mxu0 0
  %335 = vmatpush2.bf16.msra.mxu0 0
  %336 = vmatprep.subr.bf16.mxu0 0
  %337 = vmatpush2.bf16.msra.mxu0 0
  %338 = vmatprep.subr.bf16.mxu0 0
  %339 = vmatpush2.bf16.msra.mxu0 0
  %340 = vmatprep.subr.bf16.mxu0 0
  %341 = vmatpush2.bf16.msra.mxu0 0
  %342 = vmatprep.subr.bf16.mxu0 0
  %343 = vmatpush2.bf16.msra.mxu0 0
  %344 = vmatprep.subr.bf16.mxu0 0
  %345 = vmatpush2.bf16.msra.mxu0 0
  %346 = vmatprep.subr.bf16.mxu0 0
  %347 = vmatpush2.bf16.msra.mxu0 0
  %348 = vmatprep.subr.bf16.mxu0 0
  %349 = vmatpush2.bf16.msra.mxu0 0
  %350 = vmatprep.mubr.bf16.mxu0 0
  %351 = vmatmul.mubr.bf16.gmra.mxu0 %v58
  %v352 = vpop.f32.mrf.mxu0
  %v353 = vadd.f32 0.0, %v352
  %v354 = vpop.f32.mrf.mxu0
  %v355 = vpop.f32.mrf.mxu0
  %v356 = vadd.f32 0.0, %v355
  %v357 = vpop.f32.mrf.mxu0
  %358 = vdwg.mxu0
  %v359 = vld [vmem:[%s4] sm:$0x1]
  %v360 = vmul.f32 %v143, %v143
  %v361 = vmul.f32 %v146, %v146
  %vm362 = vcmask 261120
  %v363 = vsel %vm362, %v360, 0.0
  %364 = vadd.xlane.f32.xlu0 %v363
  %v365 = vpop.xlane.xlu0 %364
  %v366 = vsel %vm362, %v361, 0.0
  %367 = vadd.xlane.f32.xlu0 %v366
  %v368 = vpop.xlane.xlu0 %367
  %v369 = vrcp.pop 32.0
  %v370 = vmul.f32 %v365, %v369
  %v371 = vmul.f32 %v368, %v369
  %v372 = vadd.f32 %v370, 1e-06
  %v373 = vadd.f32 %v371, 1e-06
  %v374 = vrsqrt.pop %v372
  %v375 = vrsqrt.pop %v373
  %v376 = vmul.f32 %v143, %v374
  %v377 = vmul.f32 %v146, %v375
  %v378 = vunpack.c.l.bf16 %v359
  %v379 = vlaneseq
  %v380 = vshrl.u32 %v379, 7
  %v381 = vsub.s32 0, %v380
  %v382 = vrot.slane %v378, %v381
  %v383 = vmul.f32 %v376, %v382
  %v384 = vmul.f32 %v377, %v382
  %v385 = vld [vmem:[%s5] sm:$0x1]
  %v386 = vmul.f32 %v248, %v248
  %v387 = vmul.f32 %v251, %v251
  %v388 = vsel %vm362, %v386, 0.0
  %389 = vadd.xlane.f32.xlu0 %v388
  %v390 = vpop.xlane.xlu0 %389
  %v391 = vsel %vm362, %v387, 0.0
  %392 = vadd.xlane.f32.xlu0 %v391
  %v393 = vpop.xlane.xlu0 %392
  %v394 = vmul.f32 %v390, %v369
  %v395 = vmul.f32 %v393, %v369
  %v396 = vadd.f32 %v394, 1e-06
  %v397 = vadd.f32 %v395, 1e-06
  %v398 = vrsqrt.pop %v396
  %v399 = vrsqrt.pop %v397
  %v400 = vmul.f32 %v248, %v398
  %v401 = vmul.f32 %v251, %v399
  %v402 = vunpack.c.l.bf16 %v385
  %v403 = vlaneseq
  %v404 = vshrl.u32 %v403, 7
  %v405 = vsub.s32 0, %v404
  %v406 = vrot.slane %v402, %v405
  %v407 = vmul.f32 %v400, %v406
  %v408 = vmul.f32 %v401, %v406
  %v409 = vpack.c.bf16 %v356, %v353
  %v410 = vld [vmem:[%s8] sm:$0xf]
  %v411 = vld [vmem:[%s8 + $0x4] sm:$0xf]
  %v414 = vunpack.c.l.b16 %v410
  %v415 = vunpack.c.l.b16 %v411
  %v416 = vpack.c.b16 %v415, %v414
  %vm418 = vcmask 130048
  %v420 = vsel %vm418, %v409, 0
  %422 = vmatprep.subr.bf16.mxu0 0
  %423 = vmatpush1.bf16.msra.mxu0 0
  %424 = vmatprep.subr.bf16.mxu0 0
  %425 = vmatpush1.bf16.msra.mxu0 0
  %426 = vmatprep.subr.bf16.mxu0 0
  %427 = vmatpush1.bf16.msra.mxu0 0
  %428 = vmatprep.subr.bf16.mxu0 0
  %429 = vmatpush1.bf16.msra.mxu0 0
  %430 = vmatprep.subr.bf16.mxu0 0
  %431 = vmatpush1.bf16.msra.mxu0 0
  %432 = vmatprep.subr.bf16.mxu0 0
  %433 = vmatpush1.bf16.msra.mxu0 0
  %434 = vmatprep.subr.bf16.mxu0 0
  %435 = vmatpush1.bf16.msra.mxu0 0
  %436 = vmatprep.subr.bf16.mxu0 0
  %437 = vmatpush1.bf16.msra.mxu0 %v416
  %438 = vmatprep.subr.bf16.mxu0 0
  %439 = vmatpush2.bf16.msra.mxu0 0
  %440 = vmatprep.subr.bf16.mxu0 0
  %441 = vmatpush2.bf16.msra.mxu0 0
  %442 = vmatprep.subr.bf16.mxu0 0
  %443 = vmatpush2.bf16.msra.mxu0 0
  %444 = vmatprep.subr.bf16.mxu0 0
  %445 = vmatpush2.bf16.msra.mxu0 0
  %446 = vmatprep.subr.bf16.mxu0 0
  %447 = vmatpush2.bf16.msra.mxu0 0
  %448 = vmatprep.subr.bf16.mxu0 0
  %449 = vmatpush2.bf16.msra.mxu0 0
  %450 = vmatprep.subr.bf16.mxu0 0
  %451 = vmatpush2.bf16.msra.mxu0 0
  %452 = vmatprep.subr.bf16.mxu0 0
  %453 = vmatpush2.bf16.msra.mxu0 0
  %454 = vmatprep.mubr.bf16.mxu0 0
  %455 = vmatmul.mubr.bf16.gmra.mxu0 %v420
  %v456 = vpop.f32.mrf.mxu0
  %v457 = vadd.f32 0.0, %v456
  %v458 = vpop.f32.mrf.mxu0
  %v459 = vpop.f32.mrf.mxu0
  %v460 = vadd.f32 0.0, %v459
  %v461 = vpop.f32.mrf.mxu0
  %462 = vdwg.mxu0
  %v463 = vld [vmem:[%s6] sm:$0xff]
  %v464 = vld [vmem:[%s6 + $0x8] sm:$0xff]
  %v465 = vmul.f32 %v353, %v463
  %v466 = vmul.f32 %v356, %v464
  %v467 = vld [vmem:[%s7] sm:$0xff]
  %v468 = vld [vmem:[%s7 + $0x8] sm:$0xff]
  %v469 = vmul.f32 %v457, %v467
  %v470 = vmul.f32 %v460, %v468
  %v471 = vadd.f32 %v465, %v469
  %v472 = vadd.f32 %v466, %v470
  %v473 = vpack.c.bf16 %v384, %v383
  %v475 = vunpack.c.l.b16 %v473
  %v476 = vunpack.c.h.b16 %v473
  %v477 = vpack.c.b16 %v475, %v475
  %v478 = vpack.c.b16 %v476, %v476
  %vm481 = vcmask 257024
  %482 = vst.msk [vmem:[%s9] sm:$0xf] %vm481, %v477
  %483 = vst.msk [vmem:[%s9 + $0x4] sm:$0xf] %vm481, %v478
  %v484 = vpack.c.bf16 %v408, %v407
  %v486 = vunpack.c.l.b16 %v484
  %v487 = vunpack.c.h.b16 %v484
  %v488 = vpack.c.b16 %v486, %v486
  %v489 = vpack.c.b16 %v487, %v487
  %492 = vst.msk [vmem:[%s10] sm:$0xf] %vm481, %v488
  %493 = vst.msk [vmem:[%s10 + $0x4] sm:$0xf] %vm481, %v489
  %v494 = vpack.c.bf16 %v472, %v471
  %v496 = vunpack.c.l.b16 %v494
  %v497 = vunpack.c.h.b16 %v494
  %v498 = vpack.c.b16 %v496, %v496
  %v499 = vpack.c.b16 %v497, %v497
  %vm502 = vcmask 125952
  %503 = vst.msk [vmem:[%s11] sm:$0xf] %vm502, %v498
  %504 = vst.msk [vmem:[%s11 + $0x4] sm:$0xf] %vm502, %v499
  // Predicated region
  $region38: #{deepseek_v2_model_forward.12} parent=0 // pred_check
    _
  $region39: #{deepseek_v2_model_forward.12} parent=0 // pred_check_branch
    %506 = sbr.rel (0) target = $region41
  $region40: #{deepseek_v2_model_forward.12} parent=0 // pred_region
    _
  $region41: #{deepseek_v2_model_forward.12} parent=0 // pred_fallthru
    _
  // Predicated region
  $region42: #{deepseek_v2_model_forward.12} parent=0 // pred_check
    _
  $region43: #{deepseek_v2_model_forward.12} parent=0 // pred_check_branch
    %508 = sbr.rel (0) target = $region45
  $region44: #{deepseek_v2_model_forward.12} parent=0 // pred_region
    _
  $region45: #{deepseek_v2_model_forward.12} parent=0 // pred_fallthru
    _
  // Predicated region
  $region46: #{deepseek_v2_model_forward.12} parent=0 // pred_check
    _
  $region47: #{deepseek_v2_model_forward.12} parent=0 // pred_check_branch
    %510 = sbr.rel (0) target = $region49
  $region48: #{deepseek_v2_model_forward.12} parent=0 // pred_region
    _
  $region49: #{deepseek_v2_model_forward.12} parent=0 // pred_fallthru
    _
  // Predicated region
  $region50: #{deepseek_v2_model_forward.12} parent=0 // pred_check
    _
  $region51: #{deepseek_v2_model_forward.12} parent=0 // pred_check_branch
    %512 = sbr.rel (0) target = $region53
  $region52: #{deepseek_v2_model_forward.12} parent=0 // pred_region
    _
  $region53: #{deepseek_v2_model_forward.12} parent=0 // pred_fallthru
    _
  // Predicated region
  $region54: #{deepseek_v2_model_forward.12} parent=0 // pred_check
    _
  $region55: #{deepseek_v2_model_forward.12} parent=0 // pred_check_branch
    %514 = sbr.rel (0) target = $region57
  $region56: #{deepseek_v2_model_forward.12} parent=0 // pred_region
    _
  $region57: #{deepseek_v2_model_forward.12} parent=0 // pred_fallthru
    _
  // Predicated region
  $region58: #{deepseek_v2_model_forward.12} parent=0 // pred_check
    _
  $region59: #{deepseek_v2_model_forward.12} parent=0 // pred_check_branch
    %516 = sbr.rel (0) target = $region61
  $region60: #{deepseek_v2_model_forward.12} parent=0 // pred_region
    _
  $region61: #{deepseek_v2_model_forward.12} parent=0 // pred_fallthru
    _

// kernel: deepseek_v2_model_forward.15
$region0: #{deepseek_v2_model_forward.15}
  #allocation0 [shape = 'u32[]', space=smem, size = 0x4, offset = 0x4, fixed_abs, tag = 'smem constant byte address 0x4 - core index']
  #allocation1 [shape = 'u32[144,128]{1,0:T(1,128)}', space=vmem, size = 0x12000, scoped, tag = 'internal scratch']
  %s0 = inlined_call_operand.vmem [shape: bf16[16,128], index: 0, kind: input, shape index: {}]
  %s1 = inlined_call_operand.vmem [shape: bf16[128,64], index: 1, kind: input, shape index: {}]
  %s2 = inlined_call_operand.vmem [shape: bf16[128,64], index: 2, kind: input, shape index: {}]
  %s3 = inlined_call_operand.vmem [shape: bf16[64,128], index: 3, kind: input, shape index: {}]
  %s4 = inlined_call_operand.vmem [shape: bf16[16,128], index: 4, kind: output, shape index: {}]
  %s5 = sld [smem:[#allocation0]]
  $region26: #{deepseek_v2_model_forward.15} parent=0
    _
  %s7 = ssub.s32 1, %s5
  %s8 = scalar_select 0, %s7, %s5
  // Predicated region
  $region2: #{deepseek_v2_model_forward.15} parent=0 // pred_check
    _
  $region3: #{deepseek_v2_model_forward.15} parent=0 // pred_check_branch
    %10 = sbr.rel (0) target = $region5
  $region4: #{deepseek_v2_model_forward.15} parent=0 // pred_region
    _
  $region5: #{deepseek_v2_model_forward.15} parent=0 // pred_fallthru
    _
  // Predicated region
  $region6: #{deepseek_v2_model_forward.15} parent=0 // pred_check
    _
  $region7: #{deepseek_v2_model_forward.15} parent=0 // pred_check_branch
    %12 = sbr.rel (0) target = $region9
  $region8: #{deepseek_v2_model_forward.15} parent=0 // pred_region
    _
  $region9: #{deepseek_v2_model_forward.15} parent=0 // pred_fallthru
    _
  // Predicated region
  $region10: #{deepseek_v2_model_forward.15} parent=0 // pred_check
    _
  $region11: #{deepseek_v2_model_forward.15} parent=0 // pred_check_branch
    %14 = sbr.rel (0) target = $region13
  $region12: #{deepseek_v2_model_forward.15} parent=0 // pred_region
    _
  $region13: #{deepseek_v2_model_forward.15} parent=0 // pred_fallthru
    _
  // Predicated region
  $region14: #{deepseek_v2_model_forward.15} parent=0 // pred_check
    _
  $region15: #{deepseek_v2_model_forward.15} parent=0 // pred_check_branch
    %16 = sbr.rel (0) target = $region17
  $region16: #{deepseek_v2_model_forward.15} parent=0 // pred_region
    _
  $region17: #{deepseek_v2_model_forward.15} parent=0 // pred_fallthru
    _
  %v18 = vld [vmem:[%s0] sm:$0xf]
  %v19 = vld [vmem:[%s0 + $0x4] sm:$0xf]
  %v20 = vld [vmem:[%s1] sm:$0xf]
  %v21 = vld [vmem:[%s1 + $0x4] sm:$0xf]
  %v22 = vld [vmem:[%s1 + $0x8] sm:$0xf]
  %v23 = vld [vmem:[%s1 + $0xc] sm:$0xf]
  %v24 = vld [vmem:[%s1 + $0x10] sm:$0xf]
  %v25 = vld [vmem:[%s1 + $0x14] sm:$0xf]
  %v26 = vld [vmem:[%s1 + $0x18] sm:$0xf]
  %v27 = vld [vmem:[%s1 + $0x1c] sm:$0xf]
  %v28 = vld [vmem:[%s1 + $0x20] sm:$0xf]
  %v29 = vld [vmem:[%s1 + $0x24] sm:$0xf]
  %v30 = vld [vmem:[%s1 + $0x28] sm:$0xf]
  %v31 = vld [vmem:[%s1 + $0x2c] sm:$0xf]
  %v32 = vld [vmem:[%s1 + $0x30] sm:$0xf]
  %v33 = vld [vmem:[%s1 + $0x34] sm:$0xf]
  %v34 = vld [vmem:[%s1 + $0x38] sm:$0xf]
  %v35 = vld [vmem:[%s1 + $0x3c] sm:$0xf]
  %v38 = vunpack.c.l.b16 %v18
  %v39 = vunpack.c.l.b16 %v19
  %v40 = vpack.c.b16 %v39, %v38
  %v58 = vunpack.c.l.b16 %v20
  %v59 = vunpack.c.l.b16 %v21
  %v60 = vunpack.c.l.b16 %v22
  %v61 = vunpack.c.l.b16 %v23
  %v62 = vunpack.c.l.b16 %v24
  %v63 = vunpack.c.l.b16 %v25
  %v64 = vunpack.c.l.b16 %v26
  %v65 = vunpack.c.l.b16 %v27
  %v66 = vunpack.c.l.b16 %v28
  %v67 = vunpack.c.l.b16 %v29
  %v68 = vunpack.c.l.b16 %v30
  %v69 = vunpack.c.l.b16 %v31
  %v70 = vunpack.c.l.b16 %v32
  %v71 = vunpack.c.l.b16 %v33
  %v72 = vunpack.c.l.b16 %v34
  %v73 = vunpack.c.l.b16 %v35
  %v74 = vpack.c.b16 %v59, %v58
  %v75 = vpack.c.b16 %v61, %v60
  %v76 = vpack.c.b16 %v63, %v62
  %v77 = vpack.c.b16 %v65, %v64
  %v78 = vpack.c.b16 %v67, %v66
  %v79 = vpack.c.b16 %v69, %v68
  %v80 = vpack.c.b16 %v71, %v70
  %v81 = vpack.c.b16 %v73, %v72
  %90 = vmatprep.subr.bf16.mxu0 0
  %91 = vmatpush1.bf16.msra.mxu0 %v81
  %92 = vmatprep.subr.bf16.mxu0 0
  %93 = vmatpush1.bf16.msra.mxu0 %v80
  %94 = vmatprep.subr.bf16.mxu0 0
  %95 = vmatpush1.bf16.msra.mxu0 %v79
  %96 = vmatprep.subr.bf16.mxu0 0
  %97 = vmatpush1.bf16.msra.mxu0 %v78
  %98 = vmatprep.subr.bf16.mxu0 0
  %99 = vmatpush1.bf16.msra.mxu0 %v77
  %100 = vmatprep.subr.bf16.mxu0 0
  %101 = vmatpush1.bf16.msra.mxu0 %v76
  %102 = vmatprep.subr.bf16.mxu0 0
  %103 = vmatpush1.bf16.msra.mxu0 %v75
  %104 = vmatprep.subr.bf16.mxu0 0
  %105 = vmatpush1.bf16.msra.mxu0 %v74
  %106 = vmatprep.subr.bf16.mxu0 0
  %107 = vmatpush2.bf16.msra.mxu0 0
  %108 = vmatprep.subr.bf16.mxu0 0
  %109 = vmatpush2.bf16.msra.mxu0 0
  %110 = vmatprep.subr.bf16.mxu0 0
  %111 = vmatpush2.bf16.msra.mxu0 0
  %112 = vmatprep.subr.bf16.mxu0 0
  %113 = vmatpush2.bf16.msra.mxu0 0
  %114 = vmatprep.subr.bf16.mxu0 0
  %115 = vmatpush2.bf16.msra.mxu0 0
  %116 = vmatprep.subr.bf16.mxu0 0
  %117 = vmatpush2.bf16.msra.mxu0 0
  %118 = vmatprep.subr.bf16.mxu0 0
  %119 = vmatpush2.bf16.msra.mxu0 0
  %120 = vmatprep.subr.bf16.mxu0 0
  %121 = vmatpush2.bf16.msra.mxu0 0
  %122 = vmatprep.mubr.bf16.mxu0 0
  %123 = vmatmul.mubr.bf16.gmra.mxu0 %v40
  %v124 = vpop.f32.mrf.mxu0
  %v125 = vadd.f32 0.0, %v124
  %v126 = vpop.f32.mrf.mxu0
  %v127 = vpop.f32.mrf.mxu0
  %v128 = vadd.f32 0.0, %v127
  %v129 = vpop.f32.mrf.mxu0
  %130 = vdwg.mxu0
  %v131 = vld [vmem:[%s2] sm:$0xf]
  %v132 = vld [vmem:[%s2 + $0x4] sm:$0xf]
  %v133 = vld [vmem:[%s2 + $0x8] sm:$0xf]
  %v134 = vld [vmem:[%s2 + $0xc] sm:$0xf]
  %v135 = vld [vmem:[%s2 + $0x10] sm:$0xf]
  %v136 = vld [vmem:[%s2 + $0x14] sm:$0xf]
  %v137 = vld [vmem:[%s2 + $0x18] sm:$0xf]
  %v138 = vld [vmem:[%s2 + $0x1c] sm:$0xf]
  %v139 = vld [vmem:[%s2 + $0x20] sm:$0xf]
  %v140 = vld [vmem:[%s2 + $0x24] sm:$0xf]
  %v141 = vld [vmem:[%s2 + $0x28] sm:$0xf]
  %v142 = vld [vmem:[%s2 + $0x2c] sm:$0xf]
  %v143 = vld [vmem:[%s2 + $0x30] sm:$0xf]
  %v144 = vld [vmem:[%s2 + $0x34] sm:$0xf]
  %v145 = vld [vmem:[%s2 + $0x38] sm:$0xf]
  %v146 = vld [vmem:[%s2 + $0x3c] sm:$0xf]
  %v163 = vunpack.c.l.b16 %v131
  %v164 = vunpack.c.l.b16 %v132
  %v165 = vunpack.c.l.b16 %v133
  %v166 = vunpack.c.l.b16 %v134
  %v167 = vunpack.c.l.b16 %v135
  %v168 = vunpack.c.l.b16 %v136
  %v169 = vunpack.c.l.b16 %v137
  %v170 = vunpack.c.l.b16 %v138
  %v171 = vunpack.c.l.b16 %v139
  %v172 = vunpack.c.l.b16 %v140
  %v173 = vunpack.c.l.b16 %v141
  %v174 = vunpack.c.l.b16 %v142
  %v175 = vunpack.c.l.b16 %v143
  %v176 = vunpack.c.l.b16 %v144
  %v177 = vunpack.c.l.b16 %v145
  %v178 = vunpack.c.l.b16 %v146
  %v179 = vpack.c.b16 %v164, %v163
  %v180 = vpack.c.b16 %v166, %v165
  %v181 = vpack.c.b16 %v168, %v167
  %v182 = vpack.c.b16 %v170, %v169
  %v183 = vpack.c.b16 %v172, %v171
  %v184 = vpack.c.b16 %v174, %v173
  %v185 = vpack.c.b16 %v176, %v175
  %v186 = vpack.c.b16 %v178, %v177
  %195 = vmatprep.subr.bf16.mxu0 0
  %196 = vmatpush1.bf16.msra.mxu0 %v186
  %197 = vmatprep.subr.bf16.mxu0 0
  %198 = vmatpush1.bf16.msra.mxu0 %v185
  %199 = vmatprep.subr.bf16.mxu0 0
  %200 = vmatpush1.bf16.msra.mxu0 %v184
  %201 = vmatprep.subr.bf16.mxu0 0
  %202 = vmatpush1.bf16.msra.mxu0 %v183
  %203 = vmatprep.subr.bf16.mxu0 0
  %204 = vmatpush1.bf16.msra.mxu0 %v182
  %205 = vmatprep.subr.bf16.mxu0 0
  %206 = vmatpush1.bf16.msra.mxu0 %v181
  %207 = vmatprep.subr.bf16.mxu0 0
  %208 = vmatpush1.bf16.msra.mxu0 %v180
  %209 = vmatprep.subr.bf16.mxu0 0
  %210 = vmatpush1.bf16.msra.mxu0 %v179
  %211 = vmatprep.subr.bf16.mxu0 0
  %212 = vmatpush2.bf16.msra.mxu0 0
  %213 = vmatprep.subr.bf16.mxu0 0
  %214 = vmatpush2.bf16.msra.mxu0 0
  %215 = vmatprep.subr.bf16.mxu0 0
  %216 = vmatpush2.bf16.msra.mxu0 0
  %217 = vmatprep.subr.bf16.mxu0 0
  %218 = vmatpush2.bf16.msra.mxu0 0
  %219 = vmatprep.subr.bf16.mxu0 0
  %220 = vmatpush2.bf16.msra.mxu0 0
  %221 = vmatprep.subr.bf16.mxu0 0
  %222 = vmatpush2.bf16.msra.mxu0 0
  %223 = vmatprep.subr.bf16.mxu0 0
  %224 = vmatpush2.bf16.msra.mxu0 0
  %225 = vmatprep.subr.bf16.mxu0 0
  %226 = vmatpush2.bf16.msra.mxu0 0
  %227 = vmatprep.mubr.bf16.mxu0 0
  %228 = vmatmul.mubr.bf16.gmra.mxu0 %v40
  %v229 = vpop.f32.mrf.mxu0
  %v230 = vadd.f32 0.0, %v229
  %v231 = vpop.f32.mrf.mxu0
  %v232 = vpop.f32.mrf.mxu0
  %v233 = vadd.f32 0.0, %v232
  %v234 = vpop.f32.mrf.mxu0
  %235 = vdwg.mxu0
  %v236 = vxor.u32 %v125, 2147483648
  %v237 = vxor.u32 %v128, 2147483648
  %v238 = vmul.f32 %v236, 1.442695
  %v239 = vpow.pop %v238
  %v240 = vmul.f32 %v237, 1.442695
  %v241 = vpow.pop %v240
  %v242 = vadd.f32 %v239, 1.0
  %v243 = vadd.f32 %v241, 1.0
  %v244 = vrcp.pop %v242
  %v245 = vmul.f32 1.0, %v244
  %v246 = vrcp.pop %v243
  %v247 = vmul.f32 1.0, %v246
  %v248 = vmul.f32 %v125, %v245
  %v249 = vmul.f32 %v128, %v247
  %v250 = vmul.f32 %v248, %v230
  %v251 = vmul.f32 %v249, %v233
  %v252 = vpack.c.bf16 %v251, %v250
  %v253 = vld [vmem:[%s3] sm:$0xf]
  %v254 = vld [vmem:[%s3 + $0x4] sm:$0xf]
  %v255 = vld [vmem:[%s3 + $0x8] sm:$0xf]
  %v256 = vld [vmem:[%s3 + $0xc] sm:$0xf]
  %v257 = vld [vmem:[%s3 + $0x10] sm:$0xf]
  %v258 = vld [vmem:[%s3 + $0x14] sm:$0xf]
  %v259 = vld [vmem:[%s3 + $0x18] sm:$0xf]
  %v260 = vld [vmem:[%s3 + $0x1c] sm:$0xf]
  %v269 = vunpack.c.l.b16 %v253
  %v270 = vunpack.c.l.b16 %v254
  %v271 = vunpack.c.l.b16 %v255
  %v272 = vunpack.c.l.b16 %v256
  %v273 = vunpack.c.l.b16 %v257
  %v274 = vunpack.c.l.b16 %v258
  %v275 = vunpack.c.l.b16 %v259
  %v276 = vunpack.c.l.b16 %v260
  %v277 = vpack.c.b16 %v270, %v269
  %v278 = vpack.c.b16 %v272, %v271
  %v279 = vpack.c.b16 %v274, %v273
  %v280 = vpack.c.b16 %v276, %v275
  %vm285 = vcmask 523264
  %v287 = vsel %vm285, %v252, 0
  %289 = vmatprep.subr.bf16.mxu0 0
  %290 = vmatpush1.bf16.msra.mxu0 0
  %291 = vmatprep.subr.bf16.mxu0 0
  %292 = vmatpush1.bf16.msra.mxu0 0
  %293 = vmatprep.subr.bf16.mxu0 0
  %294 = vmatpush1.bf16.msra.mxu0 0
  %295 = vmatprep.subr.bf16.mxu0 0
  %296 = vmatpush1.bf16.msra.mxu0 0
  %297 = vmatprep.subr.bf16.mxu0 0
  %298 = vmatpush1.bf16.msra.mxu0 %v280
  %299 = vmatprep.subr.bf16.mxu0 0
  %300 = vmatpush1.bf16.msra.mxu0 %v279
  %301 = vmatprep.subr.bf16.mxu0 0
  %302 = vmatpush1.bf16.msra.mxu0 %v278
  %303 = vmatprep.subr.bf16.mxu0 0
  %304 = vmatpush1.bf16.msra.mxu0 %v277
  %305 = vmatprep.subr.bf16.mxu0 0
  %306 = vmatpush2.bf16.msra.mxu0 0
  %307 = vmatprep.subr.bf16.mxu0 0
  %308 = vmatpush2.bf16.msra.mxu0 0
  %309 = vmatprep.subr.bf16.mxu0 0
  %310 = vmatpush2.bf16.msra.mxu0 0
  %311 = vmatprep.subr.bf16.mxu0 0
  %312 = vmatpush2.bf16.msra.mxu0 0
  %313 = vmatprep.subr.bf16.mxu0 0
  %314 = vmatpush2.bf16.msra.mxu0 0
  %315 = vmatprep.subr.bf16.mxu0 0
  %316 = vmatpush2.bf16.msra.mxu0 0
  %317 = vmatprep.subr.bf16.mxu0 0
  %318 = vmatpush2.bf16.msra.mxu0 0
  %319 = vmatprep.subr.bf16.mxu0 0
  %320 = vmatpush2.bf16.msra.mxu0 0
  %321 = vmatprep.mubr.bf16.mxu0 0
  %322 = vmatmul.mubr.bf16.gmra.mxu0 %v287
  %v323 = vpop.f32.mrf.mxu0
  %v324 = vadd.f32 0.0, %v323
  %v325 = vpop.f32.mrf.mxu0
  %v326 = vpop.f32.mrf.mxu0
  %v327 = vadd.f32 0.0, %v326
  %v328 = vpop.f32.mrf.mxu0
  %329 = vdwg.mxu0
  %v330 = vpack.c.bf16 %v327, %v324
  %v332 = vunpack.c.l.b16 %v330
  %v333 = vunpack.c.h.b16 %v330
  %v334 = vpack.c.b16 %v332, %v332
  %v335 = vpack.c.b16 %v333, %v333
  %338 = vst [vmem:[%s4] sm:$0xf] %v334
  %339 = vst [vmem:[%s4 + $0x4] sm:$0xf] %v335
  // Predicated region
  $region18: #{deepseek_v2_model_forward.15} parent=0 // pred_check
    _
  $region19: #{deepseek_v2_model_forward.15} parent=0 // pred_check_branch
    %341 = sbr.rel (0) target = $region21
  $region20: #{deepseek_v2_model_forward.15} parent=0 // pred_region
    _
  $region21: #{deepseek_v2_model_forward.15} parent=0 // pred_fallthru
    _
  // Predicated region
  $region22: #{deepseek_v2_model_forward.15} parent=0 // pred_check
    _
  $region23: #{deepseek_v2_model_forward.15} parent=0 // pred_check_branch
    %343 = sbr.rel (0) target = $region25
  $region24: #{deepseek_v2_model_forward.15} parent=0 // pred_region
    _
  $region25: #{deepseek_v2_model_forward.15} parent=0 // pred_fallthru
    _

// kernel: deepseek_v2_model_forward.13
$region0: #{deepseek_v2_model_forward.13}
  #allocation0 [shape = 'u32[]', space=smem, size = 0x4, offset = 0x4, fixed_abs, tag = 'smem constant byte address 0x4 - core index']
  #allocation1 [shape = 'u32[144,128]{1,0:T(1,128)}', space=vmem, size = 0x12000, scoped, tag = 'internal scratch']
  #allocation2 [shape = 'f32[8,128]{1,0:T(8,128)}', space=vmem, size = 0x1000, scoped, tag = 'scratch operand']
  %s0 = inlined_call_operand.vmem [shape: bf16[2,8,32], index: 0, kind: input, shape index: {}]
  %s1 = inlined_call_operand.vmem [shape: bf16[2,8,32], index: 1, kind: input, shape index: {}]
  %s2 = inlined_call_operand.vmem [shape: bf16[2,8,16], index: 2, kind: input, shape index: {}]
  %s3 = inlined_call_operand.vmem [shape: f32[8,16], index: 3, kind: input, shape index: {}]
  %s4 = inlined_call_operand.vmem [shape: f32[8,16], index: 4, kind: input, shape index: {}]
  %s5 = inlined_call_operand.vmem [shape: bf16[16,16], index: 5, kind: input, shape index: {}]
  %s6 = inlined_call_operand.vmem [shape: bf16[2,32,32], index: 6, kind: input, shape index: {}]
  %s7 = inlined_call_operand.vmem [shape: bf16[2,32,16], index: 7, kind: input, shape index: {}]
  %s8 = inlined_call_operand.vmem [shape: bf16[2,32,32], index: 8, kind: input, shape index: {}]
  %s9 = inlined_call_operand.vmem [shape: bf16[2,32,32], index: 9, kind: input, shape index: {}]
  %s10 = inlined_call_operand.vmem [shape: bf16[2,32,128], index: 10, kind: input, shape index: {}]
  %s11 = inlined_call_operand.vmem [shape: bf16[2,8,128], index: 11, kind: output, shape index: {}]
  %s12 = sld [smem:[#allocation0]]
  $region85: #{deepseek_v2_model_forward.13} parent=0
    _
  %s14 = ssub.s32 1, %s12
  %s15 = scalar_select 0, %s14, %s12
  loop: start=0, step=1, limit=6
  $region2: #{deepseek_v2_model_forward.13} parent=0 // loop_pre_header
    _
  $region3: #{deepseek_v2_model_forward.13} parent=0 // loop_header
    %s17 = sphi 0, %s21
    %p18 = scmp.ge.s32.totalorder %s17, 6
    %s24 = sphi 0, %s36
    %s25 = sphi 0, %s32
    %s26 = sphi 0, %s24
    %s27 = sphi 0, %s25
    %s28 = sphi 0, %s26
    %s29 = sphi 0, %s27
    %s39 = sphi 0, %s41
    %s42 = sphi 0, %s39
    %s43 = sphi 0, %s42
    %s59 = sphi 0, %s43
    %s65 = sphi 0, %s67
    %s68 = sphi 0, %s65
    %s69 = sphi 0, %s68
    %s85 = sphi 0, %s69
    %s91 = sphi 0, %s93
    %s94 = sphi 0, %s91
    %s95 = sphi 0, %s94
    %s111 = sphi 0, %s95
    %s115 = sphi 0, %s115
    %s117 = sphi 0, %s115
    %s118 = sphi 0, %s117
    %s132 = sphi 0, %s118
    %s136 = sphi 0, %s136
    %s138 = sphi 0, %s136
    %s139 = sphi 0, %s138
    %s153 = sphi 0, %s139
    %s157 = sphi 0, %s157
    %s159 = sphi 0, %s157
    %s160 = sphi 0, %s159
    %s174 = sphi 0, %s160
    %s180 = sphi 0, %s182
    %s183 = sphi 0, %s180
    %s184 = sphi 0, %s183
    %s200 = sphi 0, %s184
    %s206 = sphi 0, %s208
    %s209 = sphi 0, %s206
    %s210 = sphi 0, %s209
    %s226 = sphi 0, %s210
    %s232 = sphi 0, %s234
    %s235 = sphi 0, %s232
    %s236 = sphi 0, %s235
    %s252 = sphi 0, %s236
    %s258 = sphi 0, %s260
    %s261 = sphi 0, %s258
    %s262 = sphi 0, %s261
    %s278 = sphi 0, %s262
    %s284 = sphi 0, %s286
    %s287 = sphi 0, %s284
    %s288 = sphi 0, %s287
    %s304 = sphi 0, %s288
    %s310 = sphi 0, %s312
    %s313 = sphi 0, %s310
    %s314 = sphi 0, %s313
    %s330 = sphi 0, %s314
  $region4: #{deepseek_v2_model_forward.13} parent=0 // loop_header_branch
    %20 = sbr.rel (%p18) target = $region8
  $region5: #{deepseek_v2_model_forward.13} parent=0 // loop_body
    %s22 = ssub.s32 %s17, 1
    %s23 = ssub.s32 %s17, 2
    %s30 = sadd.s32 1, %s25
    %p31 = scmp.ge.s32.totalorder %s30, 2
    %s32 = scalar_select %p31, 0, %s30
    %s33 = sadd.s32 1, %s24
    %s34 = scalar_select %p31, %s33, %s24
    %p35 = scmp.ge.s32.totalorder %s34, 2
    %s36 = scalar_select %p35, 0, %s34
    %s37 = ssub.s32 %s24, %s36
    %p38 = scmp.eq.s32.totalorder %s37, 0
    %s40 = sadd.s32 %s39, 1
    %s41 = scalar_select %p38, %s39, %s40
    %p44 = pneg %p38
    %p45 = scmp.eq.s32.totalorder %s17, 3
    %p46 = por %p44, %p45
    %p47 = scmp.ne.s32.totalorder %s39, %s42
    %p48 = scmp.eq.s32.totalorder %s17, 0
    %p49 = por %p47, %p48
    %p50 = scmp.ne.s32.totalorder %s39, %s42
    %p51 = scmp.eq.s32.totalorder %s22, 3
    %p52 = por %p50, %p51
    %p53 = scmp.ne.s32.totalorder %s42, %s43
    %p54 = scmp.eq.s32.totalorder %s22, 0
    %p55 = por %p53, %p54
    %p56 = scmp.ne.s32.totalorder %s42, %s43
    %p57 = scmp.eq.s32.totalorder %s23, 3
    %p58 = por %p56, %p57
    %p60 = scmp.ne.s32.totalorder %s43, %s59
    %p61 = scmp.eq.s32.totalorder %s23, 0
    %p62 = por %p60, %p61
    %s63 = ssub.s32 %s24, %s36
    %p64 = scmp.eq.s32.totalorder %s63, 0
    %s66 = sadd.s32 %s65, 1
    %s67 = scalar_select %p64, %s65, %s66
    %p70 = pneg %p64
    %p71 = scmp.eq.s32.totalorder %s17, 3
    %p72 = por %p70, %p71
    %p73 = scmp.ne.s32.totalorder %s65, %s68
    %p74 = scmp.eq.s32.totalorder %s17, 0
    %p75 = por %p73, %p74
    %p76 = scmp.ne.s32.totalorder %s65, %s68
    %p77 = scmp.eq.s32.totalorder %s22, 3
    %p78 = por %p76, %p77
    %p79 = scmp.ne.s32.totalorder %s68, %s69
    %p80 = scmp.eq.s32.totalorder %s22, 0
    %p81 = por %p79, %p80
    %p82 = scmp.ne.s32.totalorder %s68, %s69
    %p83 = scmp.eq.s32.totalorder %s23, 3
    %p84 = por %p82, %p83
    %p86 = scmp.ne.s32.totalorder %s69, %s85
    %p87 = scmp.eq.s32.totalorder %s23, 0
    %p88 = por %p86, %p87
    %s89 = ssub.s32 %s24, %s36
    %p90 = scmp.eq.s32.totalorder %s89, 0
    %s92 = sadd.s32 %s91, 1
    %s93 = scalar_select %p90, %s91, %s92
    %p96 = pneg %p90
    %p97 = scmp.eq.s32.totalorder %s17, 3
    %p98 = por %p96, %p97
    %p99 = scmp.ne.s32.totalorder %s91, %s94
    %p100 = scmp.eq.s32.totalorder %s17, 0
    %p101 = por %p99, %p100
    %p102 = scmp.ne.s32.totalorder %s91, %s94
    %p103 = scmp.eq.s32.totalorder %s22, 3
    %p104 = por %p102, %p103
    %p105 = scmp.ne.s32.totalorder %s94, %s95
    %p106 = scmp.eq.s32.totalorder %s22, 0
    %p107 = por %p105, %p106
    %p108 = scmp.ne.s32.totalorder %s94, %s95
    %p109 = scmp.eq.s32.totalorder %s23, 3
    %p110 = por %p108, %p109
    %p112 = scmp.ne.s32.totalorder %s95, %s111
    %p113 = scmp.eq.s32.totalorder %s23, 0
    %p114 = por %p112, %p113
    %s116 = sadd.s32 %s115, 1
    %p119 = scmp.eq.s32.totalorder %s17, 3
    %p120 = scmp.ne.s32.totalorder %s115, %s117
    %p121 = scmp.eq.s32.totalorder %s17, 0
    %p122 = por %p120, %p121
    %p123 = scmp.ne.s32.totalorder %s115, %s117
    %p124 = scmp.eq.s32.totalorder %s22, 3
    %p125 = por %p123, %p124
    %p126 = scmp.ne.s32.totalorder %s117, %s118
    %p127 = scmp.eq.s32.totalorder %s22, 0
    %p128 = por %p126, %p127
    %p129 = scmp.ne.s32.totalorder %s117, %s118
    %p130 = scmp.eq.s32.totalorder %s23, 3
    %p131 = por %p129, %p130
    %p133 = scmp.ne.s32.totalorder %s118, %s132
    %p134 = scmp.eq.s32.totalorder %s23, 0
    %p135 = por %p133, %p134
    %s137 = sadd.s32 %s136, 1
    %p140 = scmp.eq.s32.totalorder %s17, 3
    %p141 = scmp.ne.s32.totalorder %s136, %s138
    %p142 = scmp.eq.s32.totalorder %s17, 0
    %p143 = por %p141, %p142
    %p144 = scmp.ne.s32.totalorder %s136, %s138
    %p145 = scmp.eq.s32.totalorder %s22, 3
    %p146 = por %p144, %p145
    %p147 = scmp.ne.s32.totalorder %s138, %s139
    %p148 = scmp.eq.s32.totalorder %s22, 0
    %p149 = por %p147, %p148
    %p150 = scmp.ne.s32.totalorder %s138, %s139
    %p151 = scmp.eq.s32.totalorder %s23, 3
    %p152 = por %p150, %p151
    %p154 = scmp.ne.s32.totalorder %s139, %s153
    %p155 = scmp.eq.s32.totalorder %s23, 0
    %p156 = por %p154, %p155
    %s158 = sadd.s32 %s157, 1
    %p161 = scmp.eq.s32.totalorder %s17, 3
    %p162 = scmp.ne.s32.totalorder %s157, %s159
    %p163 = scmp.eq.s32.totalorder %s17, 0
    %p164 = por %p162, %p163
    %p165 = scmp.ne.s32.totalorder %s157, %s159
    %p166 = scmp.eq.s32.totalorder %s22, 3
    %p167 = por %p165, %p166
    %p168 = scmp.ne.s32.totalorder %s159, %s160
    %p169 = scmp.eq.s32.totalorder %s22, 0
    %p170 = por %p168, %p169
    %p171 = scmp.ne.s32.totalorder %s159, %s160
    %p172 = scmp.eq.s32.totalorder %s23, 3
    %p173 = por %p171, %p172
    %p175 = scmp.ne.s32.totalorder %s160, %s174
    %p176 = scmp.eq.s32.totalorder %s23, 0
    %p177 = por %p175, %p176
    %s178 = ssub.s32 %s25, %s32
    %p179 = scmp.eq.s32.totalorder %s178, 0
    %s181 = sadd.s32 %s180, 1
    %s182 = scalar_select %p179, %s180, %s181
    %p185 = pneg %p179
    %p186 = scmp.eq.s32.totalorder %s17, 3
    %p187 = por %p185, %p186
    %p188 = scmp.ne.s32.totalorder %s180, %s183
    %p189 = scmp.eq.s32.totalorder %s17, 0
    %p190 = por %p188, %p189
    %p191 = scmp.ne.s32.totalorder %s180, %s183
    %p192 = scmp.eq.s32.totalorder %s22, 3
    %p193 = por %p191, %p192
    %p194 = scmp.ne.s32.totalorder %s183, %s184
    %p195 = scmp.eq.s32.totalorder %s22, 0
    %p196 = por %p194, %p195
    %p197 = scmp.ne.s32.totalorder %s183, %s184
    %p198 = scmp.eq.s32.totalorder %s23, 3
    %p199 = por %p197, %p198
    %p201 = scmp.ne.s32.totalorder %s184, %s200
    %p202 = scmp.eq.s32.totalorder %s23, 0
    %p203 = por %p201, %p202
    %s204 = ssub.s32 %s25, %s32
    %p205 = scmp.eq.s32.totalorder %s204, 0
    %s207 = sadd.s32 %s206, 1
    %s208 = scalar_select %p205, %s206, %s207
    %p211 = pneg %p205
    %p212 = scmp.eq.s32.totalorder %s17, 3
    %p213 = por %p211, %p212
    %p214 = scmp.ne.s32.totalorder %s206, %s209
    %p215 = scmp.eq.s32.totalorder %s17, 0
    %p216 = por %p214, %p215
    %p217 = scmp.ne.s32.totalorder %s206, %s209
    %p218 = scmp.eq.s32.totalorder %s22, 3
    %p219 = por %p217, %p218
    %p220 = scmp.ne.s32.totalorder %s209, %s210
    %p221 = scmp.eq.s32.totalorder %s22, 0
    %p222 = por %p220, %p221
    %p223 = scmp.ne.s32.totalorder %s209, %s210
    %p224 = scmp.eq.s32.totalorder %s23, 3
    %p225 = por %p223, %p224
    %p227 = scmp.ne.s32.totalorder %s210, %s226
    %p228 = scmp.eq.s32.totalorder %s23, 0
    %p229 = por %p227, %p228
    %s230 = ssub.s32 %s25, %s32
    %p231 = scmp.eq.s32.totalorder %s230, 0
    %s233 = sadd.s32 %s232, 1
    %s234 = scalar_select %p231, %s232, %s233
    %p237 = pneg %p231
    %p238 = scmp.eq.s32.totalorder %s17, 3
    %p239 = por %p237, %p238
    %p240 = scmp.ne.s32.totalorder %s232, %s235
    %p241 = scmp.eq.s32.totalorder %s17, 0
    %p242 = por %p240, %p241
    %p243 = scmp.ne.s32.totalorder %s232, %s235
    %p244 = scmp.eq.s32.totalorder %s22, 3
    %p245 = por %p243, %p244
    %p246 = scmp.ne.s32.totalorder %s235, %s236
    %p247 = scmp.eq.s32.totalorder %s22, 0
    %p248 = por %p246, %p247
    %p249 = scmp.ne.s32.totalorder %s235, %s236
    %p250 = scmp.eq.s32.totalorder %s23, 3
    %p251 = por %p249, %p250
    %p253 = scmp.ne.s32.totalorder %s236, %s252
    %p254 = scmp.eq.s32.totalorder %s23, 0
    %p255 = por %p253, %p254
    %s256 = ssub.s32 %s25, %s32
    %p257 = scmp.eq.s32.totalorder %s256, 0
    %s259 = sadd.s32 %s258, 1
    %s260 = scalar_select %p257, %s258, %s259
    %p263 = pneg %p257
    %p264 = scmp.eq.s32.totalorder %s17, 3
    %p265 = por %p263, %p264
    %p266 = scmp.ne.s32.totalorder %s258, %s261
    %p267 = scmp.eq.s32.totalorder %s17, 0
    %p268 = por %p266, %p267
    %p269 = scmp.ne.s32.totalorder %s258, %s261
    %p270 = scmp.eq.s32.totalorder %s22, 3
    %p271 = por %p269, %p270
    %p272 = scmp.ne.s32.totalorder %s261, %s262
    %p273 = scmp.eq.s32.totalorder %s22, 0
    %p274 = por %p272, %p273
    %p275 = scmp.ne.s32.totalorder %s261, %s262
    %p276 = scmp.eq.s32.totalorder %s23, 3
    %p277 = por %p275, %p276
    %p279 = scmp.ne.s32.totalorder %s262, %s278
    %p280 = scmp.eq.s32.totalorder %s23, 0
    %p281 = por %p279, %p280
    %s282 = ssub.s32 %s25, %s32
    %p283 = scmp.eq.s32.totalorder %s282, 0
    %s285 = sadd.s32 %s284, 1
    %s286 = scalar_select %p283, %s284, %s285
    %p289 = pneg %p283
    %p290 = scmp.eq.s32.totalorder %s17, 3
    %p291 = por %p289, %p290
    %p292 = scmp.ne.s32.totalorder %s284, %s287
    %p293 = scmp.eq.s32.totalorder %s17, 0
    %p294 = por %p292, %p293
    %p295 = scmp.ne.s32.totalorder %s284, %s287
    %p296 = scmp.eq.s32.totalorder %s22, 3
    %p297 = por %p295, %p296
    %p298 = scmp.ne.s32.totalorder %s287, %s288
    %p299 = scmp.eq.s32.totalorder %s22, 0
    %p300 = por %p298, %p299
    %p301 = scmp.ne.s32.totalorder %s287, %s288
    %p302 = scmp.eq.s32.totalorder %s23, 3
    %p303 = por %p301, %p302
    %p305 = scmp.ne.s32.totalorder %s288, %s304
    %p306 = scmp.eq.s32.totalorder %s23, 0
    %p307 = por %p305, %p306
    %s308 = ssub.s32 %s24, %s36
    %p309 = scmp.eq.s32.totalorder %s308, 0
    %s311 = sadd.s32 %s310, 1
    %s312 = scalar_select %p309, %s310, %s311
    %p315 = pneg %p309
    %p316 = scmp.eq.s32.totalorder %s17, 3
    %p317 = por %p315, %p316
    %p318 = scmp.ne.s32.totalorder %s310, %s313
    %p319 = scmp.eq.s32.totalorder %s17, 0
    %p320 = por %p318, %p319
    %p321 = scmp.ne.s32.totalorder %s310, %s313
    %p322 = scmp.eq.s32.totalorder %s22, 3
    %p323 = por %p321, %p322
    %p324 = scmp.ne.s32.totalorder %s313, %s314
    %p325 = scmp.eq.s32.totalorder %s22, 0
    %p326 = por %p324, %p325
    %p327 = scmp.ne.s32.totalorder %s313, %s314
    %p328 = scmp.eq.s32.totalorder %s23, 3
    %p329 = por %p327, %p328
    %p331 = scmp.ne.s32.totalorder %s314, %s330
    %p332 = scmp.eq.s32.totalorder %s23, 0
    %p333 = por %p331, %p332
    %p334 = scmp.le.s32.totalorder 1, %s17
    %p335 = scmp.lt.s32.totalorder %s17, 5
    %p336 = pnand %p334, %p335
    %p337 = pneg %p336
    // Predicated region
    $region9: #{deepseek_v2_model_forward.13} parent=5 // pred_check
      _
    $region10: #{deepseek_v2_model_forward.13} parent=5 // pred_check_branch
      %339 = sbr.rel (%p336) target = $region12
    $region11: #{deepseek_v2_model_forward.13} parent=5 // pred_region
      %s340 = ssub.s32 %s17, 1
      // Predicated region
      $region13: #{deepseek_v2_model_forward.13} parent=11 // pred_check
        %p341 = pneg %p128
      $region14: #{deepseek_v2_model_forward.13} parent=11 // pred_check_branch
        %343 = sbr.rel (%p341) target = $region16
      $region15: #{deepseek_v2_model_forward.13} parent=11 // pred_region
        _
      $region16: #{deepseek_v2_model_forward.13} parent=11 // pred_fallthru
        _
      // Predicated region
      $region17: #{deepseek_v2_model_forward.13} parent=11 // pred_check
        %p344 = pneg %p149
      $region18: #{deepseek_v2_model_forward.13} parent=11 // pred_check_branch
        %346 = sbr.rel (%p344) target = $region20
      $region19: #{deepseek_v2_model_forward.13} parent=11 // pred_region
        _
      $region20: #{deepseek_v2_model_forward.13} parent=11 // pred_fallthru
        _
      // Predicated region
      $region21: #{deepseek_v2_model_forward.13} parent=11 // pred_check
        %p347 = pneg %p170
      $region22: #{deepseek_v2_model_forward.13} parent=11 // pred_check_branch
        %349 = sbr.rel (%p347) target = $region24
      $region23: #{deepseek_v2_model_forward.13} parent=11 // pred_region
        _
      $region24: #{deepseek_v2_model_forward.13} parent=11 // pred_fallthru
        _
    $region12: #{deepseek_v2_model_forward.13} parent=5 // pred_fallthru
      _
    %p350 = scmp.lt.s32.totalorder %s17, 4
    // Predicated region
    $region25: #{deepseek_v2_model_forward.13} parent=5 // pred_check
      %p351 = pneg %p350
    $region26: #{deepseek_v2_model_forward.13} parent=5 // pred_check_branch
      %353 = sbr.rel (%p351) target = $region28
    $region27: #{deepseek_v2_model_forward.13} parent=5 // pred_region
      // Predicated region
      $region29: #{deepseek_v2_model_forward.13} parent=27 // pred_check
        %p354 = pneg %p49
      $region30: #{deepseek_v2_model_forward.13} parent=27 // pred_check_branch
        %356 = sbr.rel (%p354) target = $region32
      $region31: #{deepseek_v2_model_forward.13} parent=27 // pred_region
        %p357 = scmp.lt.s32.totalorder %s24, 1
        %s358 = scalar_select %p357, %s24, 1
        %s359 = smul.addr %s358, 4
        %s360 = scalar_lea.vmem %s0, %s359
      $region32: #{deepseek_v2_model_forward.13} parent=27 // pred_fallthru
        _
      // Predicated region
      $region33: #{deepseek_v2_model_forward.13} parent=27 // pred_check
        %p361 = pneg %p75
      $region34: #{deepseek_v2_model_forward.13} parent=27 // pred_check_branch
        %363 = sbr.rel (%p361) target = $region36
      $region35: #{deepseek_v2_model_forward.13} parent=27 // pred_region
        %p364 = scmp.lt.s32.totalorder %s24, 1
        %s365 = scalar_select %p364, %s24, 1
        %s366 = smul.addr %s365, 4
        %s367 = scalar_lea.vmem %s1, %s366
      $region36: #{deepseek_v2_model_forward.13} parent=27 // pred_fallthru
        _
      // Predicated region
      $region37: #{deepseek_v2_model_forward.13} parent=27 // pred_check
        %p368 = pneg %p101
      $region38: #{deepseek_v2_model_forward.13} parent=27 // pred_check_branch
        %370 = sbr.rel (%p368) target = $region40
      $region39: #{deepseek_v2_model_forward.13} parent=27 // pred_region
        %p371 = scmp.lt.s32.totalorder %s24, 1
        %s372 = scalar_select %p371, %s24, 1
        %s373 = smul.addr %s372, 4
        %s374 = scalar_lea.vmem %s2, %s373
      $region40: #{deepseek_v2_model_forward.13} parent=27 // pred_fallthru
        _
      // Predicated region
      $region41: #{deepseek_v2_model_forward.13} parent=27 // pred_check
        %p375 = pneg %p190
      $region42: #{deepseek_v2_model_forward.13} parent=27 // pred_check_branch
        %377 = sbr.rel (%p375) target = $region44
      $region43: #{deepseek_v2_model_forward.13} parent=27 // pred_region
        %p378 = scmp.lt.s32.totalorder %s25, 1
        %s379 = scalar_select %p378, %s25, 1
        %s380 = smul.addr %s379, 4
        %s381 = smul.addr %s380, 4
        %s382 = scalar_lea.vmem %s6, %s381
      $region44: #{deepseek_v2_model_forward.13} parent=27 // pred_fallthru
        _
      // Predicated region
      $region45: #{deepseek_v2_model_forward.13} parent=27 // pred_check
        %p383 = pneg %p216
      $region46: #{deepseek_v2_model_forward.13} parent=27 // pred_check_branch
        %385 = sbr.rel (%p383) target = $region48
      $region47: #{deepseek_v2_model_forward.13} parent=27 // pred_region
        %p386 = scmp.lt.s32.totalorder %s25, 1
        %s387 = scalar_select %p386, %s25, 1
        %s388 = smul.addr %s387, 4
        %s389 = smul.addr %s388, 4
        %s390 = scalar_lea.vmem %s7, %s389
      $region48: #{deepseek_v2_model_forward.13} parent=27 // pred_fallthru
        _
      // Predicated region
      $region49: #{deepseek_v2_model_forward.13} parent=27 // pred_check
        %p391 = pneg %p242
      $region50: #{deepseek_v2_model_forward.13} parent=27 // pred_check_branch
        %393 = sbr.rel (%p391) target = $region52
      $region51: #{deepseek_v2_model_forward.13} parent=27 // pred_region
        %p394 = scmp.lt.s32.totalorder %s25, 1
        %s395 = scalar_select %p394, %s25, 1
        %s396 = smul.addr %s395, 4
        %s397 = smul.addr %s396, 4
        %s398 = scalar_lea.vmem %s8, %s397
      $region52: #{deepseek_v2_model_forward.13} parent=27 // pred_fallthru
        _
      // Predicated region
      $region53: #{deepseek_v2_model_forward.13} parent=27 // pred_check
        %p399 = pneg %p268
      $region54: #{deepseek_v2_model_forward.13} parent=27 // pred_check_branch
        %401 = sbr.rel (%p399) target = $region56
      $region55: #{deepseek_v2_model_forward.13} parent=27 // pred_region
        %p402 = scmp.lt.s32.totalorder %s25, 1
        %s403 = scalar_select %p402, %s25, 1
        %s404 = smul.addr %s403, 4
        %s405 = smul.addr %s404, 4
        %s406 = scalar_lea.vmem %s9, %s405
      $region56: #{deepseek_v2_model_forward.13} parent=27 // pred_fallthru
        _
      // Predicated region
      $region57: #{deepseek_v2_model_forward.13} parent=27 // pred_check
        %p407 = pneg %p294
      $region58: #{deepseek_v2_model_forward.13} parent=27 // pred_check_branch
        %409 = sbr.rel (%p407) target = $region60
      $region59: #{deepseek_v2_model_forward.13} parent=27 // pred_region
        %p410 = scmp.lt.s32.totalorder %s25, 1
        %s411 = scalar_select %p410, %s25, 1
        %s412 = smul.addr %s411, 4
        %s413 = smul.addr %s412, 4
        %s414 = scalar_lea.vmem %s10, %s413
      $region60: #{deepseek_v2_model_forward.13} parent=27 // pred_fallthru
        _
    $region28: #{deepseek_v2_model_forward.13} parent=5 // pred_fallthru
      _
    %p415 = scmp.le.s32.totalorder 1, %s17
    %p416 = scmp.lt.s32.totalorder %s17, 5
    %p417 = pnand %p415, %p416
    %p418 = pneg %p417
    // Predicated region
    $region61: #{deepseek_v2_model_forward.13} parent=5 // pred_check
      _
    $region62: #{deepseek_v2_model_forward.13} parent=5 // pred_check_branch
      %420 = sbr.rel (%p417) target = $region64
    $region63: #{deepseek_v2_model_forward.13} parent=5 // pred_region
      %s421 = ssub.s32 %s17, 1
      %p422 = scmp.lt.s32.totalorder %s26, 1
      %s423 = scalar_select %p422, %s26, 1
      %s424 = smul.addr %s423, 4
      %s425 = scalar_lea.vmem %s0, %s424
      %p426 = pneg %p55
      %p427 = pneg %p52
      %p428 = scmp.lt.s32.totalorder %s26, 1
      %s429 = scalar_select %p428, %s26, 1
      %s430 = smul.addr %s429, 4
      %s431 = scalar_lea.vmem %s1, %s430
      %p432 = pneg %p81
      %p433 = pneg %p78
      %p434 = scmp.lt.s32.totalorder %s26, 1
      %s435 = scalar_select %p434, %s26, 1
      %s436 = smul.addr %s435, 4
      %s437 = scalar_lea.vmem %s2, %s436
      %p438 = pneg %p107
      %p439 = pneg %p104
      %p440 = pneg %p128
      %p441 = pneg %p125
      %p442 = pneg %p149
      %p443 = pneg %p146
      %p444 = pneg %p170
      %p445 = pneg %p167
      %p446 = scmp.lt.s32.totalorder %s27, 1
      %s447 = scalar_select %p446, %s27, 1
      %s448 = smul.addr %s447, 4
      %s449 = smul.addr %s448, 4
      %s450 = scalar_lea.vmem %s6, %s449
      %p451 = pneg %p196
      %p452 = pneg %p193
      %p453 = scmp.lt.s32.totalorder %s27, 1
      %s454 = scalar_select %p453, %s27, 1
      %s455 = smul.addr %s454, 4
      %s456 = smul.addr %s455, 4
      %s457 = scalar_lea.vmem %s7, %s456
      %p458 = pneg %p222
      %p459 = pneg %p219
      %p460 = scmp.lt.s32.totalorder %s27, 1
      %s461 = scalar_select %p460, %s27, 1
      %s462 = smul.addr %s461, 4
      %s463 = smul.addr %s462, 4
      %s464 = scalar_lea.vmem %s8, %s463
      %p465 = pneg %p248
      %p466 = pneg %p245
      %p467 = scmp.lt.s32.totalorder %s27, 1
      %s468 = scalar_select %p467, %s27, 1
      %s469 = smul.addr %s468, 4
      %s470 = smul.addr %s469, 4
      %s471 = scalar_lea.vmem %s9, %s470
      %p472 = pneg %p274
      %p473 = pneg %p271
      %p474 = scmp.lt.s32.totalorder %s27, 1
      %s475 = scalar_select %p474, %s27, 1
      %s476 = smul.addr %s475, 4
      %s477 = smul.addr %s476, 4
      %s478 = scalar_lea.vmem %s10, %s477
      %p479 = pneg %p300
      %p480 = pneg %p297
      %p481 = pneg %p326
      %p482 = pneg %p323
      %p483 = scmp.lt.s32.totalorder %s26, 1
      %s484 = scalar_select %p483, %s26, 1
      %s485 = smul.addr %s484, 4
      %s486 = scalar_lea.vmem %s11, %s485
      %p487 = scmp.lt.s32.totalorder %s26, 1
      %s488 = scalar_select %p487, %s26, 1
      %s489 = smul.addr %s488, 4
      %s490 = scalar_lea.vmem %s0, %s489
      %p491 = scmp.lt.s32.totalorder %s26, 1
      %s492 = scalar_select %p491, %s26, 1
      %s493 = smul.addr %s492, 4
      %s494 = scalar_lea.vmem %s1, %s493
      %p495 = scmp.lt.s32.totalorder %s26, 1
      %s496 = scalar_select %p495, %s26, 1
      %s497 = smul.addr %s496, 4
      %s498 = scalar_lea.vmem %s2, %s497
      %p499 = scmp.lt.s32.totalorder %s27, 1
      %s500 = scalar_select %p499, %s27, 1
      %s501 = smul.addr %s500, 4
      %s502 = smul.addr %s501, 4
      %s503 = scalar_lea.vmem %s6, %s502
      %p504 = scmp.lt.s32.totalorder %s27, 1
      %s505 = scalar_select %p504, %s27, 1
      %s506 = smul.addr %s505, 4
      %s507 = smul.addr %s506, 4
      %s508 = scalar_lea.vmem %s7, %s507
      %p509 = scmp.lt.s32.totalorder %s27, 1
      %s510 = scalar_select %p509, %s27, 1
      %s511 = smul.addr %s510, 4
      %s512 = smul.addr %s511, 4
      %s513 = scalar_lea.vmem %s8, %s512
      %p514 = scmp.lt.s32.totalorder %s27, 1
      %s515 = scalar_select %p514, %s27, 1
      %s516 = smul.addr %s515, 4
      %s517 = smul.addr %s516, 4
      %s518 = scalar_lea.vmem %s9, %s517
      %p519 = scmp.lt.s32.totalorder %s27, 1
      %s520 = scalar_select %p519, %s27, 1
      %s521 = smul.addr %s520, 4
      %s522 = smul.addr %s521, 4
      %s523 = scalar_lea.vmem %s10, %s522
      %p524 = scmp.lt.s32.totalorder %s26, 1
      %s525 = scalar_select %p524, %s26, 1
      %s526 = smul.addr %s525, 4
      %s527 = scalar_lea.vmem %s11, %s526
      %p529 = scmp.eq.s32.totalorder %s27, 0
      // Predicated region
      $region65: #{deepseek_v2_model_forward.13} parent=63 // pred_check
        %p530 = pneg %p529
      $region66: #{deepseek_v2_model_forward.13} parent=63 // pred_check_branch
        %532 = sbr.rel (%p530) target = $region68
      $region67: #{deepseek_v2_model_forward.13} parent=63 // pred_region
        %533 = vst [vmem:[#allocation2] sm:$0xff] 0.0
      $region68: #{deepseek_v2_model_forward.13} parent=63 // pred_fallthru
        _
      %v534 = vld [vmem:[%s490] sm:$0xf]
      %v535 = vld [vmem:[%s494] sm:$0xf]
      %v536 = vld [vmem:[%s498] sm:$0xf]
      %v537 = vld [vmem:[%s503] sm:$0xf]
      %v538 = vld [vmem:[%s503 + $0x4] sm:$0xf]
      %v539 = vld [vmem:[%s503 + $0x8] sm:$0xf]
      %v540 = vld [vmem:[%s503 + $0xc] sm:$0xf]
      %v545 = vunpack.c.l.b16 %v537
      %v546 = vunpack.c.l.b16 %v538
      %v547 = vunpack.c.l.b16 %v539
      %v548 = vunpack.c.l.b16 %v540
      %v549 = vpack.c.b16 %v546, %v545
      %v550 = vpack.c.b16 %v548, %v547
      %vm553 = vcmask 261120
      %v555 = vsel %vm553, %v534, 0
      %557 = vmatprep.subr.bf16.mxu0 0
      %558 = vmatpush1.bf16.msra.mxu0 0
      %559 = vmatprep.subr.bf16.mxu0 0
      %560 = vmatpush1.bf16.msra.mxu0 0
      %561 = vmatprep.subr.bf16.mxu0 0
      %562 = vmatpush1.bf16.msra.mxu0 0
      %563 = vmatprep.subr.bf16.mxu0 0
      %564 = vmatpush1.bf16.msra.mxu0 0
      %565 = vmatprep.subr.bf16.mxu0 0
      %566 = vmatpush1.bf16.msra.mxu0 0
      %567 = vmatprep.subr.bf16.mxu0 0
      %568 = vmatpush1.bf16.msra.mxu0 0
      %569 = vmatprep.subr.bf16.mxu0 0
      %570 = vmatpush1.bf16.msra.mxu0 %v550
      %571 = vmatprep.subr.bf16.mxu0 0
      %572 = vmatpush1.bf16.msra.mxu0 %v549
      %573 = vmatprep.subr.bf16.mxu0 0
      %574 = vmatpush2.bf16.msra.mxu0 0
      %575 = vmatprep.subr.bf16.mxu0 0
      %576 = vmatpush2.bf16.msra.mxu0 0
      %577 = vmatprep.subr.bf16.mxu0 0
      %578 = vmatpush2.bf16.msra.mxu0 0
      %579 = vmatprep.subr.bf16.mxu0 0
      %580 = vmatpush2.bf16.msra.mxu0 0
      %581 = vmatprep.subr.bf16.mxu0 0
      %582 = vmatpush2.bf16.msra.mxu0 0
      %583 = vmatprep.subr.bf16.mxu0 0
      %584 = vmatpush2.bf16.msra.mxu0 0
      %585 = vmatprep.subr.bf16.mxu0 0
      %586 = vmatpush2.bf16.msra.mxu0 0
      %587 = vmatprep.subr.bf16.mxu0 0
      %588 = vmatpush2.bf16.msra.mxu0 0
      %589 = vmatprep.mubr.bf16.mxu0 0
      %590 = vmatmul.mubr.bf16.gmra.mxu0 %v555
      %v591 = vpop.f32.mrf.mxu0
      %v592 = vadd.f32 0.0, %v591
      %v593 = vpop.f32.mrf.mxu0
      %v594 = vpop.f32.mrf.mxu0
      %v595 = vpop.f32.mrf.mxu0
      %596 = vdwg.mxu0
      %v597 = vld [vmem:[%s508] sm:$0xf]
      %v598 = vld [vmem:[%s508 + $0x4] sm:$0xf]
      %v599 = vld [vmem:[%s508 + $0x8] sm:$0xf]
      %v600 = vld [vmem:[%s508 + $0xc] sm:$0xf]
      %v605 = vunpack.c.l.b16 %v597
      %v606 = vunpack.c.l.b16 %v598
      %v607 = vunpack.c.l.b16 %v599
      %v608 = vunpack.c.l.b16 %v600
      %v609 = vpack.c.b16 %v606, %v605
      %v610 = vpack.c.b16 %v608, %v607
      %613 = vmatprep.subr.bf16.mxu0 0
      %614 = vmatpush1.bf16.msra.mxu0 0
      %615 = vmatprep.subr.bf16.mxu0 0
      %616 = vmatpush1.bf16.msra.mxu0 0
      %617 = vmatprep.subr.bf16.mxu0 0
      %618 = vmatpush1.bf16.msra.mxu0 0
      %619 = vmatprep.subr.bf16.mxu0 0
      %620 = vmatpush1.bf16.msra.mxu0 0
      %621 = vmatprep.subr.bf16.mxu0 0
      %622 = vmatpush1.bf16.msra.mxu0 0
      %623 = vmatprep.subr.bf16.mxu0 0
      %624 = vmatpush1.bf16.msra.mxu0 0
      %625 = vmatprep.subr.bf16.mxu0 0
      %626 = vmatpush1.bf16.msra.mxu0 %v610
      %627 = vmatprep.subr.bf16.mxu0 0
      %628 = vmatpush1.bf16.msra.mxu0 %v609
      %629 = vmatprep.subr.bf16.mxu0 0
      %630 = vmatpush2.bf16.msra.mxu0 0
      %631 = vmatprep.subr.bf16.mxu0 0
      %632 = vmatpush2.bf16.msra.mxu0 0
      %633 = vmatprep.subr.bf16.mxu0 0
      %634 = vmatpush2.bf16.msra.mxu0 0
      %635 = vmatprep.subr.bf16.mxu0 0
      %636 = vmatpush2.bf16.msra.mxu0 0
      %637 = vmatprep.subr.bf16.mxu0 0
      %638 = vmatpush2.bf16.msra.mxu0 0
      %639 = vmatprep.subr.bf16.mxu0 0
      %640 = vmatpush2.bf16.msra.mxu0 0
      %641 = vmatprep.subr.bf16.mxu0 0
      %642 = vmatpush2.bf16.msra.mxu0 0
      %643 = vmatprep.subr.bf16.mxu0 0
      %644 = vmatpush2.bf16.msra.mxu0 0
      %645 = vmatprep.mubr.bf16.mxu0 0
      %646 = vmatmul.mubr.bf16.gmra.mxu0 %v555
      %v647 = vpop.f32.mrf.mxu0
      %v648 = vadd.f32 0.0, %v647
      %v649 = vpop.f32.mrf.mxu0
      %v650 = vpop.f32.mrf.mxu0
      %v651 = vpop.f32.mrf.mxu0
      %652 = vdwg.mxu0
      %v653 = vpack.c.bf16 %v648, %v648
      %v654 = vld [vmem:[%s5] sm:$0xf]
      %v655 = vld [vmem:[%s5 + $0x4] sm:$0xf]
      %v658 = vunpack.c.l.b16 %v654
      %v659 = vunpack.c.l.b16 %v655
      %v660 = vpack.c.b16 %v659, %v658
      %vm662 = vcmask 130048
      %v664 = vsel %vm662, %v653, 0
      %666 = vmatprep.subr.bf16.mxu0 0
      %667 = vmatpush1.bf16.msra.mxu0 0
      %668 = vmatprep.subr.bf16.mxu0 0
      %669 = vmatpush1.bf16.msra.mxu0 0
      %670 = vmatprep.subr.bf16.mxu0 0
      %671 = vmatpush1.bf16.msra.mxu0 0
      %672 = vmatprep.subr.bf16.mxu0 0
      %673 = vmatpush1.bf16.msra.mxu0 0
      %674 = vmatprep.subr.bf16.mxu0 0
      %675 = vmatpush1.bf16.msra.mxu0 0
      %676 = vmatprep.subr.bf16.mxu0 0
      %677 = vmatpush1.bf16.msra.mxu0 0
      %678 = vmatprep.subr.bf16.mxu0 0
      %679 = vmatpush1.bf16.msra.mxu0 0
      %680 = vmatprep.subr.bf16.mxu0 0
      %681 = vmatpush1.bf16.msra.mxu0 %v660
      %682 = vmatprep.subr.bf16.mxu0 0
      %683 = vmatpush2.bf16.msra.mxu0 0
      %684 = vmatprep.subr.bf16.mxu0 0
      %685 = vmatpush2.bf16.msra.mxu0 0
      %686 = vmatprep.subr.bf16.mxu0 0
      %687 = vmatpush2.bf16.msra.mxu0 0
      %688 = vmatprep.subr.bf16.mxu0 0
      %689 = vmatpush2.bf16.msra.mxu0 0
      %690 = vmatprep.subr.bf16.mxu0 0
      %691 = vmatpush2.bf16.msra.mxu0 0
      %692 = vmatprep.subr.bf16.mxu0 0
      %693 = vmatpush2.bf16.msra.mxu0 0
      %694 = vmatprep.subr.bf16.mxu0 0
      %695 = vmatpush2.bf16.msra.mxu0 0
      %696 = vmatprep.subr.bf16.mxu0 0
      %697 = vmatpush2.bf16.msra.mxu0 0
      %698 = vmatprep.mubr.bf16.mxu0 0
      %699 = vmatmul.mubr.bf16.gmra.mxu0 %v664
      %v700 = vpop.f32.mrf.mxu0
      %v701 = vadd.f32 0.0, %v700
      %v702 = vpop.f32.mrf.mxu0
      %v703 = vpop.f32.mrf.mxu0
      %v704 = vpop.f32.mrf.mxu0
      %705 = vdwg.mxu0
      %v706 = vld [vmem:[%s3] sm:$0xff]
      %v707 = vmul.f32 %v648, %v706
      %v708 = vld [vmem:[%s4] sm:$0xff]
      %v709 = vmul.f32 %v701, %v708
      %v710 = vadd.f32 %v707, %v709
      %v711 = vld [vmem:[%s513] sm:$0xf]
      %v712 = vld [vmem:[%s513 + $0x4] sm:$0xf]
      %v713 = vld [vmem:[%s513 + $0x8] sm:$0xf]
      %v714 = vld [vmem:[%s513 + $0xc] sm:$0xf]
      %v719 = vunpack.c.l.b16 %v711
      %v720 = vunpack.c.l.b16 %v712
      %v721 = vunpack.c.l.b16 %v713
      %v722 = vunpack.c.l.b16 %v714
      %v723 = vpack.c.b16 %v720, %v719
      %v724 = vpack.c.b16 %v722, %v721
      %v728 = vsel %vm553, %v535, 0
      %730 = vmatprep.subr.bf16.mxu0 0
      %731 = vmatpush1.bf16.msra.mxu0 0
      %732 = vmatprep.subr.bf16.mxu0 0
      %733 = vmatpush1.bf16.msra.mxu0 0
      %734 = vmatprep.subr.bf16.mxu0 0
      %735 = vmatpush1.bf16.msra.mxu0 0
      %736 = vmatprep.subr.bf16.mxu0 0
      %737 = vmatpush1.bf16.msra.mxu0 0
      %738 = vmatprep.subr.bf16.mxu0 0
      %739 = vmatpush1.bf16.msra.mxu0 0
      %740 = vmatprep.subr.bf16.mxu0 0
      %741 = vmatpush1.bf16.msra.mxu0 0
      %742 = vmatprep.subr.bf16.mxu0 0
      %743 = vmatpush1.bf16.msra.mxu0 %v724
      %744 = vmatprep.subr.bf16.mxu0 0
      %745 = vmatpush1.bf16.msra.mxu0 %v723
      %746 = vmatprep.subr.bf16.mxu0 0
      %747 = vmatpush2.bf16.msra.mxu0 0
      %748 = vmatprep.subr.bf16.mxu0 0
      %749 = vmatpush2.bf16.msra.mxu0 0
      %750 = vmatprep.subr.bf16.mxu0 0
      %751 = vmatpush2.bf16.msra.mxu0 0
      %752 = vmatprep.subr.bf16.mxu0 0
      %753 = vmatpush2.bf16.msra.mxu0 0
      %754 = vmatprep.subr.bf16.mxu0 0
      %755 = vmatpush2.bf16.msra.mxu0 0
      %756 = vmatprep.subr.bf16.mxu0 0
      %757 = vmatpush2.bf16.msra.mxu0 0
      %758 = vmatprep.subr.bf16.mxu0 0
      %759 = vmatpush2.bf16.msra.mxu0 0
      %760 = vmatprep.subr.bf16.mxu0 0
      %761 = vmatpush2.bf16.msra.mxu0 0
      %762 = vmatprep.mubr.bf16.mxu0 0
      %763 = vmatmul.mubr.bf16.gmra.mxu0 %v728
      %v764 = vpop.f32.mrf.mxu0
      %v765 = vadd.f32 0.0, %v764
      %v766 = vpop.f32.mrf.mxu0
      %v767 = vpop.f32.mrf.mxu0
      %v768 = vpop.f32.mrf.mxu0
      %769 = vdwg.mxu0
      %v770 = vld [vmem:[%s518] sm:$0xf]
      %v771 = vld [vmem:[%s518 + $0x4] sm:$0xf]
      %v772 = vld [vmem:[%s518 + $0x8] sm:$0xf]
      %v773 = vld [vmem:[%s518 + $0xc] sm:$0xf]
      %v778 = vunpack.c.l.b16 %v770
      %v779 = vunpack.c.l.b16 %v771
      %v780 = vunpack.c.l.b16 %v772
      %v781 = vunpack.c.l.b16 %v773
      %v782 = vpack.c.b16 %v779, %v778
      %v783 = vpack.c.b16 %v781, %v780
      %786 = vmatprep.subr.bf16.mxu0 0
      %787 = vmatpush1.bf16.msra.mxu0 0
      %788 = vmatprep.subr.bf16.mxu0 0
      %789 = vmatpush1.bf16.msra.mxu0 0
      %790 = vmatprep.subr.bf16.mxu0 0
      %791 = vmatpush1.bf16.msra.mxu0 0
      %792 = vmatprep.subr.bf16.mxu0 0
      %793 = vmatpush1.bf16.msra.mxu0 0
      %794 = vmatprep.subr.bf16.mxu0 0
      %795 = vmatpush1.bf16.msra.mxu0 0
      %796 = vmatprep.subr.bf16.mxu0 0
      %797 = vmatpush1.bf16.msra.mxu0 0
      %798 = vmatprep.subr.bf16.mxu0 0
      %799 = vmatpush1.bf16.msra.mxu0 %v783
      %800 = vmatprep.subr.bf16.mxu0 0
      %801 = vmatpush1.bf16.msra.mxu0 %v782
      %802 = vmatprep.subr.bf16.mxu0 0
      %803 = vmatpush2.bf16.msra.mxu0 0
      %804 = vmatprep.subr.bf16.mxu0 0
      %805 = vmatpush2.bf16.msra.mxu0 0
      %806 = vmatprep.subr.bf16.mxu0 0
      %807 = vmatpush2.bf16.msra.mxu0 0
      %808 = vmatprep.subr.bf16.mxu0 0
      %809 = vmatpush2.bf16.msra.mxu0 0
      %810 = vmatprep.subr.bf16.mxu0 0
      %811 = vmatpush2.bf16.msra.mxu0 0
      %812 = vmatprep.subr.bf16.mxu0 0
      %813 = vmatpush2.bf16.msra.mxu0 0
      %814 = vmatprep.subr.bf16.mxu0 0
      %815 = vmatpush2.bf16.msra.mxu0 0
      %816 = vmatprep.subr.bf16.mxu0 0
      %817 = vmatpush2.bf16.msra.mxu0 0
      %818 = vmatprep.mubr.bf16.mxu0 0
      %819 = vmatmul.mubr.bf16.gmra.mxu0 %v728
      %v820 = vpop.f32.mrf.mxu0
      %v821 = vadd.f32 0.0, %v820
      %v822 = vpop.f32.mrf.mxu0
      %v823 = vpop.f32.mrf.mxu0
      %v824 = vpop.f32.mrf.mxu0
      %825 = vdwg.mxu0
      %v826 = vpack.c.bf16 %v592, %v592
      %v827 = vpack.c.bf16 %v765, %v765
      %v828 = vpack.c.bf16 %v710, %v710
      %v830 = vsel %vm662, %v828, 0
      %v833 = vsel %vm662, %v536, 0
      %835 = vmatprep.subr.bf16.mxu0 0
      %836 = vmatpush1.bf16.xpose.msra.mxu0 0
      %837 = vmatprep.subr.bf16.mxu0 0
      %838 = vmatpush1.bf16.xpose.msra.mxu0 0
      %839 = vmatprep.subr.bf16.mxu0 0
      %840 = vmatpush1.bf16.xpose.msra.mxu0 0
      %841 = vmatprep.subr.bf16.mxu0 0
      %842 = vmatpush1.bf16.xpose.msra.mxu0 0
      %843 = vmatprep.subr.bf16.mxu0 0
      %844 = vmatpush1.bf16.xpose.msra.mxu0 0
      %845 = vmatprep.subr.bf16.mxu0 0
      %846 = vmatpush1.bf16.xpose.msra.mxu0 0
      %847 = vmatprep.subr.bf16.mxu0 0
      %848 = vmatpush1.bf16.xpose.msra.mxu0 0
      %849 = vmatprep.subr.bf16.mxu0 0
      %850 = vmatpush1.bf16.xpose.msra.mxu0 %v833
      %851 = vmatprep.subr.bf16.mxu0 0
      %852 = vmatpush2.bf16.xpose.msra.mxu0 0
      %853 = vmatprep.subr.bf16.mxu0 0
      %854 = vmatpush2.bf16.xpose.msra.mxu0 0
      %855 = vmatprep.subr.bf16.mxu0 0
      %856 = vmatpush2.bf16.xpose.msra.mxu0 0
      %857 = vmatprep.subr.bf16.mxu0 0
      %858 = vmatpush2.bf16.xpose.msra.mxu0 0
      %859 = vmatprep.subr.bf16.mxu0 0
      %860 = vmatpush2.bf16.xpose.msra.mxu0 0
      %861 = vmatprep.subr.bf16.mxu0 0
      %862 = vmatpush2.bf16.xpose.msra.mxu0 0
      %863 = vmatprep.subr.bf16.mxu0 0
      %864 = vmatpush2.bf16.xpose.msra.mxu0 0
      %865 = vmatprep.subr.bf16.mxu0 0
      %866 = vmatpush2.bf16.xpose.msra.mxu0 0
      %867 = vmatprep.mubr.bf16.mxu0 0
      %868 = vmatmul.mubr.bf16.gmra.mxu0 %v830
      %v869 = vpop.f32.mrf.mxu0
      %v870 = vadd.f32 0.0, %v869
      %v871 = vpop.f32.mrf.mxu0
      %v872 = vpop.f32.mrf.mxu0
      %v873 = vpop.f32.mrf.mxu0
      %874 = vdwg.mxu0
      %v876 = vsel %vm553, %v826, 0
      %v879 = vsel %vm553, %v827, 0
      %881 = vmatprep.subr.bf16.mxu0 0
      %882 = vmatpush1.bf16.xpose.msra.mxu0 0
      %883 = vmatprep.subr.bf16.mxu0 0
      %884 = vmatpush1.bf16.xpose.msra.mxu0 0
      %885 = vmatprep.subr.bf16.mxu0 0
      %886 = vmatpush1.bf16.xpose.msra.mxu0 0
      %887 = vmatprep.subr.bf16.mxu0 0
      %888 = vmatpush1.bf16.xpose.msra.mxu0 0
      %889 = vmatprep.subr.bf16.mxu0 0
      %890 = vmatpush1.bf16.xpose.msra.mxu0 0
      %891 = vmatprep.subr.bf16.mxu0 0
      %892 = vmatpush1.bf16.xpose.msra.mxu0 0
      %893 = vmatprep.subr.bf16.mxu0 0
      %894 = vmatpush1.bf16.xpose.msra.mxu0 0
      %895 = vmatprep.subr.bf16.mxu0 0
      %896 = vmatpush1.bf16.xpose.msra.mxu0 %v879
      %897 = vmatprep.subr.bf16.mxu0 0
      %898 = vmatpush2.bf16.xpose.msra.mxu0 0
      %899 = vmatprep.subr.bf16.mxu0 0
      %900 = vmatpush2.bf16.xpose.msra.mxu0 0
      %901 = vmatprep.subr.bf16.mxu0 0
      %902 = vmatpush2.bf16.xpose.msra.mxu0 0
      %903 = vmatprep.subr.bf16.mxu0 0
      %904 = vmatpush2.bf16.xpose.msra.mxu0 0
      %905 = vmatprep.subr.bf16.mxu0 0
      %906 = vmatpush2.bf16.xpose.msra.mxu0 0
      %907 = vmatprep.subr.bf16.mxu0 0
      %908 = vmatpush2.bf16.xpose.msra.mxu0 0
      %909 = vmatprep.subr.bf16.mxu0 0
      %910 = vmatpush2.bf16.xpose.msra.mxu0 0
      %911 = vmatprep.subr.bf16.mxu0 0
      %912 = vmatpush2.bf16.xpose.msra.mxu0 0
      %913 = vmatprep.mubr.bf16.mxu0 0
      %914 = vmatmul.mubr.bf16.gmra.mxu0 %v876
      %v915 = vpop.f32.mrf.mxu0
      %v916 = vadd.f32 %v870, %v915
      %v917 = vpop.f32.mrf.mxu0
      %v918 = vpop.f32.mrf.mxu0
      %v919 = vpop.f32.mrf.mxu0
      %920 = vdwg.mxu0
      %v921 = vmul.f32 %v916, 0.14433756
      %v922 = vlaneseq
      %v923 = vshrl.u32 %v922, 7
      %v924 = vlaneseq
      %v925 = vand.u32 %v924, 127
      %vm926 = vcmp.le.s32.totalorder %v925, %v923
      %v927 = vsel %vm926, %v921, -1e+30
      %vm928 = vcmask 64512
      %v929 = vsel %vm928, %v927, -inf
      %930 = vmax.xlane.f32.xlu0 %v929
      %v931 = vpop.xlane.xlu0 %930
      %v932 = vsub.f32 %v927, %v931
      %v933 = vmul.f32 %v932, 1.442695
      %v934 = vpow.pop %v933
      %v935 = vsel %vm928, %v934, 0.0
      %936 = vadd.xlane.f32.xlu0 %v935
      %v937 = vpop.xlane.xlu0 %936
      %v938 = vrcp.pop %v937
      %v939 = vmul.f32 %v934, %v938
      %v940 = vpack.c.bf16 %v939, %v939
      %v941 = vpack.c.bf16 %v821, %v821
      %v943 = vsel %vm928, %v940, 0
      %vm945 = vcmask 1043456
      %v947 = vsel %vm945, %v941, 0
      %949 = vmatprep.subr.bf16.mxu0 0
      %950 = vmatpush1.bf16.msra.mxu0 0
      %951 = vmatprep.subr.bf16.mxu0 0
      %952 = vmatpush1.bf16.msra.mxu0 0
      %953 = vmatprep.subr.bf16.mxu0 0
      %954 = vmatpush1.bf16.msra.mxu0 0
      %955 = vmatprep.subr.bf16.mxu0 0
      %956 = vmatpush1.bf16.msra.mxu0 0
      %957 = vmatprep.subr.bf16.mxu0 0
      %958 = vmatpush1.bf16.msra.mxu0 0
      %959 = vmatprep.subr.bf16.mxu0 0
      %960 = vmatpush1.bf16.msra.mxu0 0
      %961 = vmatprep.subr.bf16.mxu0 0
      %962 = vmatpush1.bf16.msra.mxu0 0
      %963 = vmatprep.subr.bf16.mxu0 0
      %964 = vmatpush1.bf16.msra.mxu0 %v947
      %965 = vmatprep.subr.bf16.mxu0 0
      %966 = vmatpush2.bf16.msra.mxu0 0
      %967 = vmatprep.subr.bf16.mxu0 0
      %968 = vmatpush2.bf16.msra.mxu0 0
      %969 = vmatprep.subr.bf16.mxu0 0
      %970 = vmatpush2.bf16.msra.mxu0 0
      %971 = vmatprep.subr.bf16.mxu0 0
      %972 = vmatpush2.bf16.msra.mxu0 0
      %973 = vmatprep.subr.bf16.mxu0 0
      %974 = vmatpush2.bf16.msra.mxu0 0
      %975 = vmatprep.subr.bf16.mxu0 0
      %976 = vmatpush2.bf16.msra.mxu0 0
      %977 = vmatprep.subr.bf16.mxu0 0
      %978 = vmatpush2.bf16.msra.mxu0 0
      %979 = vmatprep.subr.bf16.mxu0 0
      %980 = vmatpush2.bf16.msra.mxu0 0
      %981 = vmatprep.mubr.bf16.mxu0 0
      %982 = vmatmul.mubr.bf16.gmra.mxu0 %v943
      %v983 = vpop.f32.mrf.mxu0
      %v984 = vadd.f32 0.0, %v983
      %v985 = vpop.f32.mrf.mxu0
      %v986 = vpop.f32.mrf.mxu0
      %v987 = vpop.f32.mrf.mxu0
      %988 = vdwg.mxu0
      %v989 = vld [vmem:[#allocation2] sm:$0xff]
      %v990 = vpack.c.bf16 %v984, %v984
      %v991 = vld [vmem:[%s523] sm:$0xf]
      %v992 = vld [vmem:[%s523 + $0x4] sm:$0xf]
      %v993 = vld [vmem:[%s523 + $0x8] sm:$0xf]
      %v994 = vld [vmem:[%s523 + $0xc] sm:$0xf]
      %v999 = vunpack.c.l.b16 %v991
      %v1000 = vunpack.c.l.b16 %v992
      %v1001 = vunpack.c.l.b16 %v993
      %v1002 = vunpack.c.l.b16 %v994
      %v1003 = vpack.c.b16 %v1000, %v999
      %v1004 = vpack.c.b16 %v1002, %v1001
      %v1008 = vsel %vm553, %v990, 0
      %1010 = vmatprep.subr.bf16.mxu0 0
      %1011 = vmatpush1.bf16.msra.mxu0 0
      %1012 = vmatprep.subr.bf16.mxu0 0
      %1013 = vmatpush1.bf16.msra.mxu0 0
      %1014 = vmatprep.subr.bf16.mxu0 0
      %1015 = vmatpush1.bf16.msra.mxu0 0
      %1016 = vmatprep.subr.bf16.mxu0 0
      %1017 = vmatpush1.bf16.msra.mxu0 0
      %1018 = vmatprep.subr.bf16.mxu0 0
      %1019 = vmatpush1.bf16.msra.mxu0 0
      %1020 = vmatprep.subr.bf16.mxu0 0
      %1021 = vmatpush1.bf16.msra.mxu0 0
      %1022 = vmatprep.subr.bf16.mxu0 0
      %1023 = vmatpush1.bf16.msra.mxu0 %v1004
      %1024 = vmatprep.subr.bf16.mxu0 0
      %1025 = vmatpush1.bf16.msra.mxu0 %v1003
      %1026 = vmatprep.subr.bf16.mxu0 0
      %1027 = vmatpush2.bf16.msra.mxu0 0
      %1028 = vmatprep.subr.bf16.mxu0 0
      %1029 = vmatpush2.bf16.msra.mxu0 0
      %1030 = vmatprep.subr.bf16.mxu0 0
      %1031 = vmatpush2.bf16.msra.mxu0 0
      %1032 = vmatprep.subr.bf16.mxu0 0
      %1033 = vmatpush2.bf16.msra.mxu0 0
      %1034 = vmatprep.subr.bf16.mxu0 0
      %1035 = vmatpush2.bf16.msra.mxu0 0
      %1036 = vmatprep.subr.bf16.mxu0 0
      %1037 = vmatpush2.bf16.msra.mxu0 0
      %1038 = vmatprep.subr.bf16.mxu0 0
      %1039 = vmatpush2.bf16.msra.mxu0 0
      %1040 = vmatprep.subr.bf16.mxu0 0
      %1041 = vmatpush2.bf16.msra.mxu0 0
      %1042 = vmatprep.mubr.bf16.mxu0 0
      %1043 = vmatmul.mubr.bf16.gmra.mxu0 %v1008
      %v1044 = vpop.f32.mrf.mxu0
      %v1045 = vadd.f32 0.0, %v1044
      %v1046 = vpop.f32.mrf.mxu0
      %v1047 = vpop.f32.mrf.mxu0
      %v1048 = vpop.f32.mrf.mxu0
      %1049 = vdwg.mxu0
      %v1050 = vadd.f32 %v989, %v1045
      %1051 = vst [vmem:[#allocation2] sm:$0xff] %v1050
      %p1052 = scmp.eq.s32.totalorder %s27, 1
      // Predicated region
      $region69: #{deepseek_v2_model_forward.13} parent=63 // pred_check
        %p1053 = pneg %p1052
      $region70: #{deepseek_v2_model_forward.13} parent=63 // pred_check_branch
        %1055 = sbr.rel (%p1053) target = $region72
      $region71: #{deepseek_v2_model_forward.13} parent=63 // pred_region
        %v1056 = vld [vmem:[#allocation2] sm:$0xff]
        %v1057 = vpack.c.bf16 %v1056, %v1056
        %1058 = vst [vmem:[%s527] sm:$0xf] %v1057
      $region72: #{deepseek_v2_model_forward.13} parent=63 // pred_fallthru
        _
      %p1059 = scmp.lt.s32.totalorder %s26, 1
      %s1060 = scalar_select %p1059, %s26, 1
      %s1061 = smul.addr %s1060, 4
      %s1062 = scalar_lea.vmem %s11, %s1061
      // Predicated region
      $region73: #{deepseek_v2_model_forward.13} parent=63 // pred_check
        %p1063 = pneg %p323
      $region74: #{deepseek_v2_model_forward.13} parent=63 // pred_check_branch
        %1065 = sbr.rel (%p1063) target = $region76
      $region75: #{deepseek_v2_model_forward.13} parent=63 // pred_region
        _
      $region76: #{deepseek_v2_model_forward.13} parent=63 // pred_fallthru
        _
    $region64: #{deepseek_v2_model_forward.13} parent=5 // pred_fallthru
      _
    %p1066 = scmp.le.s32.totalorder 2, %s17
    // Predicated region
    $region77: #{deepseek_v2_model_forward.13} parent=5 // pred_check
      %p1067 = pneg %p1066
    $region78: #{deepseek_v2_model_forward.13} parent=5 // pred_check_branch
      %1069 = sbr.rel (%p1067) target = $region80
    $region79: #{deepseek_v2_model_forward.13} parent=5 // pred_region
      %s1070 = ssub.s32 %s17, 2
      // Predicated region
      $region81: #{deepseek_v2_model_forward.13} parent=79 // pred_check
        %p1071 = pneg %p329
      $region82: #{deepseek_v2_model_forward.13} parent=79 // pred_check_branch
        %1073 = sbr.rel (%p1071) target = $region84
      $region83: #{deepseek_v2_model_forward.13} parent=79 // pred_region
        %p1074 = scmp.lt.s32.totalorder %s28, 1
        %s1075 = scalar_select %p1074, %s28, 1
        %s1076 = smul.addr %s1075, 4
        %s1077 = scalar_lea.vmem %s11, %s1076
      $region84: #{deepseek_v2_model_forward.13} parent=79 // pred_fallthru
        _
    $region80: #{deepseek_v2_model_forward.13} parent=5 // pred_fallthru
      _
  $region6: #{deepseek_v2_model_forward.13} parent=0 // loop_footer
    %s21 = sadd.s32 1, %s17
  $region7: #{deepseek_v2_model_forward.13} parent=0 // loop_footer_branch
    %16 = sbr.rel target = $region3
  $region8: #{deepseek_v2_model_forward.13} parent=0 // loop_exit
    _

// kernel: deepseek_v2_model_forward.21
$region0: #{deepseek_v2_model_forward.21}
  #allocation0 [shape = 'u32[]', space=smem, size = 0x4, offset = 0x4, fixed_abs, tag = 'smem constant byte address 0x4 - core index']
  #allocation1 [shape = 'u32[144,128]{1,0:T(1,128)}', space=vmem, size = 0x12000, scoped, tag = 'internal scratch']
  %s0 = inlined_call_operand.vmem [shape: bf16[16,128], index: 0, kind: input, shape index: {}]
  %s1 = inlined_call_operand.vmem [shape: bf16[16,128], index: 1, kind: input, shape index: {}]
  %s2 = inlined_call_operand.vmem [shape: bf16[1,128], index: 2, kind: input, shape index: {}]
  %s3 = inlined_call_operand.hbm [shape: bf16[16,128], index: 3, kind: output, shape index: {0}]
  %s4 = inlined_call_operand.hbm [shape: bf16[16,128], index: 4, kind: output, shape index: {1}]
  %5 = xla_tuple %s3, %s4
  %s6 = sld [smem:[#allocation0]]
  $region30: #{deepseek_v2_model_forward.21} parent=0
    _
  %s8 = ssub.s32 1, %s6
  %s9 = scalar_select 0, %s8, %s6
  $region1: #{deepseek_v2_model_forward.21} parent=0
    #allocation2 [shape = 'u8[4096]{0}', space=vmem, size = 0x1000, scoped, tag = 'output window, operand 0, single buffered']
    #allocation3 [shape = 's32[1]{0}', space=sflag, size = 0x4, scoped, tag = 'scoped memory for deepseek_v2_model_forward.21']
    #allocation4 [shape = 'u8[4096]{0}', space=vmem, size = 0x1000, scoped, tag = 'output window, operand 1, single buffered']
    #allocation5 [shape = 's32[1]{0}', space=sflag, size = 0x4, scoped, tag = 'scoped memory for deepseek_v2_model_forward.21']
    %10 = vsyncpa [#allocation3], 0
    %11 = vsyncpa [#allocation5], 0
    // Predicated region
    $region2: #{deepseek_v2_model_forward.21} parent=1 // pred_check
      _
    $region3: #{deepseek_v2_model_forward.21} parent=1 // pred_check_branch
      %13 = sbr.rel (0) target = $region5
    $region4: #{deepseek_v2_model_forward.21} parent=1 // pred_region
      _
    $region5: #{deepseek_v2_model_forward.21} parent=1 // pred_fallthru
      _
    // Predicated region
    $region6: #{deepseek_v2_model_forward.21} parent=1 // pred_check
      _
    $region7: #{deepseek_v2_model_forward.21} parent=1 // pred_check_branch
      %15 = sbr.rel (0) target = $region9
    $region8: #{deepseek_v2_model_forward.21} parent=1 // pred_region
      _
    $region9: #{deepseek_v2_model_forward.21} parent=1 // pred_fallthru
      _
    // Predicated region
    $region10: #{deepseek_v2_model_forward.21} parent=1 // pred_check
      _
    $region11: #{deepseek_v2_model_forward.21} parent=1 // pred_check_branch
      %17 = sbr.rel (0) target = $region13
    $region12: #{deepseek_v2_model_forward.21} parent=1 // pred_region
      _
    $region13: #{deepseek_v2_model_forward.21} parent=1 // pred_fallthru
      _
    %v18 = vld [vmem:[%s0] sm:$0xf]
    %v19 = vld [vmem:[%s0 + $0x4] sm:$0xf]
    %v20 = vunpack.c.l.bf16 %v18
    %v21 = vunpack.c.l.bf16 %v19
    %v22 = vld [vmem:[%s1] sm:$0xf]
    %v23 = vld [vmem:[%s1 + $0x4] sm:$0xf]
    %v24 = vunpack.c.l.bf16 %v22
    %v25 = vunpack.c.l.bf16 %v23
    %v26 = vadd.f32 %v20, %v24
    %v27 = vadd.f32 %v21, %v25
    %v28 = vpack.c.bf16 %v27, %v26
    %v30 = vunpack.c.l.b16 %v28
    %v31 = vunpack.c.h.b16 %v28
    %v32 = vpack.c.b16 %v30, %v30
    %v33 = vpack.c.b16 %v31, %v31
    %36 = vst [vmem:[#allocation2] sm:$0xf] %v32
    %37 = vst [vmem:[#allocation2 + $0x4] sm:$0xf] %v33
    %v38 = vmul.f32 %v26, %v26
    %v39 = vmul.f32 %v27, %v27
    %40 = vadd.xlane.f32.xlu0 %v38
    %v41 = vpop.xlane.xlu0 %40
    %42 = vadd.xlane.f32.xlu0 %v39
    %v43 = vpop.xlane.xlu0 %42
    %v44 = vrcp.pop 128.0
    %v45 = vmul.f32 %v41, %v44
    %v46 = vmul.f32 %v43, %v44
    %v47 = vadd.f32 %v45, 1e-06
    %v48 = vadd.f32 %v46, 1e-06
    %v49 = vrsqrt.pop %v47
    %v50 = vrsqrt.pop %v48
    %v51 = vmul.f32 %v26, %v49
    %v52 = vmul.f32 %v27, %v50
    %v53 = vld [vmem:[%s2] sm:$0x1]
    %v54 = vunpack.c.l.bf16 %v53
    %v55 = vlaneseq
    %v56 = vshrl.u32 %v55, 7
    %v57 = vsub.s32 0, %v56
    %v58 = vrot.slane %v54, %v57
    %v59 = vmul.f32 %v51, %v58
    %v60 = vmul.f32 %v52, %v58
    %v61 = vpack.c.bf16 %v60, %v59
    %v63 = vunpack.c.l.b16 %v61
    %v64 = vunpack.c.h.b16 %v61
    %v65 = vpack.c.b16 %v63, %v63
    %v66 = vpack.c.b16 %v64, %v64
    %69 = vst [vmem:[#allocation4] sm:$0xf] %v65
    %70 = vst [vmem:[#allocation4 + $0x4] sm:$0xf] %v66
    // Predicated region
    $region14: #{deepseek_v2_model_forward.21} parent=1 // pred_check
      _
    $region15: #{deepseek_v2_model_forward.21} parent=1 // pred_check_branch
      %72 = sbr.rel (0) target = $region17
    $region16: #{deepseek_v2_model_forward.21} parent=1 // pred_region
      %s74 = ssub.s32 128, 128
      %75 = vsyncadd [#allocation3], %s74
      %s76 = sshll.u32 [#allocation2], 4
      %s77 = int_to_ptr.vmem [resolvable:$true] %s76
      %82 = dma.vmem_to_hbm [thread:$0]  %s77, 128, %s3, [#allocation3], 64, 64, 4
    $region17: #{deepseek_v2_model_forward.21} parent=1 // pred_fallthru
      _
    // Predicated region
    $region18: #{deepseek_v2_model_forward.21} parent=1 // pred_check
      _
    $region19: #{deepseek_v2_model_forward.21} parent=1 // pred_check_branch
      %84 = sbr.rel (0) target = $region21
    $region20: #{deepseek_v2_model_forward.21} parent=1 // pred_region
      %s86 = ssub.s32 128, 128
      %87 = vsyncadd [#allocation5], %s86
      %s88 = sshll.u32 [#allocation4], 4
      %s89 = int_to_ptr.vmem [resolvable:$true] %s88
      %94 = dma.vmem_to_hbm [thread:$0]  %s89, 128, %s4, [#allocation5], 64, 64, 4
    $region21: #{deepseek_v2_model_forward.21} parent=1 // pred_fallthru
      _
    // Predicated region
    $region22: #{deepseek_v2_model_forward.21} parent=1 // pred_check
      _
    $region23: #{deepseek_v2_model_forward.21} parent=1 // pred_check_branch
      %96 = sbr.rel (0) target = $region25
    $region24: #{deepseek_v2_model_forward.21} parent=1 // pred_region
      %97 = dma.done [#allocation3], 128
    $region25: #{deepseek_v2_model_forward.21} parent=1 // pred_fallthru
      _
    // Predicated region
    $region26: #{deepseek_v2_model_forward.21} parent=1 // pred_check
      _
    $region27: #{deepseek_v2_model_forward.21} parent=1 // pred_check_branch
      %99 = sbr.rel (0) target = $region29
    $region28: #{deepseek_v2_model_forward.21} parent=1 // pred_region
      %100 = dma.done [#allocation5], 128
    $region29: #{deepseek_v2_model_forward.21} parent=1 // pred_fallthru
      _
    %101 = vsyncpa [#allocation3], 1
    %102 = vsyncpa [#allocation5], 1

// kernel: deepseek_v2_model_forward.20
$region0: #{deepseek_v2_model_forward.20}
  #allocation0 [shape = 'u32[]', space=smem, size = 0x4, offset = 0x4, fixed_abs, tag = 'smem constant byte address 0x4 - core index']
  #allocation1 [shape = 'u32[144,128]{1,0:T(1,128)}', space=vmem, size = 0x12000, scoped, tag = 'internal scratch']
  #allocation2 [shape = 'f32[16,128]{1,0:T(8,128)}', space=vmem, size = 0x2000, scoped, tag = 'scratch operand']
  #allocation3 [shape = 's32[1]{0}', space=sflag, size = 0x4, scoped, tag = 'scoped memory for deepseek_v2_model_forward.20']
  #allocation4 [shape = 'u8[512]{0}', space=smem, size = 0x200, scoped, tag = 'prefetched SMEM operand 0']
  %s0 = inlined_call_operand.vmem [shape: s32[5], index: 0, kind: input, shape index: {}]
  %s1 = inlined_call_operand.vmem [shape: bf16[16,128], index: 1, kind: input, shape index: {}]
  %s2 = inlined_call_operand.vmem [shape: f32[5,16,1], index: 2, kind: input, shape index: {}]
  %s3 = inlined_call_operand.vmem [shape: bf16[5,128,32], index: 3, kind: input, shape index: {}]
  %s4 = inlined_call_operand.vmem [shape: bf16[5,128,32], index: 4, kind: input, shape index: {}]
  %s5 = inlined_call_operand.vmem [shape: bf16[5,32,128], index: 5, kind: input, shape index: {}]
  %s6 = inlined_call_operand.vmem [shape: bf16[16,128], index: 6, kind: output, shape index: {}]
  %s7 = sld [smem:[#allocation0]]
  $region65: #{deepseek_v2_model_forward.20} parent=0
    _
  %s9 = ssub.s32 1, %s7
  %s10 = scalar_select 0, %s9, %s7
  %s11 = sshll.u32 %s0, 4
  %s12 = int_to_ptr.vmem [resolvable:$true] %s11
  %14 = dma.vmem_to_smem %s12, 16, [#allocation4], [#allocation3]
  %15 = dma.done [#allocation3], 16
  %16 = sfence
  loop: start=0, step=1, limit=7
  $region2: #{deepseek_v2_model_forward.20} parent=0 // loop_pre_header
    _
  $region3: #{deepseek_v2_model_forward.20} parent=0 // loop_header
    %s18 = sphi 0, %s22
    %p19 = scmp.ge.s32.totalorder %s18, 7
    %s25 = sphi 0, %s37
    %s26 = sphi 0, %s33
    %s27 = sphi 0, %s25
    %s28 = sphi 0, %s26
    %s29 = sphi 0, %s27
    %s30 = sphi 0, %s28
    %s40 = sphi 0, %s42
    %s43 = sphi 0, %s40
    %s44 = sphi 0, %s43
    %s60 = sphi 0, %s44
    %s68 = sphi 0, %s70
    %s71 = sphi 0, %s68
    %s72 = sphi 0, %s71
    %s88 = sphi 0, %s72
    %s94 = sphi 0, %s96
    %s97 = sphi 0, %s94
    %s98 = sphi 0, %s97
    %s114 = sphi 0, %s98
    %s120 = sphi 0, %s122
    %s123 = sphi 0, %s120
    %s124 = sphi 0, %s123
    %s140 = sphi 0, %s124
    %s146 = sphi 0, %s148
    %s149 = sphi 0, %s146
    %s150 = sphi 0, %s149
    %s166 = sphi 0, %s150
    %s172 = sphi 0, %s174
    %s175 = sphi 0, %s172
    %s176 = sphi 0, %s175
    %s192 = sphi 0, %s176
  $region4: #{deepseek_v2_model_forward.20} parent=0 // loop_header_branch
    %21 = sbr.rel (%p19) target = $region8
  $region5: #{deepseek_v2_model_forward.20} parent=0 // loop_body
    %s23 = ssub.s32 %s18, 1
    %s24 = ssub.s32 %s18, 2
    %s31 = sadd.s32 1, %s26
    %p32 = scmp.ge.s32.totalorder %s31, 5
    %s33 = scalar_select %p32, 0, %s31
    %s34 = sadd.s32 1, %s25
    %s35 = scalar_select %p32, %s34, %s25
    %p36 = scmp.ge.s32.totalorder %s35, 1
    %s37 = scalar_select %p36, 0, %s35
    %s38 = ssub.s32 %s25, %s37
    %p39 = scmp.eq.s32.totalorder %s38, 0
    %s41 = sadd.s32 %s40, 1
    %s42 = scalar_select %p39, %s40, %s41
    %p45 = pneg %p39
    %p46 = scmp.eq.s32.totalorder %s18, 4
    %p47 = por %p45, %p46
    %p48 = scmp.ne.s32.totalorder %s40, %s43
    %p49 = scmp.eq.s32.totalorder %s18, 0
    %p50 = por %p48, %p49
    %p51 = scmp.ne.s32.totalorder %s40, %s43
    %p52 = scmp.eq.s32.totalorder %s23, 4
    %p53 = por %p51, %p52
    %p54 = scmp.ne.s32.totalorder %s43, %s44
    %p55 = scmp.eq.s32.totalorder %s23, 0
    %p56 = por %p54, %p55
    %p57 = scmp.ne.s32.totalorder %s43, %s44
    %p58 = scmp.eq.s32.totalorder %s24, 4
    %p59 = por %p57, %p58
    %p61 = scmp.ne.s32.totalorder %s44, %s60
    %p62 = scmp.eq.s32.totalorder %s24, 0
    %p63 = por %p61, %p62
    %s64 = ssub.s32 %s26, %s33
    %s65 = ssub.s32 %s25, %s37
    %s66 = sor.u32 %s64, %s65
    %p67 = scmp.eq.s32.totalorder %s66, 0
    %s69 = sadd.s32 %s68, 1
    %s70 = scalar_select %p67, %s68, %s69
    %p73 = pneg %p67
    %p74 = scmp.eq.s32.totalorder %s18, 4
    %p75 = por %p73, %p74
    %p76 = scmp.ne.s32.totalorder %s68, %s71
    %p77 = scmp.eq.s32.totalorder %s18, 0
    %p78 = por %p76, %p77
    %p79 = scmp.ne.s32.totalorder %s68, %s71
    %p80 = scmp.eq.s32.totalorder %s23, 4
    %p81 = por %p79, %p80
    %p82 = scmp.ne.s32.totalorder %s71, %s72
    %p83 = scmp.eq.s32.totalorder %s23, 0
    %p84 = por %p82, %p83
    %p85 = scmp.ne.s32.totalorder %s71, %s72
    %p86 = scmp.eq.s32.totalorder %s24, 4
    %p87 = por %p85, %p86
    %p89 = scmp.ne.s32.totalorder %s72, %s88
    %p90 = scmp.eq.s32.totalorder %s24, 0
    %p91 = por %p89, %p90
    %s92 = ssub.s32 %s26, %s33
    %p93 = scmp.eq.s32.totalorder %s92, 0
    %s95 = sadd.s32 %s94, 1
    %s96 = scalar_select %p93, %s94, %s95
    %p99 = pneg %p93
    %p100 = scmp.eq.s32.totalorder %s18, 4
    %p101 = por %p99, %p100
    %p102 = scmp.ne.s32.totalorder %s94, %s97
    %p103 = scmp.eq.s32.totalorder %s18, 0
    %p104 = por %p102, %p103
    %p105 = scmp.ne.s32.totalorder %s94, %s97
    %p106 = scmp.eq.s32.totalorder %s23, 4
    %p107 = por %p105, %p106
    %p108 = scmp.ne.s32.totalorder %s97, %s98
    %p109 = scmp.eq.s32.totalorder %s23, 0
    %p110 = por %p108, %p109
    %p111 = scmp.ne.s32.totalorder %s97, %s98
    %p112 = scmp.eq.s32.totalorder %s24, 4
    %p113 = por %p111, %p112
    %p115 = scmp.ne.s32.totalorder %s98, %s114
    %p116 = scmp.eq.s32.totalorder %s24, 0
    %p117 = por %p115, %p116
    %s118 = ssub.s32 %s26, %s33
    %p119 = scmp.eq.s32.totalorder %s118, 0
    %s121 = sadd.s32 %s120, 1
    %s122 = scalar_select %p119, %s120, %s121
    %p125 = pneg %p119
    %p126 = scmp.eq.s32.totalorder %s18, 4
    %p127 = por %p125, %p126
    %p128 = scmp.ne.s32.totalorder %s120, %s123
    %p129 = scmp.eq.s32.totalorder %s18, 0
    %p130 = por %p128, %p129
    %p131 = scmp.ne.s32.totalorder %s120, %s123
    %p132 = scmp.eq.s32.totalorder %s23, 4
    %p133 = por %p131, %p132
    %p134 = scmp.ne.s32.totalorder %s123, %s124
    %p135 = scmp.eq.s32.totalorder %s23, 0
    %p136 = por %p134, %p135
    %p137 = scmp.ne.s32.totalorder %s123, %s124
    %p138 = scmp.eq.s32.totalorder %s24, 4
    %p139 = por %p137, %p138
    %p141 = scmp.ne.s32.totalorder %s124, %s140
    %p142 = scmp.eq.s32.totalorder %s24, 0
    %p143 = por %p141, %p142
    %s144 = ssub.s32 %s26, %s33
    %p145 = scmp.eq.s32.totalorder %s144, 0
    %s147 = sadd.s32 %s146, 1
    %s148 = scalar_select %p145, %s146, %s147
    %p151 = pneg %p145
    %p152 = scmp.eq.s32.totalorder %s18, 4
    %p153 = por %p151, %p152
    %p154 = scmp.ne.s32.totalorder %s146, %s149
    %p155 = scmp.eq.s32.totalorder %s18, 0
    %p156 = por %p154, %p155
    %p157 = scmp.ne.s32.totalorder %s146, %s149
    %p158 = scmp.eq.s32.totalorder %s23, 4
    %p159 = por %p157, %p158
    %p160 = scmp.ne.s32.totalorder %s149, %s150
    %p161 = scmp.eq.s32.totalorder %s23, 0
    %p162 = por %p160, %p161
    %p163 = scmp.ne.s32.totalorder %s149, %s150
    %p164 = scmp.eq.s32.totalorder %s24, 4
    %p165 = por %p163, %p164
    %p167 = scmp.ne.s32.totalorder %s150, %s166
    %p168 = scmp.eq.s32.totalorder %s24, 0
    %p169 = por %p167, %p168
    %s170 = ssub.s32 %s25, %s37
    %p171 = scmp.eq.s32.totalorder %s170, 0
    %s173 = sadd.s32 %s172, 1
    %s174 = scalar_select %p171, %s172, %s173
    %p177 = pneg %p171
    %p178 = scmp.eq.s32.totalorder %s18, 4
    %p179 = por %p177, %p178
    %p180 = scmp.ne.s32.totalorder %s172, %s175
    %p181 = scmp.eq.s32.totalorder %s18, 0
    %p182 = por %p180, %p181
    %p183 = scmp.ne.s32.totalorder %s172, %s175
    %p184 = scmp.eq.s32.totalorder %s23, 4
    %p185 = por %p183, %p184
    %p186 = scmp.ne.s32.totalorder %s175, %s176
    %p187 = scmp.eq.s32.totalorder %s23, 0
    %p188 = por %p186, %p187
    %p189 = scmp.ne.s32.totalorder %s175, %s176
    %p190 = scmp.eq.s32.totalorder %s24, 4
    %p191 = por %p189, %p190
    %p193 = scmp.ne.s32.totalorder %s176, %s192
    %p194 = scmp.eq.s32.totalorder %s24, 0
    %p195 = por %p193, %p194
    %p196 = scmp.le.s32.totalorder 1, %s18
    %p197 = scmp.lt.s32.totalorder %s18, 6
    %p198 = pnand %p196, %p197
    %p199 = pneg %p198
    // Predicated region
    $region9: #{deepseek_v2_model_forward.20} parent=5 // pred_check
      _
    $region10: #{deepseek_v2_model_forward.20} parent=5 // pred_check_branch
      %201 = sbr.rel (%p198) target = $region12
    $region11: #{deepseek_v2_model_forward.20} parent=5 // pred_region
      %s202 = ssub.s32 %s18, 1
      // Predicated region
      $region13: #{deepseek_v2_model_forward.20} parent=11 // pred_check
        %p203 = pneg %p56
      $region14: #{deepseek_v2_model_forward.20} parent=11 // pred_check_branch
        %205 = sbr.rel (%p203) target = $region16
      $region15: #{deepseek_v2_model_forward.20} parent=11 // pred_region
        %s206 = smul.u32 2, %s27
        %p207 = scmp.lt.s32.totalorder %s206, 1
        %s208 = scalar_select %p207, %s206, 1
        %s209 = smul.addr %s208, 4
        %s210 = scalar_lea.vmem %s1, %s209
        %s211 = smul.u32 2, %s27
      $region16: #{deepseek_v2_model_forward.20} parent=11 // pred_fallthru
        _
    $region12: #{deepseek_v2_model_forward.20} parent=5 // pred_fallthru
      _
    %p212 = scmp.lt.s32.totalorder %s18, 5
    // Predicated region
    $region17: #{deepseek_v2_model_forward.20} parent=5 // pred_check
      %p213 = pneg %p212
    $region18: #{deepseek_v2_model_forward.20} parent=5 // pred_check_branch
      %215 = sbr.rel (%p213) target = $region20
    $region19: #{deepseek_v2_model_forward.20} parent=5 // pred_region
      // Predicated region
      $region21: #{deepseek_v2_model_forward.20} parent=19 // pred_check
        %p216 = pneg %p78
      $region22: #{deepseek_v2_model_forward.20} parent=19 // pred_check_branch
        %218 = sbr.rel (%p216) target = $region24
      $region23: #{deepseek_v2_model_forward.20} parent=19 // pred_region
        %s219 = smul.u32 2, %s25
        %p220 = scmp.lt.s32.totalorder %s26, 4
        %s221 = scalar_select %p220, %s26, 4
        %p222 = scmp.lt.s32.totalorder %s219, 1
        %s223 = scalar_select %p222, %s219, 1
        %s224 = smul.addr %s221, 2
        %s225 = sadd.s32 %s223, %s224
        %s226 = smul.addr %s225, 8
        %s227 = scalar_lea.vmem %s2, %s226
        %s228 = smul.u32 2, %s25
      $region24: #{deepseek_v2_model_forward.20} parent=19 // pred_fallthru
        _
      // Predicated region
      $region25: #{deepseek_v2_model_forward.20} parent=19 // pred_check
        %p229 = pneg %p104
      $region26: #{deepseek_v2_model_forward.20} parent=19 // pred_check_branch
        %231 = sbr.rel (%p229) target = $region28
      $region27: #{deepseek_v2_model_forward.20} parent=19 // pred_region
        %p232 = scmp.lt.s32.totalorder %s26, 4
        %s233 = scalar_select %p232, %s26, 4
        %s234 = smul.addr %s233, 16
        %s235 = smul.addr %s234, 4
        %s236 = scalar_lea.vmem %s3, %s235
      $region28: #{deepseek_v2_model_forward.20} parent=19 // pred_fallthru
        _
      // Predicated region
      $region29: #{deepseek_v2_model_forward.20} parent=19 // pred_check
        %p237 = pneg %p130
      $region30: #{deepseek_v2_model_forward.20} parent=19 // pred_check_branch
        %239 = sbr.rel (%p237) target = $region32
      $region31: #{deepseek_v2_model_forward.20} parent=19 // pred_region
        %p240 = scmp.lt.s32.totalorder %s26, 4
        %s241 = scalar_select %p240, %s26, 4
        %s242 = smul.addr %s241, 16
        %s243 = smul.addr %s242, 4
        %s244 = scalar_lea.vmem %s4, %s243
      $region32: #{deepseek_v2_model_forward.20} parent=19 // pred_fallthru
        _
      // Predicated region
      $region33: #{deepseek_v2_model_forward.20} parent=19 // pred_check
        %p245 = pneg %p156
      $region34: #{deepseek_v2_model_forward.20} parent=19 // pred_check_branch
        %247 = sbr.rel (%p245) target = $region36
      $region35: #{deepseek_v2_model_forward.20} parent=19 // pred_region
        %p248 = scmp.lt.s32.totalorder %s26, 4
        %s249 = scalar_select %p248, %s26, 4
        %s250 = smul.addr %s249, 4
        %s251 = smul.addr %s250, 4
        %s252 = scalar_lea.vmem %s5, %s251
      $region36: #{deepseek_v2_model_forward.20} parent=19 // pred_fallthru
        _
    $region20: #{deepseek_v2_model_forward.20} parent=5 // pred_fallthru
      _
    %p253 = scmp.le.s32.totalorder 1, %s18
    %p254 = scmp.lt.s32.totalorder %s18, 6
    %p255 = pnand %p253, %p254
    %p256 = pneg %p255
    // Predicated region
    $region37: #{deepseek_v2_model_forward.20} parent=5 // pred_check
      _
    $region38: #{deepseek_v2_model_forward.20} parent=5 // pred_check_branch
      %258 = sbr.rel (%p255) target = $region40
    $region39: #{deepseek_v2_model_forward.20} parent=5 // pred_region
      %s259 = ssub.s32 %s18, 1
      %s260 = smul.u32 2, %s27
      %p261 = scmp.lt.s32.totalorder %s260, 1
      %s262 = scalar_select %p261, %s260, 1
      %s263 = smul.addr %s262, 4
      %s264 = scalar_lea.vmem %s1, %s263
      %p265 = pneg %p56
      %p266 = pneg %p53
      %s267 = smul.u32 2, %s27
      %p268 = scmp.lt.s32.totalorder %s28, 4
      %s269 = scalar_select %p268, %s28, 4
      %p270 = scmp.lt.s32.totalorder %s267, 1
      %s271 = scalar_select %p270, %s267, 1
      %s272 = smul.addr %s269, 2
      %s273 = sadd.s32 %s271, %s272
      %s274 = smul.addr %s273, 8
      %s275 = scalar_lea.vmem %s2, %s274
      %p276 = pneg %p84
      %p277 = pneg %p81
      %p278 = scmp.lt.s32.totalorder %s28, 4
      %s279 = scalar_select %p278, %s28, 4
      %s280 = smul.addr %s279, 16
      %s281 = smul.addr %s280, 4
      %s282 = scalar_lea.vmem %s3, %s281
      %p283 = pneg %p110
      %p284 = pneg %p107
      %p285 = scmp.lt.s32.totalorder %s28, 4
      %s286 = scalar_select %p285, %s28, 4
      %s287 = smul.addr %s286, 16
      %s288 = smul.addr %s287, 4
      %s289 = scalar_lea.vmem %s4, %s288
      %p290 = pneg %p136
      %p291 = pneg %p133
      %p292 = scmp.lt.s32.totalorder %s28, 4
      %s293 = scalar_select %p292, %s28, 4
      %s294 = smul.addr %s293, 4
      %s295 = smul.addr %s294, 4
      %s296 = scalar_lea.vmem %s5, %s295
      %p297 = pneg %p162
      %p298 = pneg %p159
      %p299 = pneg %p188
      %p300 = pneg %p185
      %s301 = smul.u32 2, %s27
      %p302 = scmp.lt.s32.totalorder %s301, 1
      %s303 = scalar_select %p302, %s301, 1
      %s304 = smul.addr %s303, 4
      %s305 = scalar_lea.vmem %s6, %s304
      %s306 = smul.u32 2, %s27
      %p307 = scmp.lt.s32.totalorder %s306, 1
      %s308 = scalar_select %p307, %s306, 1
      %s309 = smul.addr %s308, 4
      %s310 = scalar_lea.vmem %s1, %s309
      %s311 = smul.u32 2, %s27
      %s312 = smul.u32 2, %s27
      %p313 = scmp.lt.s32.totalorder %s28, 4
      %s314 = scalar_select %p313, %s28, 4
      %p315 = scmp.lt.s32.totalorder %s312, 1
      %s316 = scalar_select %p315, %s312, 1
      %s317 = smul.addr %s314, 2
      %s318 = sadd.s32 %s316, %s317
      %s319 = smul.addr %s318, 8
      %s320 = scalar_lea.vmem %s2, %s319
      %s321 = smul.u32 2, %s27
      %p322 = scmp.lt.s32.totalorder %s28, 4
      %s323 = scalar_select %p322, %s28, 4
      %s324 = smul.addr %s323, 16
      %s325 = smul.addr %s324, 4
      %s326 = scalar_lea.vmem %s3, %s325
      %p327 = scmp.lt.s32.totalorder %s28, 4
      %s328 = scalar_select %p327, %s28, 4
      %s329 = smul.addr %s328, 16
      %s330 = smul.addr %s329, 4
      %s331 = scalar_lea.vmem %s4, %s330
      %p332 = scmp.lt.s32.totalorder %s28, 4
      %s333 = scalar_select %p332, %s28, 4
      %s334 = smul.addr %s333, 4
      %s335 = smul.addr %s334, 4
      %s336 = scalar_lea.vmem %s5, %s335
      %s337 = smul.u32 2, %s27
      %p338 = scmp.lt.s32.totalorder %s337, 1
      %s339 = scalar_select %p338, %s337, 1
      %s340 = smul.addr %s339, 4
      %s341 = scalar_lea.vmem %s6, %s340
      %s342 = smul.u32 2, %s27
      %p344 = scmp.eq.s32.totalorder %s28, 0
      // Predicated region
      $region41: #{deepseek_v2_model_forward.20} parent=39 // pred_check
        %p345 = pneg %p344
      $region42: #{deepseek_v2_model_forward.20} parent=39 // pred_check_branch
        %347 = sbr.rel (%p345) target = $region44
      $region43: #{deepseek_v2_model_forward.20} parent=39 // pred_region
        %348 = vst [vmem:[#allocation2] sm:$0xff] 0.0
        %349 = vst [vmem:[#allocation2 + $0x8] sm:$0xff] 0.0
      $region44: #{deepseek_v2_model_forward.20} parent=39 // pred_fallthru
        _
      %s350 = sld [smem:[#allocation4 + %s28]]
      %p351 = scmp.gt.s32.totalorder %s350, 0
      // Predicated region
      $region45: #{deepseek_v2_model_forward.20} parent=39 // pred_check
        %p352 = pneg %p351
      $region46: #{deepseek_v2_model_forward.20} parent=39 // pred_check_branch
        %354 = sbr.rel (%p352) target = $region48
      $region47: #{deepseek_v2_model_forward.20} parent=39 // pred_region
        %v355 = vld [vmem:[%s310] sm:$0xf]
        %v356 = vld [vmem:[%s310 + $0x4] sm:$0xf]
        %v357 = vld [vmem:[%s326] sm:$0xf]
        %v358 = vld [vmem:[%s326 + $0x4] sm:$0xf]
        %v359 = vld [vmem:[%s326 + $0x8] sm:$0xf]
        %v360 = vld [vmem:[%s326 + $0xc] sm:$0xf]
        %v361 = vld [vmem:[%s326 + $0x10] sm:$0xf]
        %v362 = vld [vmem:[%s326 + $0x14] sm:$0xf]
        %v363 = vld [vmem:[%s326 + $0x18] sm:$0xf]
        %v364 = vld [vmem:[%s326 + $0x1c] sm:$0xf]
        %v365 = vld [vmem:[%s326 + $0x20] sm:$0xf]
        %v366 = vld [vmem:[%s326 + $0x24] sm:$0xf]
        %v367 = vld [vmem:[%s326 + $0x28] sm:$0xf]
        %v368 = vld [vmem:[%s326 + $0x2c] sm:$0xf]
        %v369 = vld [vmem:[%s326 + $0x30] sm:$0xf]
        %v370 = vld [vmem:[%s326 + $0x34] sm:$0xf]
        %v371 = vld [vmem:[%s326 + $0x38] sm:$0xf]
        %v372 = vld [vmem:[%s326 + $0x3c] sm:$0xf]
        %v375 = vunpack.c.l.b16 %v355
        %v376 = vunpack.c.l.b16 %v356
        %v377 = vpack.c.b16 %v376, %v375
        %v395 = vunpack.c.l.b16 %v357
        %v396 = vunpack.c.l.b16 %v358
        %v397 = vunpack.c.l.b16 %v359
        %v398 = vunpack.c.l.b16 %v360
        %v399 = vunpack.c.l.b16 %v361
        %v400 = vunpack.c.l.b16 %v362
        %v401 = vunpack.c.l.b16 %v363
        %v402 = vunpack.c.l.b16 %v364
        %v403 = vunpack.c.l.b16 %v365
        %v404 = vunpack.c.l.b16 %v366
        %v405 = vunpack.c.l.b16 %v367
        %v406 = vunpack.c.l.b16 %v368
        %v407 = vunpack.c.l.b16 %v369
        %v408 = vunpack.c.l.b16 %v370
        %v409 = vunpack.c.l.b16 %v371
        %v410 = vunpack.c.l.b16 %v372
        %v411 = vpack.c.b16 %v396, %v395
        %v412 = vpack.c.b16 %v398, %v397
        %v413 = vpack.c.b16 %v400, %v399
        %v414 = vpack.c.b16 %v402, %v401
        %v415 = vpack.c.b16 %v404, %v403
        %v416 = vpack.c.b16 %v406, %v405
        %v417 = vpack.c.b16 %v408, %v407
        %v418 = vpack.c.b16 %v410, %v409
        %427 = vmatprep.subr.bf16.mxu0 0
        %428 = vmatpush1.bf16.msra.mxu0 %v418
        %429 = vmatprep.subr.bf16.mxu0 0
        %430 = vmatpush1.bf16.msra.mxu0 %v417
        %431 = vmatprep.subr.bf16.mxu0 0
        %432 = vmatpush1.bf16.msra.mxu0 %v416
        %433 = vmatprep.subr.bf16.mxu0 0
        %434 = vmatpush1.bf16.msra.mxu0 %v415
        %435 = vmatprep.subr.bf16.mxu0 0
        %436 = vmatpush1.bf16.msra.mxu0 %v414
        %437 = vmatprep.subr.bf16.mxu0 0
        %438 = vmatpush1.bf16.msra.mxu0 %v413
        %439 = vmatprep.subr.bf16.mxu0 0
        %440 = vmatpush1.bf16.msra.mxu0 %v412
        %441 = vmatprep.subr.bf16.mxu0 0
        %442 = vmatpush1.bf16.msra.mxu0 %v411
        %443 = vmatprep.subr.bf16.mxu0 0
        %444 = vmatpush2.bf16.msra.mxu0 0
        %445 = vmatprep.subr.bf16.mxu0 0
        %446 = vmatpush2.bf16.msra.mxu0 0
        %447 = vmatprep.subr.bf16.mxu0 0
        %448 = vmatpush2.bf16.msra.mxu0 0
        %449 = vmatprep.subr.bf16.mxu0 0
        %450 = vmatpush2.bf16.msra.mxu0 0
        %451 = vmatprep.subr.bf16.mxu0 0
        %452 = vmatpush2.bf16.msra.mxu0 0
        %453 = vmatprep.subr.bf16.mxu0 0
        %454 = vmatpush2.bf16.msra.mxu0 0
        %455 = vmatprep.subr.bf16.mxu0 0
        %456 = vmatpush2.bf16.msra.mxu0 0
        %457 = vmatprep.subr.bf16.mxu0 0
        %458 = vmatpush2.bf16.msra.mxu0 0
        %459 = vmatprep.mubr.bf16.mxu0 0
        %460 = vmatmul.mubr.bf16.gmra.mxu0 %v377
        %v461 = vpop.f32.mrf.mxu0
        %v462 = vadd.f32 0.0, %v461
        %v463 = vpop.f32.mrf.mxu0
        %v464 = vpop.f32.mrf.mxu0
        %v465 = vadd.f32 0.0, %v464
        %v466 = vpop.f32.mrf.mxu0
        %467 = vdwg.mxu0
        %v468 = vld [vmem:[%s331] sm:$0xf]
        %v469 = vld [vmem:[%s331 + $0x4] sm:$0xf]
        %v470 = vld [vmem:[%s331 + $0x8] sm:$0xf]
        %v471 = vld [vmem:[%s331 + $0xc] sm:$0xf]
        %v472 = vld [vmem:[%s331 + $0x10] sm:$0xf]
        %v473 = vld [vmem:[%s331 + $0x14] sm:$0xf]
        %v474 = vld [vmem:[%s331 + $0x18] sm:$0xf]
        %v475 = vld [vmem:[%s331 + $0x1c] sm:$0xf]
        %v476 = vld [vmem:[%s331 + $0x20] sm:$0xf]
        %v477 = vld [vmem:[%s331 + $0x24] sm:$0xf]
        %v478 = vld [vmem:[%s331 + $0x28] sm:$0xf]
        %v479 = vld [vmem:[%s331 + $0x2c] sm:$0xf]
        %v480 = vld [vmem:[%s331 + $0x30] sm:$0xf]
        %v481 = vld [vmem:[%s331 + $0x34] sm:$0xf]
        %v482 = vld [vmem:[%s331 + $0x38] sm:$0xf]
        %v483 = vld [vmem:[%s331 + $0x3c] sm:$0xf]
        %v500 = vunpack.c.l.b16 %v468
        %v501 = vunpack.c.l.b16 %v469
        %v502 = vunpack.c.l.b16 %v470
        %v503 = vunpack.c.l.b16 %v471
        %v504 = vunpack.c.l.b16 %v472
        %v505 = vunpack.c.l.b16 %v473
        %v506 = vunpack.c.l.b16 %v474
        %v507 = vunpack.c.l.b16 %v475
        %v508 = vunpack.c.l.b16 %v476
        %v509 = vunpack.c.l.b16 %v477
        %v510 = vunpack.c.l.b16 %v478
        %v511 = vunpack.c.l.b16 %v479
        %v512 = vunpack.c.l.b16 %v480
        %v513 = vunpack.c.l.b16 %v481
        %v514 = vunpack.c.l.b16 %v482
        %v515 = vunpack.c.l.b16 %v483
        %v516 = vpack.c.b16 %v501, %v500
        %v517 = vpack.c.b16 %v503, %v502
        %v518 = vpack.c.b16 %v505, %v504
        %v519 = vpack.c.b16 %v507, %v506
        %v520 = vpack.c.b16 %v509, %v508
        %v521 = vpack.c.b16 %v511, %v510
        %v522 = vpack.c.b16 %v513, %v512
        %v523 = vpack.c.b16 %v515, %v514
        %532 = vmatprep.subr.bf16.mxu0 0
        %533 = vmatpush1.bf16.msra.mxu0 %v523
        %534 = vmatprep.subr.bf16.mxu0 0
        %535 = vmatpush1.bf16.msra.mxu0 %v522
        %536 = vmatprep.subr.bf16.mxu0 0
        %537 = vmatpush1.bf16.msra.mxu0 %v521
        %538 = vmatprep.subr.bf16.mxu0 0
        %539 = vmatpush1.bf16.msra.mxu0 %v520
        %540 = vmatprep.subr.bf16.mxu0 0
        %541 = vmatpush1.bf16.msra.mxu0 %v519
        %542 = vmatprep.subr.bf16.mxu0 0
        %543 = vmatpush1.bf16.msra.mxu0 %v518
        %544 = vmatprep.subr.bf16.mxu0 0
        %545 = vmatpush1.bf16.msra.mxu0 %v517
        %546 = vmatprep.subr.bf16.mxu0 0
        %547 = vmatpush1.bf16.msra.mxu0 %v516
        %548 = vmatprep.subr.bf16.mxu0 0
        %549 = vmatpush2.bf16.msra.mxu0 0
        %550 = vmatprep.subr.bf16.mxu0 0
        %551 = vmatpush2.bf16.msra.mxu0 0
        %552 = vmatprep.subr.bf16.mxu0 0
        %553 = vmatpush2.bf16.msra.mxu0 0
        %554 = vmatprep.subr.bf16.mxu0 0
        %555 = vmatpush2.bf16.msra.mxu0 0
        %556 = vmatprep.subr.bf16.mxu0 0
        %557 = vmatpush2.bf16.msra.mxu0 0
        %558 = vmatprep.subr.bf16.mxu0 0
        %559 = vmatpush2.bf16.msra.mxu0 0
        %560 = vmatprep.subr.bf16.mxu0 0
        %561 = vmatpush2.bf16.msra.mxu0 0
        %562 = vmatprep.subr.bf16.mxu0 0
        %563 = vmatpush2.bf16.msra.mxu0 0
        %564 = vmatprep.mubr.bf16.mxu0 0
        %565 = vmatmul.mubr.bf16.gmra.mxu0 %v377
        %v566 = vpop.f32.mrf.mxu0
        %v567 = vadd.f32 0.0, %v566
        %v568 = vpop.f32.mrf.mxu0
        %v569 = vpop.f32.mrf.mxu0
        %v570 = vadd.f32 0.0, %v569
        %v571 = vpop.f32.mrf.mxu0
        %572 = vdwg.mxu0
        %v573 = vxor.u32 %v462, 2147483648
        %v574 = vxor.u32 %v465, 2147483648
        %v575 = vmul.f32 %v573, 1.442695
        %v576 = vpow.pop %v575
        %v577 = vmul.f32 %v574, 1.442695
        %v578 = vpow.pop %v577
        %v579 = vadd.f32 %v576, 1.0
        %v580 = vadd.f32 %v578, 1.0
        %v581 = vrcp.pop %v579
        %v582 = vmul.f32 1.0, %v581
        %v583 = vrcp.pop %v580
        %v584 = vmul.f32 1.0, %v583
        %v585 = vmul.f32 %v462, %v582
        %v586 = vmul.f32 %v465, %v584
        %v587 = vmul.f32 %v585, %v567
        %v588 = vmul.f32 %v586, %v570
        %v589 = vpack.c.bf16 %v588, %v587
        %v590 = vld [vmem:[%s336] sm:$0xf]
        %v591 = vld [vmem:[%s336 + $0x4] sm:$0xf]
        %v592 = vld [vmem:[%s336 + $0x8] sm:$0xf]
        %v593 = vld [vmem:[%s336 + $0xc] sm:$0xf]
        %v598 = vunpack.c.l.b16 %v590
        %v599 = vunpack.c.l.b16 %v591
        %v600 = vunpack.c.l.b16 %v592
        %v601 = vunpack.c.l.b16 %v593
        %v602 = vpack.c.b16 %v599, %v598
        %v603 = vpack.c.b16 %v601, %v600
        %vm606 = vcmask 261120
        %v608 = vsel %vm606, %v589, 0
        %610 = vmatprep.subr.bf16.mxu0 0
        %611 = vmatpush1.bf16.msra.mxu0 0
        %612 = vmatprep.subr.bf16.mxu0 0
        %613 = vmatpush1.bf16.msra.mxu0 0
        %614 = vmatprep.subr.bf16.mxu0 0
        %615 = vmatpush1.bf16.msra.mxu0 0
        %616 = vmatprep.subr.bf16.mxu0 0
        %617 = vmatpush1.bf16.msra.mxu0 0
        %618 = vmatprep.subr.bf16.mxu0 0
        %619 = vmatpush1.bf16.msra.mxu0 0
        %620 = vmatprep.subr.bf16.mxu0 0
        %621 = vmatpush1.bf16.msra.mxu0 0
        %622 = vmatprep.subr.bf16.mxu0 0
        %623 = vmatpush1.bf16.msra.mxu0 %v603
        %624 = vmatprep.subr.bf16.mxu0 0
        %625 = vmatpush1.bf16.msra.mxu0 %v602
        %626 = vmatprep.subr.bf16.mxu0 0
        %627 = vmatpush2.bf16.msra.mxu0 0
        %628 = vmatprep.subr.bf16.mxu0 0
        %629 = vmatpush2.bf16.msra.mxu0 0
        %630 = vmatprep.subr.bf16.mxu0 0
        %631 = vmatpush2.bf16.msra.mxu0 0
        %632 = vmatprep.subr.bf16.mxu0 0
        %633 = vmatpush2.bf16.msra.mxu0 0
        %634 = vmatprep.subr.bf16.mxu0 0
        %635 = vmatpush2.bf16.msra.mxu0 0
        %636 = vmatprep.subr.bf16.mxu0 0
        %637 = vmatpush2.bf16.msra.mxu0 0
        %638 = vmatprep.subr.bf16.mxu0 0
        %639 = vmatpush2.bf16.msra.mxu0 0
        %640 = vmatprep.subr.bf16.mxu0 0
        %641 = vmatpush2.bf16.msra.mxu0 0
        %642 = vmatprep.mubr.bf16.mxu0 0
        %643 = vmatmul.mubr.bf16.gmra.mxu0 %v608
        %v644 = vpop.f32.mrf.mxu0
        %v645 = vadd.f32 0.0, %v644
        %v646 = vpop.f32.mrf.mxu0
        %v647 = vpop.f32.mrf.mxu0
        %v648 = vadd.f32 0.0, %v647
        %v649 = vpop.f32.mrf.mxu0
        %650 = vdwg.mxu0
        %v651 = vld [vmem:[#allocation2] sm:$0xff]
        %v652 = vld [vmem:[#allocation2 + $0x8] sm:$0xff]
        %v653 = vld [vmem:[%s320] sm:$0xff]
        %v654 = vld [vmem:[%s320 + $0x8] sm:$0xff]
        %656 = vset.pattern.permute.xlu0 0
        %657 = vperm.xlu0 %656, %v653
        %v658 = vpop.permute.xlu0 %657
        %661 = vset.pattern.permute.xlu0 0
        %662 = vperm.xlu0 %661, %v654
        %v663 = vpop.permute.xlu0 %662
        %v665 = vmul.f32 %v658, %v645
        %v666 = vmul.f32 %v663, %v648
        %v667 = vadd.f32 %v651, %v665
        %v668 = vadd.f32 %v652, %v666
        %669 = vst [vmem:[#allocation2] sm:$0xff] %v667
        %670 = vst [vmem:[#allocation2 + $0x8] sm:$0xff] %v668
      $region48: #{deepseek_v2_model_forward.20} parent=39 // pred_fallthru
        _
      %p671 = scmp.eq.s32.totalorder %s28, 4
      // Predicated region
      $region49: #{deepseek_v2_model_forward.20} parent=39 // pred_check
        %p672 = pneg %p671
      $region50: #{deepseek_v2_model_forward.20} parent=39 // pred_check_branch
        %674 = sbr.rel (%p672) target = $region52
      $region51: #{deepseek_v2_model_forward.20} parent=39 // pred_region
        %v675 = vld [vmem:[#allocation2] sm:$0xff]
        %v676 = vld [vmem:[#allocation2 + $0x8] sm:$0xff]
        %v677 = vpack.c.bf16 %v676, %v675
        %v679 = vunpack.c.l.b16 %v677
        %v680 = vunpack.c.h.b16 %v677
        %v681 = vpack.c.b16 %v679, %v679
        %v682 = vpack.c.b16 %v680, %v680
        %685 = vst [vmem:[%s341] sm:$0xf] %v681
        %686 = vst [vmem:[%s341 + $0x4] sm:$0xf] %v682
      $region52: #{deepseek_v2_model_forward.20} parent=39 // pred_fallthru
        _
      %s687 = smul.u32 2, %s27
      %p688 = scmp.lt.s32.totalorder %s687, 1
      %s689 = scalar_select %p688, %s687, 1
      %s690 = smul.addr %s689, 4
      %s691 = scalar_lea.vmem %s6, %s690
      // Predicated region
      $region53: #{deepseek_v2_model_forward.20} parent=39 // pred_check
        %p692 = pneg %p185
      $region54: #{deepseek_v2_model_forward.20} parent=39 // pred_check_branch
        %694 = sbr.rel (%p692) target = $region56
      $region55: #{deepseek_v2_model_forward.20} parent=39 // pred_region
        %s695 = smul.u32 2, %s27
      $region56: #{deepseek_v2_model_forward.20} parent=39 // pred_fallthru
        _
      // Predicated region
      $region57: #{deepseek_v2_model_forward.20} parent=39 // pred_check
        %p696 = pneg %p185
      $region58: #{deepseek_v2_model_forward.20} parent=39 // pred_check_branch
        %698 = sbr.rel (%p696) target = $region60
      $region59: #{deepseek_v2_model_forward.20} parent=39 // pred_region
        %s699 = smul.u32 2, %s27
        %p700 = scmp.lt.s32.totalorder %s699, 1
        %s701 = scalar_select %p700, %s699, 1
        %s702 = smul.addr %s701, 4
        %s703 = scalar_lea.vmem %s6, %s702
      $region60: #{deepseek_v2_model_forward.20} parent=39 // pred_fallthru
        _
    $region40: #{deepseek_v2_model_forward.20} parent=5 // pred_fallthru
      _
    %p704 = scmp.le.s32.totalorder 2, %s18
    // Predicated region
    $region61: #{deepseek_v2_model_forward.20} parent=5 // pred_check
      %p705 = pneg %p704
    $region62: #{deepseek_v2_model_forward.20} parent=5 // pred_check_branch
      %707 = sbr.rel (%p705) target = $region64
    $region63: #{deepseek_v2_model_forward.20} parent=5 // pred_region
      %s708 = ssub.s32 %s18, 2
    $region64: #{deepseek_v2_model_forward.20} parent=5 // pred_fallthru
      _
  $region6: #{deepseek_v2_model_forward.20} parent=0 // loop_footer
    %s22 = sadd.s32 1, %s18
  $region7: #{deepseek_v2_model_forward.20} parent=0 // loop_footer_branch
    %17 = sbr.rel target = $region3
  $region8: #{deepseek_v2_model_forward.20} parent=0 // loop_exit
    _

</llo_original>
